<compile_context>
chip_gen: v6e
topology: v6e:2x2x1
jax: 0.10.0
libtpu: 0.0.40
codegen_flags: <defaults>
</compile_context>

<pallas_src>
import functools
import math

import jax
import jax.numpy as jnp
from jax.experimental import pallas as pl
from jax.experimental.pallas import tpu as pltpu


# ----------------------- XLA-side patch assembly (cheap) -----------------------

def s2d_patches(x_nhwc):
    """im2col for a 4x4 / stride-2 / pad-1 conv via space-to-depth.

    Pad H,W by 1 (making them even), space-to-depth 2x2 blocks into channels;
    the conv becomes a 2x2/stride-1 conv -> only 4 shifted slices + concat.
    Returns (N*Ho*Wo, 16*C) with columns ordered (ki, kj, r2, c2, c), i.e.
    original tap (di, dj) = (2*ki + r2, 2*kj + c2).
    """
    N, H, W, C = x_nhwc.shape
    xp = jnp.pad(x_nhwc, ((0, 0), (1, 1), (1, 1), (0, 0)))
    Hs, Ws = (H + 2) // 2, (W + 2) // 2
    xs = xp.reshape(N, Hs, 2, Ws, 2, C).transpose(0, 1, 3, 2, 4, 5)
    xs = xs.reshape(N, Hs, Ws, 4 * C)
    Ho, Wo = H // 2, W // 2
    cols = [xs[:, ki:ki + Ho, kj:kj + Wo, :]
            for ki in range(2) for kj in range(2)]
    p = jnp.concatenate(cols, axis=-1)                 # (N, Ho, Wo, 16C)
    return p.reshape(N * Ho * Wo, 16 * C), (N, Ho, Wo)


def _tile_rows(m, spatial, cap=1024):
    """Row tile dividing M exactly (spatial = Ho*Wo always divides M = N*Ho*Wo).

    Large tiles amortize the ~0.35us/step grid overhead; when the grid would
    collapse to one step we halve the tile so both v7x TensorCores get work.
    """
    tm = min(cap, spatial)
    if m // tm < 2 and tm % 16 == 0:
        tm //= 2
    return tm


# ----------------------------- Pallas kernels -----------------------------

def _conv_act_kernel(p_ref, w_ref, o_ref, *, act, alpha):
    # bf16 @ bf16 -> f32 MXU accumulation, activation epilogue in f32.
    y = jnp.dot(p_ref[...], w_ref[...], preferred_element_type=jnp.float32)
    if act == "leaky":
        y = jnp.where(y > 0, y, alpha * y)
    elif act == "sigmoid":
        y = jax.nn.sigmoid(y)
    o_ref[...] = y.astype(o_ref.dtype)


def _conv_stats_kernel(p_ref, w_ref, o_ref, s_ref, q_ref):
    # Conv matmul whose output is stored in bf16, plus per-M-tile partial
    # BatchNorm statistics (sum, sum of squares) taken from the f32 acc.
    y = jnp.dot(p_ref[...], w_ref[...], preferred_element_type=jnp.float32)
    o_ref[...] = y.astype(o_ref.dtype)
    s_ref[...] = jnp.sum(y, axis=0, keepdims=True)[None]
    q_ref[...] = jnp.sum(y * y, axis=0, keepdims=True)[None]


def _bn_leaky_kernel(y_ref, ss_ref, o_ref, *, alpha):
    # Pure streamed affine (precomputed scale/shift) + LeakyReLU.
    ss = ss_ref[...]                                   # (2, C) f32
    z = y_ref[...].astype(jnp.float32) * ss[0:1, :] + ss[1:2, :]
    o_ref[...] = jnp.where(z > 0, z, alpha * z).astype(o_ref.dtype)


# ----------------------------- Pallas wrappers -----------------------------

def conv_act(p, w, *, act, out_dtype, tm, alpha=0.2):
    m, k = p.shape
    _, n = w.shape
    assert m % tm == 0
    kern = functools.partial(_conv_act_kernel, act=act, alpha=alpha)
    return pl.pallas_call(
        kern,
        out_shape=jax.ShapeDtypeStruct((m, n), out_dtype),
        grid_spec=pltpu.PrefetchScalarGridSpec(
            num_scalar_prefetch=0,
            grid=(m // tm,),
            in_specs=[pl.BlockSpec((tm, k), lambda i: (i, 0)),
                      pl.BlockSpec((k, n), lambda i: (0, 0))],
            out_specs=pl.BlockSpec((tm, n), lambda i: (i, 0))),
        compiler_params=pltpu.CompilerParams(
            dimension_semantics=("parallel",)),
    )(p, w)


def conv_stats(p, w, *, tm):
    m, k = p.shape
    _, n = w.shape
    assert m % tm == 0
    gm = m // tm
    return pl.pallas_call(
        _conv_stats_kernel,
        out_shape=(jax.ShapeDtypeStruct((m, n), jnp.bfloat16),
                   jax.ShapeDtypeStruct((gm, 1, n), jnp.float32),
                   jax.ShapeDtypeStruct((gm, 1, n), jnp.float32)),
        grid_spec=pltpu.PrefetchScalarGridSpec(
            num_scalar_prefetch=0,
            grid=(gm,),
            in_specs=[pl.BlockSpec((tm, k), lambda i: (i, 0)),
                      pl.BlockSpec((k, n), lambda i: (0, 0))],
            out_specs=[pl.BlockSpec((tm, n), lambda i: (i, 0)),
                       pl.BlockSpec((1, 1, n), lambda i: (i, 0, 0)),
                       pl.BlockSpec((1, 1, n), lambda i: (i, 0, 0))]),
        compiler_params=pltpu.CompilerParams(
            dimension_semantics=("parallel",)),
    )(p, w)


def bn_apply_leaky(y, scale_shift, *, tm, alpha=0.2):
    m, c = y.shape
    assert m % tm == 0
    kern = functools.partial(_bn_leaky_kernel, alpha=alpha)
    return pl.pallas_call(
        kern,
        out_shape=jax.ShapeDtypeStruct((m, c), jnp.bfloat16),
        grid_spec=pltpu.PrefetchScalarGridSpec(
            num_scalar_prefetch=0,
            grid=(m // tm,),
            in_specs=[pl.BlockSpec((tm, c), lambda i: (i, 0)),
                      pl.BlockSpec((2, c), lambda i: (0, 0))],
            out_specs=pl.BlockSpec((tm, c), lambda i: (i, 0))),
        compiler_params=pltpu.CompilerParams(
            dimension_semantics=("parallel",)),
    )(y, scale_shift)


def _bn_scale_shift(s_part, q_part, gamma, beta, m_count, eps=1e-5):
    """Fold per-tile partial stats + gamma/beta into a (2, C) scale/shift."""
    s = jnp.sum(s_part[:, 0, :], axis=0)
    q = jnp.sum(q_part[:, 0, :], axis=0)
    inv_m = 1.0 / float(m_count)
    mean = s * inv_m
    var = jnp.maximum(q * inv_m - mean * mean, 0.0)     # biased (training mode)
    scale = gamma * jax.lax.rsqrt(var + eps)
    shift = beta - mean * scale
    return jnp.stack([scale, shift], axis=0)            # (2, C) f32


# ----------------------------- parameters -----------------------------

def init_params(key, nc, nf):
    """Mirrors _initialize_weights(): conv ~ N(0, sqrt(2/(k*k*Cout))), BN g=1,b=0."""
    ks = jax.random.split(key, 5)

    def conv_w(k, cout, cin):
        n = 4 * 4 * cout
        return jax.random.normal(k, (cout, cin, 4, 4), jnp.float32) * math.sqrt(2.0 / n)

    p = {
        "w1": conv_w(ks[0], nf, nc),
        "w2": conv_w(ks[1], nf * 2, nf),
        "w3": conv_w(ks[2], nf * 4, nf * 2),
        "w4": conv_w(ks[3], nf * 8, nf * 4),
        "w5": conv_w(ks[4], 1, nf * 8),
    }
    for i, c in ((2, nf * 2), (3, nf * 4), (4, nf * 8)):
        p[f"g{i}"] = jnp.ones((c,), jnp.float32)
        p[f"b{i}"] = jnp.zeros((c,), jnp.float32)
    return p


def prepare_params(raw):
    """One-time weight layout transform + bf16 cast.  No padding at all."""
    pp = {}
    # layers 1-4: s2d layout -> rows ordered (ki, kj, r2, c2, Cin)
    for i in (1, 2, 3, 4):
        w = raw[f"w{i}"]                               # (Cout, Cin, 4, 4)
        co, ci = w.shape[0], w.shape[1]
        wm = w.reshape(co, ci, 2, 2, 2, 2)             # di=(ki,r2), dj=(kj,c2)
        wm = wm.transpose(2, 4, 3, 5, 1, 0).reshape(16 * ci, co)
        pp[f"w{i}"] = wm.astype(jnp.bfloat16)
    # layer 5: plain (kh, kw, Cin, Cout) flatten
    w = raw["w5"]
    co, ci = w.shape[0], w.shape[1]
    pp["w5"] = w.transpose(2, 3, 1, 0).reshape(16 * ci, co).astype(jnp.bfloat16)
    for i in (2, 3, 4):
        pp[f"g{i}"] = raw[f"g{i}"]
        pp[f"b{i}"] = raw[f"b{i}"]
    return pp


# ----------------------------- model -----------------------------

def make_encoder(nc, nf):
    couts = {1: nf, 2: nf * 2, 3: nf * 4, 4: nf * 8}

    def forward(x_nchw, pp):
        # NCHW (PyTorch) -> NHWC bf16 internally -> NCHW f32 out.
        x = jnp.transpose(x_nchw, (0, 2, 3, 1)).astype(jnp.bfloat16)

        # layer 1: conv + LeakyReLU
        p, (n, ho, wo) = s2d_patches(x)
        tm = _tile_rows(p.shape[0], ho * wo)
        y = conv_act(p, pp["w1"], act="leaky", out_dtype=jnp.bfloat16, tm=tm)
        x = y.reshape(n, ho, wo, couts[1])

        # layers 2-4: conv (+ fused partial BN stats) -> fold scale/shift ->
        # streamed affine + LeakyReLU.
        for i in (2, 3, 4):
            p, (n, ho, wo) = s2d_patches(x)
            m = p.shape[0]
            tm = _tile_rows(m, ho * wo)
            y, s_part, q_part = conv_stats(p, pp[f"w{i}"], tm=tm)
            ss = _bn_scale_shift(s_part, q_part, pp[f"g{i}"], pp[f"b{i}"], m)
            z = bn_apply_leaky(y, ss, tm=tm)
            x = z.reshape(n, ho, wo, couts[i])

        # layer 5: conv(4,1,0) on 4x4 spatial (im2col is a pure reshape) + Sigmoid
        n2, h, w, c = x.shape
        p = x.reshape(n2, h * w * c)
        y = conv_act(p, pp["w5"], act="sigmoid", out_dtype=jnp.float32, tm=n2)
        out = y.reshape(n2, 1, 1, 1)                   # NHWC
        return jnp.transpose(out, (0, 3, 1, 2))        # NCHW

    return forward


# ----------------------------- pure-JAX reference -----------------------------

def _reference_forward(x_nchw, raw, eps=1e-5, alpha=0.2):
    x = jnp.transpose(x_nchw, (0, 2, 3, 1))            # NHWC f32

    def conv(x, w, stride, pad):
        wh = jnp.transpose(w, (2, 3, 1, 0))            # OIHW -> HWIO
        return jax.lax.conv_general_dilated(
            x, wh, (stride, stride), [(pad, pad), (pad, pad)],
            dimension_numbers=("NHWC", "HWIO", "NHWC"))

    def bn(x, g, b):
        mean = jnp.mean(x, axis=(0, 1, 2))
        var = jnp.mean((x - mean) ** 2, axis=(0, 1, 2))
        return (x - mean) * jax.lax.rsqrt(var + eps) * g + b

    def leaky(v):
        return jnp.where(v > 0, v, alpha * v)

    x = leaky(conv(x, raw["w1"], 2, 1))
    for i in (2, 3, 4):
        x = leaky(bn(conv(x, raw[f"w{i}"], 2, 1), raw[f"g{i}"], raw[f"b{i}"]))
    x = jax.nn.sigmoid(conv(x, raw["w5"], 1, 0))
    return jnp.transpose(x, (0, 3, 1, 2))


if __name__ == "__main__":
    nc, nf = 3, 8            # opt.num_channels, opt.start_num_encoder_filt
    key = jax.random.PRNGKey(0)
    kx, kp = jax.random.split(key)
    # 64x64 spatial is required by the architecture (4 stride-2 convs + 4x4 valid).
    x = jax.random.normal(kx, (2, nc, 64, 64), jnp.float32)   # NCHW like PyTorch
    raw = init_params(kp, nc, nf)
    pp = prepare_params(raw)   # one-time weight layout / bf16

    fwd = jax.jit(make_encoder(nc, nf))
    out = fwd(x, pp)
    jax.block_until_ready(out)

    assert out.shape == (2, 1, 1, 1), out.shape
    assert bool(jnp.all((out >= 0.0) & (out <= 1.0))), "sigmoid range violated"

    ref = jax.jit(_reference_forward)(x, raw)
    err = float(jnp.max(jnp.abs(out.astype(jnp.float32) - ref)))
    assert err < 0.15, f"mismatch vs f32 reference: max abs err {err}"
    print("KERNEL_OK")
</pallas_src>

<mosaic_0001>
module attributes {stable_mosaic.version = 11 : i64} {
  func.func @_conv_act_kernel(%arg0: i32, %arg1: memref<1024x48xbf16, #tpu.memory_space<vmem>>, %arg2: memref<48x8xbf16, #tpu.memory_space<vmem>>, %arg3: memref<1024x8xbf16, #tpu.memory_space<vmem>>) attributes {dimension_semantics = [#tpu.dimension_semantics<parallel>], iteration_bounds = array<i64: 2>, scalar_prefetch = 0 : i64, scratch_operands = 0 : i64, tpu.core_type = #tpu.core_type<tc>, window_params = [{transform_indices = @transform_0, window_bounds = array<i64: 1024, 48>}, {pipeline_mode = #tpu.pipeline_mode<synchronous>, transform_indices = @transform_1, window_bounds = array<i64: 48, 8>}, {transform_indices = @transform_2, window_bounds = array<i64: 1024, 8>}]} {
    %c0 = arith.constant 0 : index
    %c0_0 = arith.constant 0 : index
    %0 = vector.load %arg1[%c0, %c0_0] : memref<1024x48xbf16, #tpu.memory_space<vmem>>, vector<1024x48xbf16>
    %c0_1 = arith.constant 0 : index
    %c0_2 = arith.constant 0 : index
    %1 = vector.load %arg2[%c0_1, %c0_2] : memref<48x8xbf16, #tpu.memory_space<vmem>>, vector<48x8xbf16>
    %cst = arith.constant dense<0.000000e+00> : vector<1024x8xf32>
    %2 = tpu.matmul %0, %1, %cst {dimension_numbers = #tpu.dot_dimension_numbers<[1], [0], [0], [1], [0, 0, 1, 1], [], []>} : vector<1024x48xbf16>, vector<48x8xbf16>, vector<1024x8xf32> -> vector<1024x8xf32>
    %cst_3 = arith.constant 0.000000e+00 : f32
    %3 = vector.broadcast %cst_3 : f32 to vector<1024x8xf32>
    %4 = arith.cmpf ogt, %2, %3 : vector<1024x8xf32>
    %cst_4 = arith.constant 2.000000e-01 : f32
    %5 = vector.broadcast %cst_4 : f32 to vector<1024x8xf32>
    %6 = arith.mulf %5, %2 : vector<1024x8xf32>
    %7 = arith.select %4, %2, %6 : vector<1024x8xi1>, vector<1024x8xf32>
    %8 = arith.truncf %7 : vector<1024x8xf32> to vector<1024x8xbf16>
    %c0_5 = arith.constant 0 : index
    %c0_6 = arith.constant 0 : index
    %9 = vector.load %arg3[%c0_5, %c0_6] : memref<1024x8xbf16, #tpu.memory_space<vmem>>, vector<1024x8xbf16>
    tpu.vector_store %arg3[%c0_5, %c0_6], %8 {strides = array<i32>} : memref<1024x8xbf16, #tpu.memory_space<vmem>>, vector<1024x8xbf16>,
    return
  }
  func.func @transform_0(%arg0: i32) -> (i32, i32) {
    %c0_i32 = arith.constant 0 : i32
    %c0_i32_0 = arith.constant 0 : i32
    return %arg0, %c0_i32 : i32, i32
  }
  func.func @transform_1(%arg0: i32) -> (i32, i32) {
    %c0_i32 = arith.constant 0 : i32
    %c0_i32_0 = arith.constant 0 : i32
    %c0_i32_1 = arith.constant 0 : i32
    return %c0_i32, %c0_i32_0 : i32, i32
  }
  func.func @transform_2(%arg0: i32) -> (i32, i32) {
    %c0_i32 = arith.constant 0 : i32
    %c0_i32_0 = arith.constant 0 : i32
    return %arg0, %c0_i32 : i32, i32
  }
}

module attributes {stable_mosaic.version = 11 : i64} {
  func.func @_conv_stats_kernel(%arg0: i32, %arg1: memref<256x128xbf16, #tpu.memory_space<vmem>>, %arg2: memref<128x16xbf16, #tpu.memory_space<vmem>>, %arg3: memref<256x16xbf16, #tpu.memory_space<vmem>>, %arg4: memref<1x1x16xf32, #tpu.memory_space<vmem>>, %arg5: memref<1x1x16xf32, #tpu.memory_space<vmem>>) attributes {dimension_semantics = [#tpu.dimension_semantics<parallel>], iteration_bounds = array<i64: 2>, scalar_prefetch = 0 : i64, scratch_operands = 0 : i64, tpu.core_type = #tpu.core_type<tc>, window_params = [{transform_indices = @transform_0, window_bounds = array<i64: 256, 128>}, {pipeline_mode = #tpu.pipeline_mode<synchronous>, transform_indices = @transform_1, window_bounds = array<i64: 128, 16>}, {transform_indices = @transform_2, window_bounds = array<i64: 256, 16>}, {transform_indices = @transform_3, window_bounds = array<i64: 1, 1, 16>}, {transform_indices = @transform_4, window_bounds = array<i64: 1, 1, 16>}]} {
    %c0 = arith.constant 0 : index
    %c0_0 = arith.constant 0 : index
    %0 = vector.load %arg1[%c0, %c0_0] : memref<256x128xbf16, #tpu.memory_space<vmem>>, vector<256x128xbf16>
    %c0_1 = arith.constant 0 : index
    %c0_2 = arith.constant 0 : index
    %1 = vector.load %arg2[%c0_1, %c0_2] : memref<128x16xbf16, #tpu.memory_space<vmem>>, vector<128x16xbf16>
    %cst = arith.constant dense<0.000000e+00> : vector<256x16xf32>
    %2 = tpu.matmul %0, %1, %cst {dimension_numbers = #tpu.dot_dimension_numbers<[1], [0], [0], [1], [0, 0, 1, 1], [], []>} : vector<256x128xbf16>, vector<128x16xbf16>, vector<256x16xf32> -> vector<256x16xf32>
    %3 = arith.truncf %2 : vector<256x16xf32> to vector<256x16xbf16>
    %c0_3 = arith.constant 0 : index
    %c0_4 = arith.constant 0 : index
    %4 = vector.load %arg3[%c0_3, %c0_4] : memref<256x16xbf16, #tpu.memory_space<vmem>>, vector<256x16xbf16>
    tpu.vector_store %arg3[%c0_3, %c0_4], %3 {strides = array<i32>} : memref<256x16xbf16, #tpu.memory_space<vmem>>, vector<256x16xbf16>,
    %cst_5 = arith.constant dense<0.000000e+00> : vector<16xf32>
    %5 = vector.multi_reduction <add>, %2, %cst_5 [0] : vector<256x16xf32> to vector<16xf32>
    %6 = vector.shape_cast %5 : vector<16xf32> to vector<1x16xf32>
    %7 = vector.shape_cast %6 : vector<1x16xf32> to vector<1x1x16xf32>
    %c0_6 = arith.constant 0 : index
    %c0_7 = arith.constant 0 : index
    %c0_8 = arith.constant 0 : index
    %8 = vector.load %arg4[%c0_6, %c0_7, %c0_8] : memref<1x1x16xf32, #tpu.memory_space<vmem>>, vector<1x1x16xf32>
    tpu.vector_store %arg4[%c0_6, %c0_7, %c0_8], %7 {strides = array<i32>} : memref<1x1x16xf32, #tpu.memory_space<vmem>>, vector<1x1x16xf32>,
    %9 = arith.mulf %2, %2 : vector<256x16xf32>
    %cst_9 = arith.constant dense<0.000000e+00> : vector<16xf32>
    %10 = vector.multi_reduction <add>, %9, %cst_9 [0] : vector<256x16xf32> to vector<16xf32>
    %11 = vector.shape_cast %10 : vector<16xf32> to vector<1x16xf32>
    %12 = vector.shape_cast %11 : vector<1x16xf32> to vector<1x1x16xf32>
    %c0_10 = arith.constant 0 : index
    %c0_11 = arith.constant 0 : index
    %c0_12 = arith.constant 0 : index
    %13 = vector.load %arg5[%c0_10, %c0_11, %c0_12] : memref<1x1x16xf32, #tpu.memory_space<vmem>>, vector<1x1x16xf32>
    tpu.vector_store %arg5[%c0_10, %c0_11, %c0_12], %12 {strides = array<i32>} : memref<1x1x16xf32, #tpu.memory_space<vmem>>, vector<1x1x16xf32>,
    return
  }
  func.func @transform_0(%arg0: i32) -> (i32, i32) {
    %c0_i32 = arith.constant 0 : i32
    %c0_i32_0 = arith.constant 0 : i32
    return %arg0, %c0_i32 : i32, i32
  }
  func.func @transform_1(%arg0: i32) -> (i32, i32) {
    %c0_i32 = arith.constant 0 : i32
    %c0_i32_0 = arith.constant 0 : i32
    %c0_i32_1 = arith.constant 0 : i32
    return %c0_i32, %c0_i32_0 : i32, i32
  }
  func.func @transform_2(%arg0: i32) -> (i32, i32) {
    %c0_i32 = arith.constant 0 : i32
    %c0_i32_0 = arith.constant 0 : i32
    return %arg0, %c0_i32 : i32, i32
  }
  func.func @transform_3(%arg0: i32) -> (i32, i32, i32) {
    %c0_i32 = arith.constant 0 : i32
    %c0_i32_0 = arith.constant 0 : i32
    %c0_i32_1 = arith.constant 0 : i32
    return %arg0, %c0_i32, %c0_i32_0 : i32, i32, i32
  }
  func.func @transform_4(%arg0: i32) -> (i32, i32, i32) {
    %c0_i32 = arith.constant 0 : i32
    %c0_i32_0 = arith.constant 0 : i32
    %c0_i32_1 = arith.constant 0 : i32
    return %arg0, %c0_i32, %c0_i32_0 : i32, i32, i32
  }
}

module attributes {stable_mosaic.version = 11 : i64} {
  func.func @_bn_leaky_kernel(%arg0: i32, %arg1: memref<256x16xbf16, #tpu.memory_space<vmem>>, %arg2: memref<2x16xf32, #tpu.memory_space<vmem>>, %arg3: memref<256x16xbf16, #tpu.memory_space<vmem>>) attributes {dimension_semantics = [#tpu.dimension_semantics<parallel>], iteration_bounds = array<i64: 2>, scalar_prefetch = 0 : i64, scratch_operands = 0 : i64, tpu.core_type = #tpu.core_type<tc>, window_params = [{transform_indices = @transform_0, window_bounds = array<i64: 256, 16>}, {pipeline_mode = #tpu.pipeline_mode<synchronous>, transform_indices = @transform_1, window_bounds = array<i64: 2, 16>}, {transform_indices = @transform_2, window_bounds = array<i64: 256, 16>}]} {
    %c0 = arith.constant 0 : index
    %c0_0 = arith.constant 0 : index
    %0 = vector.load %arg2[%c0, %c0_0] : memref<2x16xf32, #tpu.memory_space<vmem>>, vector<2x16xf32>
    %c0_1 = arith.constant 0 : index
    %c0_2 = arith.constant 0 : index
    %1 = vector.load %arg1[%c0_1, %c0_2] : memref<256x16xbf16, #tpu.memory_space<vmem>>, vector<256x16xbf16>
    %2 = arith.extf %1 : vector<256x16xbf16> to vector<256x16xf32>
    %3 = vector.extract_strided_slice %0 {offsets = [0, 0], sizes = [1, 16], strides = [1, 1]} : vector<2x16xf32> to vector<1x16xf32>
    %4 = vector.broadcast %3 : vector<1x16xf32> to vector<256x16xf32>
    %5 = arith.mulf %2, %4 : vector<256x16xf32>
    %6 = vector.extract_strided_slice %0 {offsets = [1, 0], sizes = [1, 16], strides = [1, 1]} : vector<2x16xf32> to vector<1x16xf32>
    %7 = vector.broadcast %6 : vector<1x16xf32> to vector<256x16xf32>
    %8 = arith.addf %5, %7 : vector<256x16xf32>
    %cst = arith.constant 0.000000e+00 : f32
    %9 = vector.broadcast %cst : f32 to vector<256x16xf32>
    %10 = arith.cmpf ogt, %8, %9 : vector<256x16xf32>
    %cst_3 = arith.constant 2.000000e-01 : f32
    %11 = vector.broadcast %cst_3 : f32 to vector<256x16xf32>
    %12 = arith.mulf %11, %8 : vector<256x16xf32>
    %13 = arith.select %10, %8, %12 : vector<256x16xi1>, vector<256x16xf32>
    %14 = arith.truncf %13 : vector<256x16xf32> to vector<256x16xbf16>
    %c0_4 = arith.constant 0 : index
    %c0_5 = arith.constant 0 : index
    %15 = vector.load %arg3[%c0_4, %c0_5] : memref<256x16xbf16, #tpu.memory_space<vmem>>, vector<256x16xbf16>
    tpu.vector_store %arg3[%c0_4, %c0_5], %14 {strides = array<i32>} : memref<256x16xbf16, #tpu.memory_space<vmem>>, vector<256x16xbf16>,
    return
  }
  func.func @transform_0(%arg0: i32) -> (i32, i32) {
    %c0_i32 = arith.constant 0 : i32
    %c0_i32_0 = arith.constant 0 : i32
    return %arg0, %c0_i32 : i32, i32
  }
  func.func @transform_1(%arg0: i32) -> (i32, i32) {
    %c0_i32 = arith.constant 0 : i32
    %c0_i32_0 = arith.constant 0 : i32
    %c0_i32_1 = arith.constant 0 : i32
    return %c0_i32, %c0_i32_0 : i32, i32
  }
  func.func @transform_2(%arg0: i32) -> (i32, i32) {
    %c0_i32 = arith.constant 0 : i32
    %c0_i32_0 = arith.constant 0 : i32
    return %arg0, %c0_i32 : i32, i32
  }
}

module attributes {stable_mosaic.version = 11 : i64} {
  func.func @_conv_stats_kernel(%arg0: i32, %arg1: memref<64x256xbf16, #tpu.memory_space<vmem>>, %arg2: memref<256x32xbf16, #tpu.memory_space<vmem>>, %arg3: memref<64x32xbf16, #tpu.memory_space<vmem>>, %arg4: memref<1x1x32xf32, #tpu.memory_space<vmem>>, %arg5: memref<1x1x32xf32, #tpu.memory_space<vmem>>) attributes {dimension_semantics = [#tpu.dimension_semantics<parallel>], iteration_bounds = array<i64: 2>, scalar_prefetch = 0 : i64, scratch_operands = 0 : i64, tpu.core_type = #tpu.core_type<tc>, window_params = [{transform_indices = @transform_0, window_bounds = array<i64: 64, 256>}, {pipeline_mode = #tpu.pipeline_mode<synchronous>, transform_indices = @transform_1, window_bounds = array<i64: 256, 32>}, {transform_indices = @transform_2, window_bounds = array<i64: 64, 32>}, {transform_indices = @transform_3, window_bounds = array<i64: 1, 1, 32>}, {transform_indices = @transform_4, window_bounds = array<i64: 1, 1, 32>}]} {
    %c0 = arith.constant 0 : index
    %c0_0 = arith.constant 0 : index
    %0 = vector.load %arg1[%c0, %c0_0] : memref<64x256xbf16, #tpu.memory_space<vmem>>, vector<64x256xbf16>
    %c0_1 = arith.constant 0 : index
    %c0_2 = arith.constant 0 : index
    %1 = vector.load %arg2[%c0_1, %c0_2] : memref<256x32xbf16, #tpu.memory_space<vmem>>, vector<256x32xbf16>
    %cst = arith.constant dense<0.000000e+00> : vector<64x32xf32>
    %2 = tpu.matmul %0, %1, %cst {dimension_numbers = #tpu.dot_dimension_numbers<[1], [0], [0], [1], [0, 0, 1, 1], [], []>} : vector<64x256xbf16>, vector<256x32xbf16>, vector<64x32xf32> -> vector<64x32xf32>
    %3 = arith.truncf %2 : vector<64x32xf32> to vector<64x32xbf16>
    %c0_3 = arith.constant 0 : index
    %c0_4 = arith.constant 0 : index
    %4 = vector.load %arg3[%c0_3, %c0_4] : memref<64x32xbf16, #tpu.memory_space<vmem>>, vector<64x32xbf16>
    tpu.vector_store %arg3[%c0_3, %c0_4], %3 {strides = array<i32>} : memref<64x32xbf16, #tpu.memory_space<vmem>>, vector<64x32xbf16>,
    %cst_5 = arith.constant dense<0.000000e+00> : vector<32xf32>
    %5 = vector.multi_reduction <add>, %2, %cst_5 [0] : vector<64x32xf32> to vector<32xf32>
    %6 = vector.shape_cast %5 : vector<32xf32> to vector<1x32xf32>
    %7 = vector.shape_cast %6 : vector<1x32xf32> to vector<1x1x32xf32>
    %c0_6 = arith.constant 0 : index
    %c0_7 = arith.constant 0 : index
    %c0_8 = arith.constant 0 : index
    %8 = vector.load %arg4[%c0_6, %c0_7, %c0_8] : memref<1x1x32xf32, #tpu.memory_space<vmem>>, vector<1x1x32xf32>
    tpu.vector_store %arg4[%c0_6, %c0_7, %c0_8], %7 {strides = array<i32>} : memref<1x1x32xf32, #tpu.memory_space<vmem>>, vector<1x1x32xf32>,
    %9 = arith.mulf %2, %2 : vector<64x32xf32>
    %cst_9 = arith.constant dense<0.000000e+00> : vector<32xf32>
    %10 = vector.multi_reduction <add>, %9, %cst_9 [0] : vector<64x32xf32> to vector<32xf32>
    %11 = vector.shape_cast %10 : vector<32xf32> to vector<1x32xf32>
    %12 = vector.shape_cast %11 : vector<1x32xf32> to vector<1x1x32xf32>
    %c0_10 = arith.constant 0 : index
    %c0_11 = arith.constant 0 : index
    %c0_12 = arith.constant 0 : index
    %13 = vector.load %arg5[%c0_10, %c0_11, %c0_12] : memref<1x1x32xf32, #tpu.memory_space<vmem>>, vector<1x1x32xf32>
    tpu.vector_store %arg5[%c0_10, %c0_11, %c0_12], %12 {strides = array<i32>} : memref<1x1x32xf32, #tpu.memory_space<vmem>>, vector<1x1x32xf32>,
    return
  }
  func.func @transform_0(%arg0: i32) -> (i32, i32) {
    %c0_i32 = arith.constant 0 : i32
    %c0_i32_0 = arith.constant 0 : i32
    return %arg0, %c0_i32 : i32, i32
  }
  func.func @transform_1(%arg0: i32) -> (i32, i32) {
    %c0_i32 = arith.constant 0 : i32
    %c0_i32_0 = arith.constant 0 : i32
    %c0_i32_1 = arith.constant 0 : i32
    return %c0_i32, %c0_i32_0 : i32, i32
  }
  func.func @transform_2(%arg0: i32) -> (i32, i32) {
    %c0_i32 = arith.constant 0 : i32
    %c0_i32_0 = arith.constant 0 : i32
    return %arg0, %c0_i32 : i32, i32
  }
  func.func @transform_3(%arg0: i32) -> (i32, i32, i32) {
    %c0_i32 = arith.constant 0 : i32
    %c0_i32_0 = arith.constant 0 : i32
    %c0_i32_1 = arith.constant 0 : i32
    return %arg0, %c0_i32, %c0_i32_0 : i32, i32, i32
  }
  func.func @transform_4(%arg0: i32) -> (i32, i32, i32) {
    %c0_i32 = arith.constant 0 : i32
    %c0_i32_0 = arith.constant 0 : i32
    %c0_i32_1 = arith.constant 0 : i32
    return %arg0, %c0_i32, %c0_i32_0 : i32, i32, i32
  }
}

module attributes {stable_mosaic.version = 11 : i64} {
  func.func @_bn_leaky_kernel(%arg0: i32, %arg1: memref<64x32xbf16, #tpu.memory_space<vmem>>, %arg2: memref<2x32xf32, #tpu.memory_space<vmem>>, %arg3: memref<64x32xbf16, #tpu.memory_space<vmem>>) attributes {dimension_semantics = [#tpu.dimension_semantics<parallel>], iteration_bounds = array<i64: 2>, scalar_prefetch = 0 : i64, scratch_operands = 0 : i64, tpu.core_type = #tpu.core_type<tc>, window_params = [{transform_indices = @transform_0, window_bounds = array<i64: 64, 32>}, {pipeline_mode = #tpu.pipeline_mode<synchronous>, transform_indices = @transform_1, window_bounds = array<i64: 2, 32>}, {transform_indices = @transform_2, window_bounds = array<i64: 64, 32>}]} {
    %c0 = arith.constant 0 : index
    %c0_0 = arith.constant 0 : index
    %0 = vector.load %arg2[%c0, %c0_0] : memref<2x32xf32, #tpu.memory_space<vmem>>, vector<2x32xf32>
    %c0_1 = arith.constant 0 : index
    %c0_2 = arith.constant 0 : index
    %1 = vector.load %arg1[%c0_1, %c0_2] : memref<64x32xbf16, #tpu.memory_space<vmem>>, vector<64x32xbf16>
    %2 = arith.extf %1 : vector<64x32xbf16> to vector<64x32xf32>
    %3 = vector.extract_strided_slice %0 {offsets = [0, 0], sizes = [1, 32], strides = [1, 1]} : vector<2x32xf32> to vector<1x32xf32>
    %4 = vector.broadcast %3 : vector<1x32xf32> to vector<64x32xf32>
    %5 = arith.mulf %2, %4 : vector<64x32xf32>
    %6 = vector.extract_strided_slice %0 {offsets = [1, 0], sizes = [1, 32], strides = [1, 1]} : vector<2x32xf32> to vector<1x32xf32>
    %7 = vector.broadcast %6 : vector<1x32xf32> to vector<64x32xf32>
    %8 = arith.addf %5, %7 : vector<64x32xf32>
    %cst = arith.constant 0.000000e+00 : f32
    %9 = vector.broadcast %cst : f32 to vector<64x32xf32>
    %10 = arith.cmpf ogt, %8, %9 : vector<64x32xf32>
    %cst_3 = arith.constant 2.000000e-01 : f32
    %11 = vector.broadcast %cst_3 : f32 to vector<64x32xf32>
    %12 = arith.mulf %11, %8 : vector<64x32xf32>
    %13 = arith.select %10, %8, %12 : vector<64x32xi1>, vector<64x32xf32>
    %14 = arith.truncf %13 : vector<64x32xf32> to vector<64x32xbf16>
    %c0_4 = arith.constant 0 : index
    %c0_5 = arith.constant 0 : index
    %15 = vector.load %arg3[%c0_4, %c0_5] : memref<64x32xbf16, #tpu.memory_space<vmem>>, vector<64x32xbf16>
    tpu.vector_store %arg3[%c0_4, %c0_5], %14 {strides = array<i32>} : memref<64x32xbf16, #tpu.memory_space<vmem>>, vector<64x32xbf16>,
    return
  }
  func.func @transform_0(%arg0: i32) -> (i32, i32) {
    %c0_i32 = arith.constant 0 : i32
    %c0_i32_0 = arith.constant 0 : i32
    return %arg0, %c0_i32 : i32, i32
  }
  func.func @transform_1(%arg0: i32) -> (i32, i32) {
    %c0_i32 = arith.constant 0 : i32
    %c0_i32_0 = arith.constant 0 : i32
    %c0_i32_1 = arith.constant 0 : i32
    return %c0_i32, %c0_i32_0 : i32, i32
  }
  func.func @transform_2(%arg0: i32) -> (i32, i32) {
    %c0_i32 = arith.constant 0 : i32
    %c0_i32_0 = arith.constant 0 : i32
    return %arg0, %c0_i32 : i32, i32
  }
}

module attributes {stable_mosaic.version = 11 : i64} {
  func.func @_bn_leaky_kernel(%arg0: i32, %arg1: memref<16x64xbf16, #tpu.memory_space<vmem>>, %arg2: memref<2x64xf32, #tpu.memory_space<vmem>>, %arg3: memref<16x64xbf16, #tpu.memory_space<vmem>>) attributes {dimension_semantics = [#tpu.dimension_semantics<parallel>], iteration_bounds = array<i64: 2>, scalar_prefetch = 0 : i64, scratch_operands = 0 : i64, tpu.core_type = #tpu.core_type<tc>, window_params = [{transform_indices = @transform_0, window_bounds = array<i64: 16, 64>}, {pipeline_mode = #tpu.pipeline_mode<synchronous>, transform_indices = @transform_1, window_bounds = array<i64: 2, 64>}, {transform_indices = @transform_2, window_bounds = array<i64: 16, 64>}]} {
    %c0 = arith.constant 0 : index
    %c0_0 = arith.constant 0 : index
    %0 = vector.load %arg2[%c0, %c0_0] : memref<2x64xf32, #tpu.memory_space<vmem>>, vector<2x64xf32>
    %c0_1 = arith.constant 0 : index
    %c0_2 = arith.constant 0 : index
    %1 = vector.load %arg1[%c0_1, %c0_2] : memref<16x64xbf16, #tpu.memory_space<vmem>>, vector<16x64xbf16>
    %2 = arith.extf %1 : vector<16x64xbf16> to vector<16x64xf32>
    %3 = vector.extract_strided_slice %0 {offsets = [0, 0], sizes = [1, 64], strides = [1, 1]} : vector<2x64xf32> to vector<1x64xf32>
    %4 = vector.broadcast %3 : vector<1x64xf32> to vector<16x64xf32>
    %5 = arith.mulf %2, %4 : vector<16x64xf32>
    %6 = vector.extract_strided_slice %0 {offsets = [1, 0], sizes = [1, 64], strides = [1, 1]} : vector<2x64xf32> to vector<1x64xf32>
    %7 = vector.broadcast %6 : vector<1x64xf32> to vector<16x64xf32>
    %8 = arith.addf %5, %7 : vector<16x64xf32>
    %cst = arith.constant 0.000000e+00 : f32
    %9 = vector.broadcast %cst : f32 to vector<16x64xf32>
    %10 = arith.cmpf ogt, %8, %9 : vector<16x64xf32>
    %cst_3 = arith.constant 2.000000e-01 : f32
    %11 = vector.broadcast %cst_3 : f32 to vector<16x64xf32>
    %12 = arith.mulf %11, %8 : vector<16x64xf32>
    %13 = arith.select %10, %8, %12 : vector<16x64xi1>, vector<16x64xf32>
    %14 = arith.truncf %13 : vector<16x64xf32> to vector<16x64xbf16>
    %c0_4 = arith.constant 0 : index
    %c0_5 = arith.constant 0 : index
    %15 = vector.load %arg3[%c0_4, %c0_5] : memref<16x64xbf16, #tpu.memory_space<vmem>>, vector<16x64xbf16>
    tpu.vector_store %arg3[%c0_4, %c0_5], %14 {strides = array<i32>} : memref<16x64xbf16, #tpu.memory_space<vmem>>, vector<16x64xbf16>,
    return
  }
  func.func @transform_0(%arg0: i32) -> (i32, i32) {
    %c0_i32 = arith.constant 0 : i32
    %c0_i32_0 = arith.constant 0 : i32
    return %arg0, %c0_i32 : i32, i32
  }
  func.func @transform_1(%arg0: i32) -> (i32, i32) {
    %c0_i32 = arith.constant 0 : i32
    %c0_i32_0 = arith.constant 0 : i32
    %c0_i32_1 = arith.constant 0 : i32
    return %c0_i32, %c0_i32_0 : i32, i32
  }
  func.func @transform_2(%arg0: i32) -> (i32, i32) {
    %c0_i32 = arith.constant 0 : i32
    %c0_i32_0 = arith.constant 0 : i32
    return %arg0, %c0_i32 : i32, i32
  }
}

module attributes {stable_mosaic.version = 11 : i64} {
  func.func @_conv_stats_kernel(%arg0: i32, %arg1: memref<16x512xbf16, #tpu.memory_space<vmem>>, %arg2: memref<512x64xbf16, #tpu.memory_space<vmem>>, %arg3: memref<16x64xbf16, #tpu.memory_space<vmem>>, %arg4: memref<1x1x64xf32, #tpu.memory_space<vmem>>, %arg5: memref<1x1x64xf32, #tpu.memory_space<vmem>>) attributes {dimension_semantics = [#tpu.dimension_semantics<parallel>], iteration_bounds = array<i64: 2>, scalar_prefetch = 0 : i64, scratch_operands = 0 : i64, tpu.core_type = #tpu.core_type<tc>, window_params = [{transform_indices = @transform_0, window_bounds = array<i64: 16, 512>}, {pipeline_mode = #tpu.pipeline_mode<synchronous>, transform_indices = @transform_1, window_bounds = array<i64: 512, 64>}, {transform_indices = @transform_2, window_bounds = array<i64: 16, 64>}, {transform_indices = @transform_3, window_bounds = array<i64: 1, 1, 64>}, {transform_indices = @transform_4, window_bounds = array<i64: 1, 1, 64>}]} {
    %c0 = arith.constant 0 : index
    %c0_0 = arith.constant 0 : index
    %0 = vector.load %arg1[%c0, %c0_0] : memref<16x512xbf16, #tpu.memory_space<vmem>>, vector<16x512xbf16>
    %c0_1 = arith.constant 0 : index
    %c0_2 = arith.constant 0 : index
    %1 = vector.load %arg2[%c0_1, %c0_2] : memref<512x64xbf16, #tpu.memory_space<vmem>>, vector<512x64xbf16>
    %cst = arith.constant dense<0.000000e+00> : vector<16x64xf32>
    %2 = tpu.matmul %0, %1, %cst {dimension_numbers = #tpu.dot_dimension_numbers<[1], [0], [0], [1], [0, 0, 1, 1], [], []>} : vector<16x512xbf16>, vector<512x64xbf16>, vector<16x64xf32> -> vector<16x64xf32>
    %3 = arith.truncf %2 : vector<16x64xf32> to vector<16x64xbf16>
    %c0_3 = arith.constant 0 : index
    %c0_4 = arith.constant 0 : index
    %4 = vector.load %arg3[%c0_3, %c0_4] : memref<16x64xbf16, #tpu.memory_space<vmem>>, vector<16x64xbf16>
    tpu.vector_store %arg3[%c0_3, %c0_4], %3 {strides = array<i32>} : memref<16x64xbf16, #tpu.memory_space<vmem>>, vector<16x64xbf16>,
    %cst_5 = arith.constant dense<0.000000e+00> : vector<64xf32>
    %5 = vector.multi_reduction <add>, %2, %cst_5 [0] : vector<16x64xf32> to vector<64xf32>
    %6 = vector.shape_cast %5 : vector<64xf32> to vector<1x64xf32>
    %7 = vector.shape_cast %6 : vector<1x64xf32> to vector<1x1x64xf32>
    %c0_6 = arith.constant 0 : index
    %c0_7 = arith.constant 0 : index
    %c0_8 = arith.constant 0 : index
    %8 = vector.load %arg4[%c0_6, %c0_7, %c0_8] : memref<1x1x64xf32, #tpu.memory_space<vmem>>, vector<1x1x64xf32>
    tpu.vector_store %arg4[%c0_6, %c0_7, %c0_8], %7 {strides = array<i32>} : memref<1x1x64xf32, #tpu.memory_space<vmem>>, vector<1x1x64xf32>,
    %9 = arith.mulf %2, %2 : vector<16x64xf32>
    %cst_9 = arith.constant dense<0.000000e+00> : vector<64xf32>
    %10 = vector.multi_reduction <add>, %9, %cst_9 [0] : vector<16x64xf32> to vector<64xf32>
    %11 = vector.shape_cast %10 : vector<64xf32> to vector<1x64xf32>
    %12 = vector.shape_cast %11 : vector<1x64xf32> to vector<1x1x64xf32>
    %c0_10 = arith.constant 0 : index
    %c0_11 = arith.constant 0 : index
    %c0_12 = arith.constant 0 : index
    %13 = vector.load %arg5[%c0_10, %c0_11, %c0_12] : memref<1x1x64xf32, #tpu.memory_space<vmem>>, vector<1x1x64xf32>
    tpu.vector_store %arg5[%c0_10, %c0_11, %c0_12], %12 {strides = array<i32>} : memref<1x1x64xf32, #tpu.memory_space<vmem>>, vector<1x1x64xf32>,
    return
  }
  func.func @transform_0(%arg0: i32) -> (i32, i32) {
    %c0_i32 = arith.constant 0 : i32
    %c0_i32_0 = arith.constant 0 : i32
    return %arg0, %c0_i32 : i32, i32
  }
  func.func @transform_1(%arg0: i32) -> (i32, i32) {
    %c0_i32 = arith.constant 0 : i32
    %c0_i32_0 = arith.constant 0 : i32
    %c0_i32_1 = arith.constant 0 : i32
    return %c0_i32, %c0_i32_0 : i32, i32
  }
  func.func @transform_2(%arg0: i32) -> (i32, i32) {
    %c0_i32 = arith.constant 0 : i32
    %c0_i32_0 = arith.constant 0 : i32
    return %arg0, %c0_i32 : i32, i32
  }
  func.func @transform_3(%arg0: i32) -> (i32, i32, i32) {
    %c0_i32 = arith.constant 0 : i32
    %c0_i32_0 = arith.constant 0 : i32
    %c0_i32_1 = arith.constant 0 : i32
    return %arg0, %c0_i32, %c0_i32_0 : i32, i32, i32
  }
  func.func @transform_4(%arg0: i32) -> (i32, i32, i32) {
    %c0_i32 = arith.constant 0 : i32
    %c0_i32_0 = arith.constant 0 : i32
    %c0_i32_1 = arith.constant 0 : i32
    return %arg0, %c0_i32, %c0_i32_0 : i32, i32, i32
  }
}

module attributes {stable_mosaic.version = 11 : i64} {
  func.func @_conv_act_kernel(%arg0: i32, %arg1: memref<2x1024xbf16, #tpu.memory_space<vmem>>, %arg2: memref<1024x1xbf16, #tpu.memory_space<vmem>>, %arg3: memref<2x1xf32, #tpu.memory_space<vmem>>) attributes {dimension_semantics = [#tpu.dimension_semantics<parallel>], iteration_bounds = array<i64: 1>, scalar_prefetch = 0 : i64, scratch_operands = 0 : i64, tpu.core_type = #tpu.core_type<tc>, window_params = [{transform_indices = @transform_0, window_bounds = array<i64: 2, 1024>}, {pipeline_mode = #tpu.pipeline_mode<synchronous>, transform_indices = @transform_1, window_bounds = array<i64: 1024, 1>}, {transform_indices = @transform_2, window_bounds = array<i64: 2, 1>}]} {
    %c0 = arith.constant 0 : index
    %c0_0 = arith.constant 0 : index
    %0 = vector.load %arg1[%c0, %c0_0] : memref<2x1024xbf16, #tpu.memory_space<vmem>>, vector<2x1024xbf16>
    %c0_1 = arith.constant 0 : index
    %c0_2 = arith.constant 0 : index
    %1 = vector.load %arg2[%c0_1, %c0_2] : memref<1024x1xbf16, #tpu.memory_space<vmem>>, vector<1024x1xbf16>
    %cst = arith.constant dense<0.000000e+00> : vector<2x1xf32>
    %2 = tpu.matmul %0, %1, %cst {dimension_numbers = #tpu.dot_dimension_numbers<[1], [0], [0], [1], [0, 0, 1, 1], [], []>} : vector<2x1024xbf16>, vector<1024x1xbf16>, vector<2x1xf32> -> vector<2x1xf32>
    %3 = arith.negf %2 : vector<2x1xf32>
    %4 = math.exp %3 : vector<2x1xf32>
    %cst_3 = arith.constant 1.000000e+00 : f32
    %5 = vector.broadcast %cst_3 : f32 to vector<2x1xf32>
    %6 = arith.addf %5, %4 : vector<2x1xf32>
    %7 = arith.divf %5, %6 : vector<2x1xf32>
    %c0_4 = arith.constant 0 : index
    %c0_5 = arith.constant 0 : index
    %8 = vector.load %arg3[%c0_4, %c0_5] : memref<2x1xf32, #tpu.memory_space<vmem>>, vector<2x1xf32>
    tpu.vector_store %arg3[%c0_4, %c0_5], %7 {strides = array<i32>} : memref<2x1xf32, #tpu.memory_space<vmem>>, vector<2x1xf32>,
    return
  }
  func.func @transform_0(%arg0: i32) -> (i32, i32) {
    %c0_i32 = arith.constant 0 : i32
    %c0_i32_0 = arith.constant 0 : i32
    return %arg0, %c0_i32 : i32, i32
  }
  func.func @transform_1(%arg0: i32) -> (i32, i32) {
    %c0_i32 = arith.constant 0 : i32
    %c0_i32_0 = arith.constant 0 : i32
    %c0_i32_1 = arith.constant 0 : i32
    return %c0_i32, %c0_i32_0 : i32, i32
  }
  func.func @transform_2(%arg0: i32) -> (i32, i32) {
    %c0_i32 = arith.constant 0 : i32
    %c0_i32_0 = arith.constant 0 : i32
    return %arg0, %c0_i32 : i32, i32
  }
}

</mosaic_0001>

<llo_original>
// kernel: forward.8
$region0: #{forward.8}
  #allocation0 [shape = 'u32[]', space=smem, size = 0x4, offset = 0x4, fixed_abs, tag = 'smem constant byte address 0x4 - core index']
  #allocation1 [shape = 'u32[144,128]{1,0:T(1,128)}', space=vmem, size = 0x12000, scoped, tag = 'internal scratch']
  %s0 = inlined_call_operand.vmem [shape: bf16[2048,48], index: 0, kind: input, shape index: {}]
  %s1 = inlined_call_operand.vmem [shape: bf16[48,8], index: 1, kind: input, shape index: {}]
  %s2 = inlined_call_operand.vmem [shape: bf16[2048,8], index: 2, kind: output, shape index: {}]
  %s3 = sld [smem:[#allocation0]]
  $region41: #{forward.8} parent=0
    _
  %s5 = ssub.s32 1, %s3
  %s6 = scalar_select 0, %s5, %s3
  loop: start=0, step=1, limit=4
  $region2: #{forward.8} parent=0 // loop_pre_header
    _
  $region3: #{forward.8} parent=0 // loop_header
    %s8 = sphi 0, %s12
    %p9 = scmp.ge.s32.totalorder %s8, 4
    %s18 = sphi 0, %s20
    %s21 = sphi 0, %s18
    %s22 = sphi 0, %s21
    %s38 = sphi 0, %s22
    %s42 = sphi 0, %s42
    %s44 = sphi 0, %s42
    %s45 = sphi 0, %s44
    %s59 = sphi 0, %s45
    %s65 = sphi 0, %s67
    %s68 = sphi 0, %s65
    %s69 = sphi 0, %s68
    %s85 = sphi 0, %s69
  $region4: #{forward.8} parent=0 // loop_header_branch
    %11 = sbr.rel (%p9) target = $region8
  $region5: #{forward.8} parent=0 // loop_body
    %s13 = ssub.s32 %s8, 1
    %s14 = ssub.s32 %s8, 2
    %s15 = sadd.s32 %s8, 1
    %s16 = ssub.s32 %s8, %s15
    %p17 = scmp.eq.s32.totalorder %s16, 0
    %s19 = sadd.s32 %s18, 1
    %s20 = scalar_select %p17, %s18, %s19
    %p23 = pneg %p17
    %p24 = scmp.eq.s32.totalorder %s8, 1
    %p25 = por %p23, %p24
    %p26 = scmp.ne.s32.totalorder %s18, %s21
    %p27 = scmp.eq.s32.totalorder %s8, 0
    %p28 = por %p26, %p27
    %p29 = scmp.ne.s32.totalorder %s18, %s21
    %p30 = scmp.eq.s32.totalorder %s13, 1
    %p31 = por %p29, %p30
    %p32 = scmp.ne.s32.totalorder %s21, %s22
    %p33 = scmp.eq.s32.totalorder %s13, 0
    %p34 = por %p32, %p33
    %p35 = scmp.ne.s32.totalorder %s21, %s22
    %p36 = scmp.eq.s32.totalorder %s14, 1
    %p37 = por %p35, %p36
    %p39 = scmp.ne.s32.totalorder %s22, %s38
    %p40 = scmp.eq.s32.totalorder %s14, 0
    %p41 = por %p39, %p40
    %s43 = sadd.s32 %s42, 1
    %p46 = scmp.eq.s32.totalorder %s8, 1
    %p47 = scmp.ne.s32.totalorder %s42, %s44
    %p48 = scmp.eq.s32.totalorder %s8, 0
    %p49 = por %p47, %p48
    %p50 = scmp.ne.s32.totalorder %s42, %s44
    %p51 = scmp.eq.s32.totalorder %s13, 1
    %p52 = por %p50, %p51
    %p53 = scmp.ne.s32.totalorder %s44, %s45
    %p54 = scmp.eq.s32.totalorder %s13, 0
    %p55 = por %p53, %p54
    %p56 = scmp.ne.s32.totalorder %s44, %s45
    %p57 = scmp.eq.s32.totalorder %s14, 1
    %p58 = por %p56, %p57
    %p60 = scmp.ne.s32.totalorder %s45, %s59
    %p61 = scmp.eq.s32.totalorder %s14, 0
    %p62 = por %p60, %p61
    %s63 = ssub.s32 %s8, %s15
    %p64 = scmp.eq.s32.totalorder %s63, 0
    %s66 = sadd.s32 %s65, 1
    %s67 = scalar_select %p64, %s65, %s66
    %p70 = pneg %p64
    %p71 = scmp.eq.s32.totalorder %s8, 1
    %p72 = por %p70, %p71
    %p73 = scmp.ne.s32.totalorder %s65, %s68
    %p74 = scmp.eq.s32.totalorder %s8, 0
    %p75 = por %p73, %p74
    %p76 = scmp.ne.s32.totalorder %s65, %s68
    %p77 = scmp.eq.s32.totalorder %s13, 1
    %p78 = por %p76, %p77
    %p79 = scmp.ne.s32.totalorder %s68, %s69
    %p80 = scmp.eq.s32.totalorder %s13, 0
    %p81 = por %p79, %p80
    %p82 = scmp.ne.s32.totalorder %s68, %s69
    %p83 = scmp.eq.s32.totalorder %s14, 1
    %p84 = por %p82, %p83
    %p86 = scmp.ne.s32.totalorder %s69, %s85
    %p87 = scmp.eq.s32.totalorder %s14, 0
    %p88 = por %p86, %p87
    %p89 = scmp.le.s32.totalorder 1, %s8
    %p90 = scmp.lt.s32.totalorder %s8, 3
    %p91 = pnand %p89, %p90
    %p92 = pneg %p91
    // Predicated region
    $region9: #{forward.8} parent=5 // pred_check
      _
    $region10: #{forward.8} parent=5 // pred_check_branch
      %94 = sbr.rel (%p91) target = $region12
    $region11: #{forward.8} parent=5 // pred_region
      %s95 = ssub.s32 %s8, 1
      // Predicated region
      $region13: #{forward.8} parent=11 // pred_check
        %p96 = pneg %p55
      $region14: #{forward.8} parent=11 // pred_check_branch
        %98 = sbr.rel (%p96) target = $region16
      $region15: #{forward.8} parent=11 // pred_region
        _
      $region16: #{forward.8} parent=11 // pred_fallthru
        _
    $region12: #{forward.8} parent=5 // pred_fallthru
      _
    %p99 = scmp.lt.s32.totalorder %s8, 2
    // Predicated region
    $region17: #{forward.8} parent=5 // pred_check
      %p100 = pneg %p99
    $region18: #{forward.8} parent=5 // pred_check_branch
      %102 = sbr.rel (%p100) target = $region20
    $region19: #{forward.8} parent=5 // pred_region
      // Predicated region
      $region21: #{forward.8} parent=19 // pred_check
        %p103 = pneg %p28
      $region22: #{forward.8} parent=19 // pred_check_branch
        %105 = sbr.rel (%p103) target = $region24
      $region23: #{forward.8} parent=19 // pred_region
        %s106 = smul.u32 128, %s8
        %p107 = scmp.lt.s32.totalorder %s106, 255
        %s108 = scalar_select %p107, %s106, 255
        %s109 = smul.addr %s108, 4
        %s110 = scalar_lea.vmem %s0, %s109
        %s111 = smul.u32 128, %s8
      $region24: #{forward.8} parent=19 // pred_fallthru
        _
    $region20: #{forward.8} parent=5 // pred_fallthru
      _
    %p112 = scmp.le.s32.totalorder 1, %s8
    %p113 = scmp.lt.s32.totalorder %s8, 3
    %p114 = pnand %p112, %p113
    %p115 = pneg %p114
    // Predicated region
    $region25: #{forward.8} parent=5 // pred_check
      _
    $region26: #{forward.8} parent=5 // pred_check_branch
      %117 = sbr.rel (%p114) target = $region28
    $region27: #{forward.8} parent=5 // pred_region
      %s118 = ssub.s32 %s8, 1
      %s119 = smul.u32 128, %s13
      %p120 = scmp.lt.s32.totalorder %s119, 255
      %s121 = scalar_select %p120, %s119, 255
      %s122 = smul.addr %s121, 4
      %s123 = scalar_lea.vmem %s0, %s122
      %p124 = pneg %p34
      %p125 = pneg %p31
      %p126 = pneg %p55
      %p127 = pneg %p52
      %p128 = pneg %p81
      %p129 = pneg %p78
      %s130 = smul.u32 128, %s13
      %p131 = scmp.lt.s32.totalorder %s130, 255
      %s132 = scalar_select %p131, %s130, 255
      %s133 = smul.addr %s132, 4
      %s134 = scalar_lea.vmem %s2, %s133
      %s135 = smul.u32 128, %s13
      %p136 = scmp.lt.s32.totalorder %s135, 255
      %s137 = scalar_select %p136, %s135, 255
      %s138 = smul.addr %s137, 4
      %s139 = scalar_lea.vmem %s0, %s138
      %s140 = smul.u32 128, %s13
      %s141 = smul.u32 128, %s13
      %p142 = scmp.lt.s32.totalorder %s141, 255
      %s143 = scalar_select %p142, %s141, 255
      %s144 = smul.addr %s143, 4
      %s145 = scalar_lea.vmem %s2, %s144
      %s146 = smul.u32 128, %s13
      %v148 = vld [vmem:[%s139] sm:$0xf]
      %v149 = vld [vmem:[%s139 + $0x4] sm:$0xf]
      %v150 = vld [vmem:[%s139 + $0x8] sm:$0xf]
      %v151 = vld [vmem:[%s139 + $0xc] sm:$0xf]
      %v152 = vld [vmem:[%s139 + $0x10] sm:$0xf]
      %v153 = vld [vmem:[%s139 + $0x14] sm:$0xf]
      %v154 = vld [vmem:[%s139 + $0x18] sm:$0xf]
      %v155 = vld [vmem:[%s139 + $0x1c] sm:$0xf]
      %v156 = vld [vmem:[%s139 + $0x20] sm:$0xf]
      %v157 = vld [vmem:[%s139 + $0x24] sm:$0xf]
      %v158 = vld [vmem:[%s139 + $0x28] sm:$0xf]
      %v159 = vld [vmem:[%s139 + $0x2c] sm:$0xf]
      %v160 = vld [vmem:[%s139 + $0x30] sm:$0xf]
      %v161 = vld [vmem:[%s139 + $0x34] sm:$0xf]
      %v162 = vld [vmem:[%s139 + $0x38] sm:$0xf]
      %v163 = vld [vmem:[%s139 + $0x3c] sm:$0xf]
      %v164 = vld [vmem:[%s139 + $0x40] sm:$0xf]
      %v165 = vld [vmem:[%s139 + $0x44] sm:$0xf]
      %v166 = vld [vmem:[%s139 + $0x48] sm:$0xf]
      %v167 = vld [vmem:[%s139 + $0x4c] sm:$0xf]
      %v168 = vld [vmem:[%s139 + $0x50] sm:$0xf]
      %v169 = vld [vmem:[%s139 + $0x54] sm:$0xf]
      %v170 = vld [vmem:[%s139 + $0x58] sm:$0xf]
      %v171 = vld [vmem:[%s139 + $0x5c] sm:$0xf]
      %v172 = vld [vmem:[%s139 + $0x60] sm:$0xf]
      %v173 = vld [vmem:[%s139 + $0x64] sm:$0xf]
      %v174 = vld [vmem:[%s139 + $0x68] sm:$0xf]
      %v175 = vld [vmem:[%s139 + $0x6c] sm:$0xf]
      %v176 = vld [vmem:[%s139 + $0x70] sm:$0xf]
      %v177 = vld [vmem:[%s139 + $0x74] sm:$0xf]
      %v178 = vld [vmem:[%s139 + $0x78] sm:$0xf]
      %v179 = vld [vmem:[%s139 + $0x7c] sm:$0xf]
      %v180 = vld [vmem:[%s139 + $0x80] sm:$0xf]
      %v181 = vld [vmem:[%s139 + $0x84] sm:$0xf]
      %v182 = vld [vmem:[%s139 + $0x88] sm:$0xf]
      %v183 = vld [vmem:[%s139 + $0x8c] sm:$0xf]
      %v184 = vld [vmem:[%s139 + $0x90] sm:$0xf]
      %v185 = vld [vmem:[%s139 + $0x94] sm:$0xf]
      %v186 = vld [vmem:[%s139 + $0x98] sm:$0xf]
      %v187 = vld [vmem:[%s139 + $0x9c] sm:$0xf]
      %v188 = vld [vmem:[%s139 + $0xa0] sm:$0xf]
      %v189 = vld [vmem:[%s139 + $0xa4] sm:$0xf]
      %v190 = vld [vmem:[%s139 + $0xa8] sm:$0xf]
      %v191 = vld [vmem:[%s139 + $0xac] sm:$0xf]
      %v192 = vld [vmem:[%s139 + $0xb0] sm:$0xf]
      %v193 = vld [vmem:[%s139 + $0xb4] sm:$0xf]
      %v194 = vld [vmem:[%s139 + $0xb8] sm:$0xf]
      %v195 = vld [vmem:[%s139 + $0xbc] sm:$0xf]
      %v196 = vld [vmem:[%s139 + $0xc0] sm:$0xf]
      %v197 = vld [vmem:[%s139 + $0xc4] sm:$0xf]
      %v198 = vld [vmem:[%s139 + $0xc8] sm:$0xf]
      %v199 = vld [vmem:[%s139 + $0xcc] sm:$0xf]
      %v200 = vld [vmem:[%s139 + $0xd0] sm:$0xf]
      %v201 = vld [vmem:[%s139 + $0xd4] sm:$0xf]
      %v202 = vld [vmem:[%s139 + $0xd8] sm:$0xf]
      %v203 = vld [vmem:[%s139 + $0xdc] sm:$0xf]
      %v204 = vld [vmem:[%s139 + $0xe0] sm:$0xf]
      %v205 = vld [vmem:[%s139 + $0xe4] sm:$0xf]
      %v206 = vld [vmem:[%s139 + $0xe8] sm:$0xf]
      %v207 = vld [vmem:[%s139 + $0xec] sm:$0xf]
      %v208 = vld [vmem:[%s139 + $0xf0] sm:$0xf]
      %v209 = vld [vmem:[%s139 + $0xf4] sm:$0xf]
      %v210 = vld [vmem:[%s139 + $0xf8] sm:$0xf]
      %v211 = vld [vmem:[%s139 + $0xfc] sm:$0xf]
      %v212 = vld [vmem:[%s139 + $0x100] sm:$0xf]
      %v213 = vld [vmem:[%s139 + $0x104] sm:$0xf]
      %v214 = vld [vmem:[%s139 + $0x108] sm:$0xf]
      %v215 = vld [vmem:[%s139 + $0x10c] sm:$0xf]
      %v216 = vld [vmem:[%s139 + $0x110] sm:$0xf]
      %v217 = vld [vmem:[%s139 + $0x114] sm:$0xf]
      %v218 = vld [vmem:[%s139 + $0x118] sm:$0xf]
      %v219 = vld [vmem:[%s139 + $0x11c] sm:$0xf]
      %v220 = vld [vmem:[%s139 + $0x120] sm:$0xf]
      %v221 = vld [vmem:[%s139 + $0x124] sm:$0xf]
      %v222 = vld [vmem:[%s139 + $0x128] sm:$0xf]
      %v223 = vld [vmem:[%s139 + $0x12c] sm:$0xf]
      %v224 = vld [vmem:[%s139 + $0x130] sm:$0xf]
      %v225 = vld [vmem:[%s139 + $0x134] sm:$0xf]
      %v226 = vld [vmem:[%s139 + $0x138] sm:$0xf]
      %v227 = vld [vmem:[%s139 + $0x13c] sm:$0xf]
      %v228 = vld [vmem:[%s139 + $0x140] sm:$0xf]
      %v229 = vld [vmem:[%s139 + $0x144] sm:$0xf]
      %v230 = vld [vmem:[%s139 + $0x148] sm:$0xf]
      %v231 = vld [vmem:[%s139 + $0x14c] sm:$0xf]
      %v232 = vld [vmem:[%s139 + $0x150] sm:$0xf]
      %v233 = vld [vmem:[%s139 + $0x154] sm:$0xf]
      %v234 = vld [vmem:[%s139 + $0x158] sm:$0xf]
      %v235 = vld [vmem:[%s139 + $0x15c] sm:$0xf]
      %v236 = vld [vmem:[%s139 + $0x160] sm:$0xf]
      %v237 = vld [vmem:[%s139 + $0x164] sm:$0xf]
      %v238 = vld [vmem:[%s139 + $0x168] sm:$0xf]
      %v239 = vld [vmem:[%s139 + $0x16c] sm:$0xf]
      %v240 = vld [vmem:[%s139 + $0x170] sm:$0xf]
      %v241 = vld [vmem:[%s139 + $0x174] sm:$0xf]
      %v242 = vld [vmem:[%s139 + $0x178] sm:$0xf]
      %v243 = vld [vmem:[%s139 + $0x17c] sm:$0xf]
      %v244 = vld [vmem:[%s139 + $0x180] sm:$0xf]
      %v245 = vld [vmem:[%s139 + $0x184] sm:$0xf]
      %v246 = vld [vmem:[%s139 + $0x188] sm:$0xf]
      %v247 = vld [vmem:[%s139 + $0x18c] sm:$0xf]
      %v248 = vld [vmem:[%s139 + $0x190] sm:$0xf]
      %v249 = vld [vmem:[%s139 + $0x194] sm:$0xf]
      %v250 = vld [vmem:[%s139 + $0x198] sm:$0xf]
      %v251 = vld [vmem:[%s139 + $0x19c] sm:$0xf]
      %v252 = vld [vmem:[%s139 + $0x1a0] sm:$0xf]
      %v253 = vld [vmem:[%s139 + $0x1a4] sm:$0xf]
      %v254 = vld [vmem:[%s139 + $0x1a8] sm:$0xf]
      %v255 = vld [vmem:[%s139 + $0x1ac] sm:$0xf]
      %v256 = vld [vmem:[%s139 + $0x1b0] sm:$0xf]
      %v257 = vld [vmem:[%s139 + $0x1b4] sm:$0xf]
      %v258 = vld [vmem:[%s139 + $0x1b8] sm:$0xf]
      %v259 = vld [vmem:[%s139 + $0x1bc] sm:$0xf]
      %v260 = vld [vmem:[%s139 + $0x1c0] sm:$0xf]
      %v261 = vld [vmem:[%s139 + $0x1c4] sm:$0xf]
      %v262 = vld [vmem:[%s139 + $0x1c8] sm:$0xf]
      %v263 = vld [vmem:[%s139 + $0x1cc] sm:$0xf]
      %v264 = vld [vmem:[%s139 + $0x1d0] sm:$0xf]
      %v265 = vld [vmem:[%s139 + $0x1d4] sm:$0xf]
      %v266 = vld [vmem:[%s139 + $0x1d8] sm:$0xf]
      %v267 = vld [vmem:[%s139 + $0x1dc] sm:$0xf]
      %v268 = vld [vmem:[%s139 + $0x1e0] sm:$0xf]
      %v269 = vld [vmem:[%s139 + $0x1e4] sm:$0xf]
      %v270 = vld [vmem:[%s139 + $0x1e8] sm:$0xf]
      %v271 = vld [vmem:[%s139 + $0x1ec] sm:$0xf]
      %v272 = vld [vmem:[%s139 + $0x1f0] sm:$0xf]
      %v273 = vld [vmem:[%s139 + $0x1f4] sm:$0xf]
      %v274 = vld [vmem:[%s139 + $0x1f8] sm:$0xf]
      %v275 = vld [vmem:[%s139 + $0x1fc] sm:$0xf]
      %v276 = vld [vmem:[%s1] sm:$0xf]
      %v277 = vld [vmem:[%s1 + $0x4] sm:$0xf]
      %v278 = vld [vmem:[%s1 + $0x8] sm:$0xf]
      %v279 = vld [vmem:[%s1 + $0xc] sm:$0xf]
      %v280 = vld [vmem:[%s1 + $0x10] sm:$0xf]
      %v281 = vld [vmem:[%s1 + $0x14] sm:$0xf]
      %v410 = vunpack.c.l.b16 %v148
      %v411 = vunpack.c.l.b16 %v149
      %v412 = vunpack.c.l.b16 %v150
      %v413 = vunpack.c.l.b16 %v151
      %v414 = vunpack.c.l.b16 %v152
      %v415 = vunpack.c.l.b16 %v153
      %v416 = vunpack.c.l.b16 %v154
      %v417 = vunpack.c.l.b16 %v155
      %v418 = vunpack.c.l.b16 %v156
      %v419 = vunpack.c.l.b16 %v157
      %v420 = vunpack.c.l.b16 %v158
      %v421 = vunpack.c.l.b16 %v159
      %v422 = vunpack.c.l.b16 %v160
      %v423 = vunpack.c.l.b16 %v161
      %v424 = vunpack.c.l.b16 %v162
      %v425 = vunpack.c.l.b16 %v163
      %v426 = vunpack.c.l.b16 %v164
      %v427 = vunpack.c.l.b16 %v165
      %v428 = vunpack.c.l.b16 %v166
      %v429 = vunpack.c.l.b16 %v167
      %v430 = vunpack.c.l.b16 %v168
      %v431 = vunpack.c.l.b16 %v169
      %v432 = vunpack.c.l.b16 %v170
      %v433 = vunpack.c.l.b16 %v171
      %v434 = vunpack.c.l.b16 %v172
      %v435 = vunpack.c.l.b16 %v173
      %v436 = vunpack.c.l.b16 %v174
      %v437 = vunpack.c.l.b16 %v175
      %v438 = vunpack.c.l.b16 %v176
      %v439 = vunpack.c.l.b16 %v177
      %v440 = vunpack.c.l.b16 %v178
      %v441 = vunpack.c.l.b16 %v179
      %v442 = vunpack.c.l.b16 %v180
      %v443 = vunpack.c.l.b16 %v181
      %v444 = vunpack.c.l.b16 %v182
      %v445 = vunpack.c.l.b16 %v183
      %v446 = vunpack.c.l.b16 %v184
      %v447 = vunpack.c.l.b16 %v185
      %v448 = vunpack.c.l.b16 %v186
      %v449 = vunpack.c.l.b16 %v187
      %v450 = vunpack.c.l.b16 %v188
      %v451 = vunpack.c.l.b16 %v189
      %v452 = vunpack.c.l.b16 %v190
      %v453 = vunpack.c.l.b16 %v191
      %v454 = vunpack.c.l.b16 %v192
      %v455 = vunpack.c.l.b16 %v193
      %v456 = vunpack.c.l.b16 %v194
      %v457 = vunpack.c.l.b16 %v195
      %v458 = vunpack.c.l.b16 %v196
      %v459 = vunpack.c.l.b16 %v197
      %v460 = vunpack.c.l.b16 %v198
      %v461 = vunpack.c.l.b16 %v199
      %v462 = vunpack.c.l.b16 %v200
      %v463 = vunpack.c.l.b16 %v201
      %v464 = vunpack.c.l.b16 %v202
      %v465 = vunpack.c.l.b16 %v203
      %v466 = vunpack.c.l.b16 %v204
      %v467 = vunpack.c.l.b16 %v205
      %v468 = vunpack.c.l.b16 %v206
      %v469 = vunpack.c.l.b16 %v207
      %v470 = vunpack.c.l.b16 %v208
      %v471 = vunpack.c.l.b16 %v209
      %v472 = vunpack.c.l.b16 %v210
      %v473 = vunpack.c.l.b16 %v211
      %v474 = vunpack.c.l.b16 %v212
      %v475 = vunpack.c.l.b16 %v213
      %v476 = vunpack.c.l.b16 %v214
      %v477 = vunpack.c.l.b16 %v215
      %v478 = vunpack.c.l.b16 %v216
      %v479 = vunpack.c.l.b16 %v217
      %v480 = vunpack.c.l.b16 %v218
      %v481 = vunpack.c.l.b16 %v219
      %v482 = vunpack.c.l.b16 %v220
      %v483 = vunpack.c.l.b16 %v221
      %v484 = vunpack.c.l.b16 %v222
      %v485 = vunpack.c.l.b16 %v223
      %v486 = vunpack.c.l.b16 %v224
      %v487 = vunpack.c.l.b16 %v225
      %v488 = vunpack.c.l.b16 %v226
      %v489 = vunpack.c.l.b16 %v227
      %v490 = vunpack.c.l.b16 %v228
      %v491 = vunpack.c.l.b16 %v229
      %v492 = vunpack.c.l.b16 %v230
      %v493 = vunpack.c.l.b16 %v231
      %v494 = vunpack.c.l.b16 %v232
      %v495 = vunpack.c.l.b16 %v233
      %v496 = vunpack.c.l.b16 %v234
      %v497 = vunpack.c.l.b16 %v235
      %v498 = vunpack.c.l.b16 %v236
      %v499 = vunpack.c.l.b16 %v237
      %v500 = vunpack.c.l.b16 %v238
      %v501 = vunpack.c.l.b16 %v239
      %v502 = vunpack.c.l.b16 %v240
      %v503 = vunpack.c.l.b16 %v241
      %v504 = vunpack.c.l.b16 %v242
      %v505 = vunpack.c.l.b16 %v243
      %v506 = vunpack.c.l.b16 %v244
      %v507 = vunpack.c.l.b16 %v245
      %v508 = vunpack.c.l.b16 %v246
      %v509 = vunpack.c.l.b16 %v247
      %v510 = vunpack.c.l.b16 %v248
      %v511 = vunpack.c.l.b16 %v249
      %v512 = vunpack.c.l.b16 %v250
      %v513 = vunpack.c.l.b16 %v251
      %v514 = vunpack.c.l.b16 %v252
      %v515 = vunpack.c.l.b16 %v253
      %v516 = vunpack.c.l.b16 %v254
      %v517 = vunpack.c.l.b16 %v255
      %v518 = vunpack.c.l.b16 %v256
      %v519 = vunpack.c.l.b16 %v257
      %v520 = vunpack.c.l.b16 %v258
      %v521 = vunpack.c.l.b16 %v259
      %v522 = vunpack.c.l.b16 %v260
      %v523 = vunpack.c.l.b16 %v261
      %v524 = vunpack.c.l.b16 %v262
      %v525 = vunpack.c.l.b16 %v263
      %v526 = vunpack.c.l.b16 %v264
      %v527 = vunpack.c.l.b16 %v265
      %v528 = vunpack.c.l.b16 %v266
      %v529 = vunpack.c.l.b16 %v267
      %v530 = vunpack.c.l.b16 %v268
      %v531 = vunpack.c.l.b16 %v269
      %v532 = vunpack.c.l.b16 %v270
      %v533 = vunpack.c.l.b16 %v271
      %v534 = vunpack.c.l.b16 %v272
      %v535 = vunpack.c.l.b16 %v273
      %v536 = vunpack.c.l.b16 %v274
      %v537 = vunpack.c.l.b16 %v275
      %v538 = vpack.c.b16 %v411, %v410
      %v539 = vpack.c.b16 %v413, %v412
      %v540 = vpack.c.b16 %v415, %v414
      %v541 = vpack.c.b16 %v417, %v416
      %v542 = vpack.c.b16 %v419, %v418
      %v543 = vpack.c.b16 %v421, %v420
      %v544 = vpack.c.b16 %v423, %v422
      %v545 = vpack.c.b16 %v425, %v424
      %v546 = vpack.c.b16 %v427, %v426
      %v547 = vpack.c.b16 %v429, %v428
      %v548 = vpack.c.b16 %v431, %v430
      %v549 = vpack.c.b16 %v433, %v432
      %v550 = vpack.c.b16 %v435, %v434
      %v551 = vpack.c.b16 %v437, %v436
      %v552 = vpack.c.b16 %v439, %v438
      %v553 = vpack.c.b16 %v441, %v440
      %v554 = vpack.c.b16 %v443, %v442
      %v555 = vpack.c.b16 %v445, %v444
      %v556 = vpack.c.b16 %v447, %v446
      %v557 = vpack.c.b16 %v449, %v448
      %v558 = vpack.c.b16 %v451, %v450
      %v559 = vpack.c.b16 %v453, %v452
      %v560 = vpack.c.b16 %v455, %v454
      %v561 = vpack.c.b16 %v457, %v456
      %v562 = vpack.c.b16 %v459, %v458
      %v563 = vpack.c.b16 %v461, %v460
      %v564 = vpack.c.b16 %v463, %v462
      %v565 = vpack.c.b16 %v465, %v464
      %v566 = vpack.c.b16 %v467, %v466
      %v567 = vpack.c.b16 %v469, %v468
      %v568 = vpack.c.b16 %v471, %v470
      %v569 = vpack.c.b16 %v473, %v472
      %v570 = vpack.c.b16 %v475, %v474
      %v571 = vpack.c.b16 %v477, %v476
      %v572 = vpack.c.b16 %v479, %v478
      %v573 = vpack.c.b16 %v481, %v480
      %v574 = vpack.c.b16 %v483, %v482
      %v575 = vpack.c.b16 %v485, %v484
      %v576 = vpack.c.b16 %v487, %v486
      %v577 = vpack.c.b16 %v489, %v488
      %v578 = vpack.c.b16 %v491, %v490
      %v579 = vpack.c.b16 %v493, %v492
      %v580 = vpack.c.b16 %v495, %v494
      %v581 = vpack.c.b16 %v497, %v496
      %v582 = vpack.c.b16 %v499, %v498
      %v583 = vpack.c.b16 %v501, %v500
      %v584 = vpack.c.b16 %v503, %v502
      %v585 = vpack.c.b16 %v505, %v504
      %v586 = vpack.c.b16 %v507, %v506
      %v587 = vpack.c.b16 %v509, %v508
      %v588 = vpack.c.b16 %v511, %v510
      %v589 = vpack.c.b16 %v513, %v512
      %v590 = vpack.c.b16 %v515, %v514
      %v591 = vpack.c.b16 %v517, %v516
      %v592 = vpack.c.b16 %v519, %v518
      %v593 = vpack.c.b16 %v521, %v520
      %v594 = vpack.c.b16 %v523, %v522
      %v595 = vpack.c.b16 %v525, %v524
      %v596 = vpack.c.b16 %v527, %v526
      %v597 = vpack.c.b16 %v529, %v528
      %v598 = vpack.c.b16 %v531, %v530
      %v599 = vpack.c.b16 %v533, %v532
      %v600 = vpack.c.b16 %v535, %v534
      %v601 = vpack.c.b16 %v537, %v536
      %v608 = vunpack.c.l.b16 %v276
      %v609 = vunpack.c.l.b16 %v277
      %v610 = vunpack.c.l.b16 %v278
      %v611 = vunpack.c.l.b16 %v279
      %v612 = vunpack.c.l.b16 %v280
      %v613 = vunpack.c.l.b16 %v281
      %v614 = vpack.c.b16 %v609, %v608
      %v615 = vpack.c.b16 %v611, %v610
      %v616 = vpack.c.b16 %v613, %v612
      %vm620 = vcmask 392192
      %v622 = vsel %vm620, %v538, 0
      %v625 = vsel %vm620, %v539, 0
      %v628 = vsel %vm620, %v540, 0
      %v631 = vsel %vm620, %v541, 0
      %v634 = vsel %vm620, %v542, 0
      %v637 = vsel %vm620, %v543, 0
      %v640 = vsel %vm620, %v544, 0
      %v643 = vsel %vm620, %v545, 0
      %v646 = vsel %vm620, %v546, 0
      %v649 = vsel %vm620, %v547, 0
      %v652 = vsel %vm620, %v548, 0
      %v655 = vsel %vm620, %v549, 0
      %v658 = vsel %vm620, %v550, 0
      %v661 = vsel %vm620, %v551, 0
      %v664 = vsel %vm620, %v552, 0
      %v667 = vsel %vm620, %v553, 0
      %v670 = vsel %vm620, %v554, 0
      %v673 = vsel %vm620, %v555, 0
      %v676 = vsel %vm620, %v556, 0
      %v679 = vsel %vm620, %v557, 0
      %v682 = vsel %vm620, %v558, 0
      %v685 = vsel %vm620, %v559, 0
      %v688 = vsel %vm620, %v560, 0
      %v691 = vsel %vm620, %v561, 0
      %v694 = vsel %vm620, %v562, 0
      %v697 = vsel %vm620, %v563, 0
      %v700 = vsel %vm620, %v564, 0
      %v703 = vsel %vm620, %v565, 0
      %v706 = vsel %vm620, %v566, 0
      %v709 = vsel %vm620, %v567, 0
      %v712 = vsel %vm620, %v568, 0
      %v715 = vsel %vm620, %v569, 0
      %v718 = vsel %vm620, %v570, 0
      %v721 = vsel %vm620, %v571, 0
      %v724 = vsel %vm620, %v572, 0
      %v727 = vsel %vm620, %v573, 0
      %v730 = vsel %vm620, %v574, 0
      %v733 = vsel %vm620, %v575, 0
      %v736 = vsel %vm620, %v576, 0
      %v739 = vsel %vm620, %v577, 0
      %v742 = vsel %vm620, %v578, 0
      %v745 = vsel %vm620, %v579, 0
      %v748 = vsel %vm620, %v580, 0
      %v751 = vsel %vm620, %v581, 0
      %v754 = vsel %vm620, %v582, 0
      %v757 = vsel %vm620, %v583, 0
      %v760 = vsel %vm620, %v584, 0
      %v763 = vsel %vm620, %v585, 0
      %v766 = vsel %vm620, %v586, 0
      %v769 = vsel %vm620, %v587, 0
      %v772 = vsel %vm620, %v588, 0
      %v775 = vsel %vm620, %v589, 0
      %v778 = vsel %vm620, %v590, 0
      %v781 = vsel %vm620, %v591, 0
      %v784 = vsel %vm620, %v592, 0
      %v787 = vsel %vm620, %v593, 0
      %v790 = vsel %vm620, %v594, 0
      %v793 = vsel %vm620, %v595, 0
      %v796 = vsel %vm620, %v596, 0
      %v799 = vsel %vm620, %v597, 0
      %v802 = vsel %vm620, %v598, 0
      %v805 = vsel %vm620, %v599, 0
      %v808 = vsel %vm620, %v600, 0
      %v811 = vsel %vm620, %v601, 0
      %813 = vmatprep.subr.bf16.mxu0 0
      %814 = vmatpush1.bf16.msra.mxu0 0
      %815 = vmatprep.subr.bf16.mxu0 0
      %816 = vmatpush1.bf16.msra.mxu0 0
      %817 = vmatprep.subr.bf16.mxu0 0
      %818 = vmatpush1.bf16.msra.mxu0 0
      %819 = vmatprep.subr.bf16.mxu0 0
      %820 = vmatpush1.bf16.msra.mxu0 0
      %821 = vmatprep.subr.bf16.mxu0 0
      %822 = vmatpush1.bf16.msra.mxu0 0
      %823 = vmatprep.subr.bf16.mxu0 0
      %824 = vmatpush1.bf16.msra.mxu0 %v616
      %825 = vmatprep.subr.bf16.mxu0 0
      %826 = vmatpush1.bf16.msra.mxu0 %v615
      %827 = vmatprep.subr.bf16.mxu0 0
      %828 = vmatpush1.bf16.msra.mxu0 %v614
      %829 = vmatprep.subr.bf16.mxu0 0
      %830 = vmatpush2.bf16.msra.mxu0 0
      %831 = vmatprep.subr.bf16.mxu0 0
      %832 = vmatpush2.bf16.msra.mxu0 0
      %833 = vmatprep.subr.bf16.mxu0 0
      %834 = vmatpush2.bf16.msra.mxu0 0
      %835 = vmatprep.subr.bf16.mxu0 0
      %836 = vmatpush2.bf16.msra.mxu0 0
      %837 = vmatprep.subr.bf16.mxu0 0
      %838 = vmatpush2.bf16.msra.mxu0 0
      %839 = vmatprep.subr.bf16.mxu0 0
      %840 = vmatpush2.bf16.msra.mxu0 0
      %841 = vmatprep.subr.bf16.mxu0 0
      %842 = vmatpush2.bf16.msra.mxu0 0
      %843 = vmatprep.subr.bf16.mxu0 0
      %844 = vmatpush2.bf16.msra.mxu0 0
      %845 = vmatprep.mubr.bf16.mxu0 0
      %846 = vmatmul.mubr.bf16.gmra.mxu0 %v622
      %v847 = vpop.f32.mrf.mxu0
      %v848 = vadd.f32 0.0, %v847
      %v849 = vpop.f32.mrf.mxu0
      %v850 = vpop.f32.mrf.mxu0
      %v851 = vadd.f32 0.0, %v850
      %v852 = vpop.f32.mrf.mxu0
      %853 = vmatprep.mubr.bf16.mxu0 0
      %854 = vmatmul.mubr.bf16.gmra.mxu0 %v625
      %v855 = vpop.f32.mrf.mxu0
      %v856 = vadd.f32 0.0, %v855
      %v857 = vpop.f32.mrf.mxu0
      %v858 = vpop.f32.mrf.mxu0
      %v859 = vadd.f32 0.0, %v858
      %v860 = vpop.f32.mrf.mxu0
      %861 = vmatprep.mubr.bf16.mxu0 0
      %862 = vmatmul.mubr.bf16.gmra.mxu0 %v628
      %v863 = vpop.f32.mrf.mxu0
      %v864 = vadd.f32 0.0, %v863
      %v865 = vpop.f32.mrf.mxu0
      %v866 = vpop.f32.mrf.mxu0
      %v867 = vadd.f32 0.0, %v866
      %v868 = vpop.f32.mrf.mxu0
      %869 = vmatprep.mubr.bf16.mxu0 0
      %870 = vmatmul.mubr.bf16.gmra.mxu0 %v631
      %v871 = vpop.f32.mrf.mxu0
      %v872 = vadd.f32 0.0, %v871
      %v873 = vpop.f32.mrf.mxu0
      %v874 = vpop.f32.mrf.mxu0
      %v875 = vadd.f32 0.0, %v874
      %v876 = vpop.f32.mrf.mxu0
      %877 = vmatprep.mubr.bf16.mxu0 0
      %878 = vmatmul.mubr.bf16.gmra.mxu0 %v634
      %v879 = vpop.f32.mrf.mxu0
      %v880 = vadd.f32 0.0, %v879
      %v881 = vpop.f32.mrf.mxu0
      %v882 = vpop.f32.mrf.mxu0
      %v883 = vadd.f32 0.0, %v882
      %v884 = vpop.f32.mrf.mxu0
      %885 = vmatprep.mubr.bf16.mxu0 0
      %886 = vmatmul.mubr.bf16.gmra.mxu0 %v637
      %v887 = vpop.f32.mrf.mxu0
      %v888 = vadd.f32 0.0, %v887
      %v889 = vpop.f32.mrf.mxu0
      %v890 = vpop.f32.mrf.mxu0
      %v891 = vadd.f32 0.0, %v890
      %v892 = vpop.f32.mrf.mxu0
      %893 = vmatprep.mubr.bf16.mxu0 0
      %894 = vmatmul.mubr.bf16.gmra.mxu0 %v640
      %v895 = vpop.f32.mrf.mxu0
      %v896 = vadd.f32 0.0, %v895
      %v897 = vpop.f32.mrf.mxu0
      %v898 = vpop.f32.mrf.mxu0
      %v899 = vadd.f32 0.0, %v898
      %v900 = vpop.f32.mrf.mxu0
      %901 = vmatprep.mubr.bf16.mxu0 0
      %902 = vmatmul.mubr.bf16.gmra.mxu0 %v643
      %v903 = vpop.f32.mrf.mxu0
      %v904 = vadd.f32 0.0, %v903
      %v905 = vpop.f32.mrf.mxu0
      %v906 = vpop.f32.mrf.mxu0
      %v907 = vadd.f32 0.0, %v906
      %v908 = vpop.f32.mrf.mxu0
      %909 = vmatprep.mubr.bf16.mxu0 0
      %910 = vmatmul.mubr.bf16.gmra.mxu0 %v646
      %v911 = vpop.f32.mrf.mxu0
      %v912 = vadd.f32 0.0, %v911
      %v913 = vpop.f32.mrf.mxu0
      %v914 = vpop.f32.mrf.mxu0
      %v915 = vadd.f32 0.0, %v914
      %v916 = vpop.f32.mrf.mxu0
      %917 = vmatprep.mubr.bf16.mxu0 0
      %918 = vmatmul.mubr.bf16.gmra.mxu0 %v649
      %v919 = vpop.f32.mrf.mxu0
      %v920 = vadd.f32 0.0, %v919
      %v921 = vpop.f32.mrf.mxu0
      %v922 = vpop.f32.mrf.mxu0
      %v923 = vadd.f32 0.0, %v922
      %v924 = vpop.f32.mrf.mxu0
      %925 = vmatprep.mubr.bf16.mxu0 0
      %926 = vmatmul.mubr.bf16.gmra.mxu0 %v652
      %v927 = vpop.f32.mrf.mxu0
      %v928 = vadd.f32 0.0, %v927
      %v929 = vpop.f32.mrf.mxu0
      %v930 = vpop.f32.mrf.mxu0
      %v931 = vadd.f32 0.0, %v930
      %v932 = vpop.f32.mrf.mxu0
      %933 = vmatprep.mubr.bf16.mxu0 0
      %934 = vmatmul.mubr.bf16.gmra.mxu0 %v655
      %v935 = vpop.f32.mrf.mxu0
      %v936 = vadd.f32 0.0, %v935
      %v937 = vpop.f32.mrf.mxu0
      %v938 = vpop.f32.mrf.mxu0
      %v939 = vadd.f32 0.0, %v938
      %v940 = vpop.f32.mrf.mxu0
      %941 = vmatprep.mubr.bf16.mxu0 0
      %942 = vmatmul.mubr.bf16.gmra.mxu0 %v658
      %v943 = vpop.f32.mrf.mxu0
      %v944 = vadd.f32 0.0, %v943
      %v945 = vpop.f32.mrf.mxu0
      %v946 = vpop.f32.mrf.mxu0
      %v947 = vadd.f32 0.0, %v946
      %v948 = vpop.f32.mrf.mxu0
      %949 = vmatprep.mubr.bf16.mxu0 0
      %950 = vmatmul.mubr.bf16.gmra.mxu0 %v661
      %v951 = vpop.f32.mrf.mxu0
      %v952 = vadd.f32 0.0, %v951
      %v953 = vpop.f32.mrf.mxu0
      %v954 = vpop.f32.mrf.mxu0
      %v955 = vadd.f32 0.0, %v954
      %v956 = vpop.f32.mrf.mxu0
      %957 = vmatprep.mubr.bf16.mxu0 0
      %958 = vmatmul.mubr.bf16.gmra.mxu0 %v664
      %v959 = vpop.f32.mrf.mxu0
      %v960 = vadd.f32 0.0, %v959
      %v961 = vpop.f32.mrf.mxu0
      %v962 = vpop.f32.mrf.mxu0
      %v963 = vadd.f32 0.0, %v962
      %v964 = vpop.f32.mrf.mxu0
      %965 = vmatprep.mubr.bf16.mxu0 0
      %966 = vmatmul.mubr.bf16.gmra.mxu0 %v667
      %v967 = vpop.f32.mrf.mxu0
      %v968 = vadd.f32 0.0, %v967
      %v969 = vpop.f32.mrf.mxu0
      %v970 = vpop.f32.mrf.mxu0
      %v971 = vadd.f32 0.0, %v970
      %v972 = vpop.f32.mrf.mxu0
      %973 = vmatprep.mubr.bf16.mxu0 0
      %974 = vmatmul.mubr.bf16.gmra.mxu0 %v670
      %v975 = vpop.f32.mrf.mxu0
      %v976 = vadd.f32 0.0, %v975
      %v977 = vpop.f32.mrf.mxu0
      %v978 = vpop.f32.mrf.mxu0
      %v979 = vadd.f32 0.0, %v978
      %v980 = vpop.f32.mrf.mxu0
      %981 = vmatprep.mubr.bf16.mxu0 0
      %982 = vmatmul.mubr.bf16.gmra.mxu0 %v673
      %v983 = vpop.f32.mrf.mxu0
      %v984 = vadd.f32 0.0, %v983
      %v985 = vpop.f32.mrf.mxu0
      %v986 = vpop.f32.mrf.mxu0
      %v987 = vadd.f32 0.0, %v986
      %v988 = vpop.f32.mrf.mxu0
      %989 = vmatprep.mubr.bf16.mxu0 0
      %990 = vmatmul.mubr.bf16.gmra.mxu0 %v676
      %v991 = vpop.f32.mrf.mxu0
      %v992 = vadd.f32 0.0, %v991
      %v993 = vpop.f32.mrf.mxu0
      %v994 = vpop.f32.mrf.mxu0
      %v995 = vadd.f32 0.0, %v994
      %v996 = vpop.f32.mrf.mxu0
      %997 = vmatprep.mubr.bf16.mxu0 0
      %998 = vmatmul.mubr.bf16.gmra.mxu0 %v679
      %v999 = vpop.f32.mrf.mxu0
      %v1000 = vadd.f32 0.0, %v999
      %v1001 = vpop.f32.mrf.mxu0
      %v1002 = vpop.f32.mrf.mxu0
      %v1003 = vadd.f32 0.0, %v1002
      %v1004 = vpop.f32.mrf.mxu0
      %1005 = vmatprep.mubr.bf16.mxu0 0
      %1006 = vmatmul.mubr.bf16.gmra.mxu0 %v682
      %v1007 = vpop.f32.mrf.mxu0
      %v1008 = vadd.f32 0.0, %v1007
      %v1009 = vpop.f32.mrf.mxu0
      %v1010 = vpop.f32.mrf.mxu0
      %v1011 = vadd.f32 0.0, %v1010
      %v1012 = vpop.f32.mrf.mxu0
      %1013 = vmatprep.mubr.bf16.mxu0 0
      %1014 = vmatmul.mubr.bf16.gmra.mxu0 %v685
      %v1015 = vpop.f32.mrf.mxu0
      %v1016 = vadd.f32 0.0, %v1015
      %v1017 = vpop.f32.mrf.mxu0
      %v1018 = vpop.f32.mrf.mxu0
      %v1019 = vadd.f32 0.0, %v1018
      %v1020 = vpop.f32.mrf.mxu0
      %1021 = vmatprep.mubr.bf16.mxu0 0
      %1022 = vmatmul.mubr.bf16.gmra.mxu0 %v688
      %v1023 = vpop.f32.mrf.mxu0
      %v1024 = vadd.f32 0.0, %v1023
      %v1025 = vpop.f32.mrf.mxu0
      %v1026 = vpop.f32.mrf.mxu0
      %v1027 = vadd.f32 0.0, %v1026
      %v1028 = vpop.f32.mrf.mxu0
      %1029 = vmatprep.mubr.bf16.mxu0 0
      %1030 = vmatmul.mubr.bf16.gmra.mxu0 %v691
      %v1031 = vpop.f32.mrf.mxu0
      %v1032 = vadd.f32 0.0, %v1031
      %v1033 = vpop.f32.mrf.mxu0
      %v1034 = vpop.f32.mrf.mxu0
      %v1035 = vadd.f32 0.0, %v1034
      %v1036 = vpop.f32.mrf.mxu0
      %1037 = vmatprep.mubr.bf16.mxu0 0
      %1038 = vmatmul.mubr.bf16.gmra.mxu0 %v694
      %v1039 = vpop.f32.mrf.mxu0
      %v1040 = vadd.f32 0.0, %v1039
      %v1041 = vpop.f32.mrf.mxu0
      %v1042 = vpop.f32.mrf.mxu0
      %v1043 = vadd.f32 0.0, %v1042
      %v1044 = vpop.f32.mrf.mxu0
      %1045 = vmatprep.mubr.bf16.mxu0 0
      %1046 = vmatmul.mubr.bf16.gmra.mxu0 %v697
      %v1047 = vpop.f32.mrf.mxu0
      %v1048 = vadd.f32 0.0, %v1047
      %v1049 = vpop.f32.mrf.mxu0
      %v1050 = vpop.f32.mrf.mxu0
      %v1051 = vadd.f32 0.0, %v1050
      %v1052 = vpop.f32.mrf.mxu0
      %1053 = vmatprep.mubr.bf16.mxu0 0
      %1054 = vmatmul.mubr.bf16.gmra.mxu0 %v700
      %v1055 = vpop.f32.mrf.mxu0
      %v1056 = vadd.f32 0.0, %v1055
      %v1057 = vpop.f32.mrf.mxu0
      %v1058 = vpop.f32.mrf.mxu0
      %v1059 = vadd.f32 0.0, %v1058
      %v1060 = vpop.f32.mrf.mxu0
      %1061 = vmatprep.mubr.bf16.mxu0 0
      %1062 = vmatmul.mubr.bf16.gmra.mxu0 %v703
      %v1063 = vpop.f32.mrf.mxu0
      %v1064 = vadd.f32 0.0, %v1063
      %v1065 = vpop.f32.mrf.mxu0
      %v1066 = vpop.f32.mrf.mxu0
      %v1067 = vadd.f32 0.0, %v1066
      %v1068 = vpop.f32.mrf.mxu0
      %1069 = vmatprep.mubr.bf16.mxu0 0
      %1070 = vmatmul.mubr.bf16.gmra.mxu0 %v706
      %v1071 = vpop.f32.mrf.mxu0
      %v1072 = vadd.f32 0.0, %v1071
      %v1073 = vpop.f32.mrf.mxu0
      %v1074 = vpop.f32.mrf.mxu0
      %v1075 = vadd.f32 0.0, %v1074
      %v1076 = vpop.f32.mrf.mxu0
      %1077 = vmatprep.mubr.bf16.mxu0 0
      %1078 = vmatmul.mubr.bf16.gmra.mxu0 %v709
      %v1079 = vpop.f32.mrf.mxu0
      %v1080 = vadd.f32 0.0, %v1079
      %v1081 = vpop.f32.mrf.mxu0
      %v1082 = vpop.f32.mrf.mxu0
      %v1083 = vadd.f32 0.0, %v1082
      %v1084 = vpop.f32.mrf.mxu0
      %1085 = vmatprep.mubr.bf16.mxu0 0
      %1086 = vmatmul.mubr.bf16.gmra.mxu0 %v712
      %v1087 = vpop.f32.mrf.mxu0
      %v1088 = vadd.f32 0.0, %v1087
      %v1089 = vpop.f32.mrf.mxu0
      %v1090 = vpop.f32.mrf.mxu0
      %v1091 = vadd.f32 0.0, %v1090
      %v1092 = vpop.f32.mrf.mxu0
      %1093 = vmatprep.mubr.bf16.mxu0 0
      %1094 = vmatmul.mubr.bf16.gmra.mxu0 %v715
      %v1095 = vpop.f32.mrf.mxu0
      %v1096 = vadd.f32 0.0, %v1095
      %v1097 = vpop.f32.mrf.mxu0
      %v1098 = vpop.f32.mrf.mxu0
      %v1099 = vadd.f32 0.0, %v1098
      %v1100 = vpop.f32.mrf.mxu0
      %1101 = vmatprep.mubr.bf16.mxu0 0
      %1102 = vmatmul.mubr.bf16.gmra.mxu0 %v718
      %v1103 = vpop.f32.mrf.mxu0
      %v1104 = vadd.f32 0.0, %v1103
      %v1105 = vpop.f32.mrf.mxu0
      %v1106 = vpop.f32.mrf.mxu0
      %v1107 = vadd.f32 0.0, %v1106
      %v1108 = vpop.f32.mrf.mxu0
      %1109 = vmatprep.mubr.bf16.mxu0 0
      %1110 = vmatmul.mubr.bf16.gmra.mxu0 %v721
      %v1111 = vpop.f32.mrf.mxu0
      %v1112 = vadd.f32 0.0, %v1111
      %v1113 = vpop.f32.mrf.mxu0
      %v1114 = vpop.f32.mrf.mxu0
      %v1115 = vadd.f32 0.0, %v1114
      %v1116 = vpop.f32.mrf.mxu0
      %1117 = vmatprep.mubr.bf16.mxu0 0
      %1118 = vmatmul.mubr.bf16.gmra.mxu0 %v724
      %v1119 = vpop.f32.mrf.mxu0
      %v1120 = vadd.f32 0.0, %v1119
      %v1121 = vpop.f32.mrf.mxu0
      %v1122 = vpop.f32.mrf.mxu0
      %v1123 = vadd.f32 0.0, %v1122
      %v1124 = vpop.f32.mrf.mxu0
      %1125 = vmatprep.mubr.bf16.mxu0 0
      %1126 = vmatmul.mubr.bf16.gmra.mxu0 %v727
      %v1127 = vpop.f32.mrf.mxu0
      %v1128 = vadd.f32 0.0, %v1127
      %v1129 = vpop.f32.mrf.mxu0
      %v1130 = vpop.f32.mrf.mxu0
      %v1131 = vadd.f32 0.0, %v1130
      %v1132 = vpop.f32.mrf.mxu0
      %1133 = vmatprep.mubr.bf16.mxu0 0
      %1134 = vmatmul.mubr.bf16.gmra.mxu0 %v730
      %v1135 = vpop.f32.mrf.mxu0
      %v1136 = vadd.f32 0.0, %v1135
      %v1137 = vpop.f32.mrf.mxu0
      %v1138 = vpop.f32.mrf.mxu0
      %v1139 = vadd.f32 0.0, %v1138
      %v1140 = vpop.f32.mrf.mxu0
      %1141 = vmatprep.mubr.bf16.mxu0 0
      %1142 = vmatmul.mubr.bf16.gmra.mxu0 %v733
      %v1143 = vpop.f32.mrf.mxu0
      %v1144 = vadd.f32 0.0, %v1143
      %v1145 = vpop.f32.mrf.mxu0
      %v1146 = vpop.f32.mrf.mxu0
      %v1147 = vadd.f32 0.0, %v1146
      %v1148 = vpop.f32.mrf.mxu0
      %1149 = vmatprep.mubr.bf16.mxu0 0
      %1150 = vmatmul.mubr.bf16.gmra.mxu0 %v736
      %v1151 = vpop.f32.mrf.mxu0
      %v1152 = vadd.f32 0.0, %v1151
      %v1153 = vpop.f32.mrf.mxu0
      %v1154 = vpop.f32.mrf.mxu0
      %v1155 = vadd.f32 0.0, %v1154
      %v1156 = vpop.f32.mrf.mxu0
      %1157 = vmatprep.mubr.bf16.mxu0 0
      %1158 = vmatmul.mubr.bf16.gmra.mxu0 %v739
      %v1159 = vpop.f32.mrf.mxu0
      %v1160 = vadd.f32 0.0, %v1159
      %v1161 = vpop.f32.mrf.mxu0
      %v1162 = vpop.f32.mrf.mxu0
      %v1163 = vadd.f32 0.0, %v1162
      %v1164 = vpop.f32.mrf.mxu0
      %1165 = vmatprep.mubr.bf16.mxu0 0
      %1166 = vmatmul.mubr.bf16.gmra.mxu0 %v742
      %v1167 = vpop.f32.mrf.mxu0
      %v1168 = vadd.f32 0.0, %v1167
      %v1169 = vpop.f32.mrf.mxu0
      %v1170 = vpop.f32.mrf.mxu0
      %v1171 = vadd.f32 0.0, %v1170
      %v1172 = vpop.f32.mrf.mxu0
      %1173 = vmatprep.mubr.bf16.mxu0 0
      %1174 = vmatmul.mubr.bf16.gmra.mxu0 %v745
      %v1175 = vpop.f32.mrf.mxu0
      %v1176 = vadd.f32 0.0, %v1175
      %v1177 = vpop.f32.mrf.mxu0
      %v1178 = vpop.f32.mrf.mxu0
      %v1179 = vadd.f32 0.0, %v1178
      %v1180 = vpop.f32.mrf.mxu0
      %1181 = vmatprep.mubr.bf16.mxu0 0
      %1182 = vmatmul.mubr.bf16.gmra.mxu0 %v748
      %v1183 = vpop.f32.mrf.mxu0
      %v1184 = vadd.f32 0.0, %v1183
      %v1185 = vpop.f32.mrf.mxu0
      %v1186 = vpop.f32.mrf.mxu0
      %v1187 = vadd.f32 0.0, %v1186
      %v1188 = vpop.f32.mrf.mxu0
      %1189 = vmatprep.mubr.bf16.mxu0 0
      %1190 = vmatmul.mubr.bf16.gmra.mxu0 %v751
      %v1191 = vpop.f32.mrf.mxu0
      %v1192 = vadd.f32 0.0, %v1191
      %v1193 = vpop.f32.mrf.mxu0
      %v1194 = vpop.f32.mrf.mxu0
      %v1195 = vadd.f32 0.0, %v1194
      %v1196 = vpop.f32.mrf.mxu0
      %1197 = vmatprep.mubr.bf16.mxu0 0
      %1198 = vmatmul.mubr.bf16.gmra.mxu0 %v754
      %v1199 = vpop.f32.mrf.mxu0
      %v1200 = vadd.f32 0.0, %v1199
      %v1201 = vpop.f32.mrf.mxu0
      %v1202 = vpop.f32.mrf.mxu0
      %v1203 = vadd.f32 0.0, %v1202
      %v1204 = vpop.f32.mrf.mxu0
      %1205 = vmatprep.mubr.bf16.mxu0 0
      %1206 = vmatmul.mubr.bf16.gmra.mxu0 %v757
      %v1207 = vpop.f32.mrf.mxu0
      %v1208 = vadd.f32 0.0, %v1207
      %v1209 = vpop.f32.mrf.mxu0
      %v1210 = vpop.f32.mrf.mxu0
      %v1211 = vadd.f32 0.0, %v1210
      %v1212 = vpop.f32.mrf.mxu0
      %1213 = vmatprep.mubr.bf16.mxu0 0
      %1214 = vmatmul.mubr.bf16.gmra.mxu0 %v760
      %v1215 = vpop.f32.mrf.mxu0
      %v1216 = vadd.f32 0.0, %v1215
      %v1217 = vpop.f32.mrf.mxu0
      %v1218 = vpop.f32.mrf.mxu0
      %v1219 = vadd.f32 0.0, %v1218
      %v1220 = vpop.f32.mrf.mxu0
      %1221 = vmatprep.mubr.bf16.mxu0 0
      %1222 = vmatmul.mubr.bf16.gmra.mxu0 %v763
      %v1223 = vpop.f32.mrf.mxu0
      %v1224 = vadd.f32 0.0, %v1223
      %v1225 = vpop.f32.mrf.mxu0
      %v1226 = vpop.f32.mrf.mxu0
      %v1227 = vadd.f32 0.0, %v1226
      %v1228 = vpop.f32.mrf.mxu0
      %1229 = vmatprep.mubr.bf16.mxu0 0
      %1230 = vmatmul.mubr.bf16.gmra.mxu0 %v766
      %v1231 = vpop.f32.mrf.mxu0
      %v1232 = vadd.f32 0.0, %v1231
      %v1233 = vpop.f32.mrf.mxu0
      %v1234 = vpop.f32.mrf.mxu0
      %v1235 = vadd.f32 0.0, %v1234
      %v1236 = vpop.f32.mrf.mxu0
      %1237 = vmatprep.mubr.bf16.mxu0 0
      %1238 = vmatmul.mubr.bf16.gmra.mxu0 %v769
      %v1239 = vpop.f32.mrf.mxu0
      %v1240 = vadd.f32 0.0, %v1239
      %v1241 = vpop.f32.mrf.mxu0
      %v1242 = vpop.f32.mrf.mxu0
      %v1243 = vadd.f32 0.0, %v1242
      %v1244 = vpop.f32.mrf.mxu0
      %1245 = vmatprep.mubr.bf16.mxu0 0
      %1246 = vmatmul.mubr.bf16.gmra.mxu0 %v772
      %v1247 = vpop.f32.mrf.mxu0
      %v1248 = vadd.f32 0.0, %v1247
      %v1249 = vpop.f32.mrf.mxu0
      %v1250 = vpop.f32.mrf.mxu0
      %v1251 = vadd.f32 0.0, %v1250
      %v1252 = vpop.f32.mrf.mxu0
      %1253 = vmatprep.mubr.bf16.mxu0 0
      %1254 = vmatmul.mubr.bf16.gmra.mxu0 %v775
      %v1255 = vpop.f32.mrf.mxu0
      %v1256 = vadd.f32 0.0, %v1255
      %v1257 = vpop.f32.mrf.mxu0
      %v1258 = vpop.f32.mrf.mxu0
      %v1259 = vadd.f32 0.0, %v1258
      %v1260 = vpop.f32.mrf.mxu0
      %1261 = vmatprep.mubr.bf16.mxu0 0
      %1262 = vmatmul.mubr.bf16.gmra.mxu0 %v778
      %v1263 = vpop.f32.mrf.mxu0
      %v1264 = vadd.f32 0.0, %v1263
      %v1265 = vpop.f32.mrf.mxu0
      %v1266 = vpop.f32.mrf.mxu0
      %v1267 = vadd.f32 0.0, %v1266
      %v1268 = vpop.f32.mrf.mxu0
      %1269 = vmatprep.mubr.bf16.mxu0 0
      %1270 = vmatmul.mubr.bf16.gmra.mxu0 %v781
      %v1271 = vpop.f32.mrf.mxu0
      %v1272 = vadd.f32 0.0, %v1271
      %v1273 = vpop.f32.mrf.mxu0
      %v1274 = vpop.f32.mrf.mxu0
      %v1275 = vadd.f32 0.0, %v1274
      %v1276 = vpop.f32.mrf.mxu0
      %1277 = vmatprep.mubr.bf16.mxu0 0
      %1278 = vmatmul.mubr.bf16.gmra.mxu0 %v784
      %v1279 = vpop.f32.mrf.mxu0
      %v1280 = vadd.f32 0.0, %v1279
      %v1281 = vpop.f32.mrf.mxu0
      %v1282 = vpop.f32.mrf.mxu0
      %v1283 = vadd.f32 0.0, %v1282
      %v1284 = vpop.f32.mrf.mxu0
      %1285 = vmatprep.mubr.bf16.mxu0 0
      %1286 = vmatmul.mubr.bf16.gmra.mxu0 %v787
      %v1287 = vpop.f32.mrf.mxu0
      %v1288 = vadd.f32 0.0, %v1287
      %v1289 = vpop.f32.mrf.mxu0
      %v1290 = vpop.f32.mrf.mxu0
      %v1291 = vadd.f32 0.0, %v1290
      %v1292 = vpop.f32.mrf.mxu0
      %1293 = vmatprep.mubr.bf16.mxu0 0
      %1294 = vmatmul.mubr.bf16.gmra.mxu0 %v790
      %v1295 = vpop.f32.mrf.mxu0
      %v1296 = vadd.f32 0.0, %v1295
      %v1297 = vpop.f32.mrf.mxu0
      %v1298 = vpop.f32.mrf.mxu0
      %v1299 = vadd.f32 0.0, %v1298
      %v1300 = vpop.f32.mrf.mxu0
      %1301 = vmatprep.mubr.bf16.mxu0 0
      %1302 = vmatmul.mubr.bf16.gmra.mxu0 %v793
      %v1303 = vpop.f32.mrf.mxu0
      %v1304 = vadd.f32 0.0, %v1303
      %v1305 = vpop.f32.mrf.mxu0
      %v1306 = vpop.f32.mrf.mxu0
      %v1307 = vadd.f32 0.0, %v1306
      %v1308 = vpop.f32.mrf.mxu0
      %1309 = vmatprep.mubr.bf16.mxu0 0
      %1310 = vmatmul.mubr.bf16.gmra.mxu0 %v796
      %v1311 = vpop.f32.mrf.mxu0
      %v1312 = vadd.f32 0.0, %v1311
      %v1313 = vpop.f32.mrf.mxu0
      %v1314 = vpop.f32.mrf.mxu0
      %v1315 = vadd.f32 0.0, %v1314
      %v1316 = vpop.f32.mrf.mxu0
      %1317 = vmatprep.mubr.bf16.mxu0 0
      %1318 = vmatmul.mubr.bf16.gmra.mxu0 %v799
      %v1319 = vpop.f32.mrf.mxu0
      %v1320 = vadd.f32 0.0, %v1319
      %v1321 = vpop.f32.mrf.mxu0
      %v1322 = vpop.f32.mrf.mxu0
      %v1323 = vadd.f32 0.0, %v1322
      %v1324 = vpop.f32.mrf.mxu0
      %1325 = vmatprep.mubr.bf16.mxu0 0
      %1326 = vmatmul.mubr.bf16.gmra.mxu0 %v802
      %v1327 = vpop.f32.mrf.mxu0
      %v1328 = vadd.f32 0.0, %v1327
      %v1329 = vpop.f32.mrf.mxu0
      %v1330 = vpop.f32.mrf.mxu0
      %v1331 = vadd.f32 0.0, %v1330
      %v1332 = vpop.f32.mrf.mxu0
      %1333 = vmatprep.mubr.bf16.mxu0 0
      %1334 = vmatmul.mubr.bf16.gmra.mxu0 %v805
      %v1335 = vpop.f32.mrf.mxu0
      %v1336 = vadd.f32 0.0, %v1335
      %v1337 = vpop.f32.mrf.mxu0
      %v1338 = vpop.f32.mrf.mxu0
      %v1339 = vadd.f32 0.0, %v1338
      %v1340 = vpop.f32.mrf.mxu0
      %1341 = vmatprep.mubr.bf16.mxu0 0
      %1342 = vmatmul.mubr.bf16.gmra.mxu0 %v808
      %v1343 = vpop.f32.mrf.mxu0
      %v1344 = vadd.f32 0.0, %v1343
      %v1345 = vpop.f32.mrf.mxu0
      %v1346 = vpop.f32.mrf.mxu0
      %v1347 = vadd.f32 0.0, %v1346
      %v1348 = vpop.f32.mrf.mxu0
      %1349 = vmatprep.mubr.bf16.mxu0 0
      %1350 = vmatmul.mubr.bf16.gmra.mxu0 %v811
      %v1351 = vpop.f32.mrf.mxu0
      %v1352 = vadd.f32 0.0, %v1351
      %v1353 = vpop.f32.mrf.mxu0
      %v1354 = vpop.f32.mrf.mxu0
      %v1355 = vadd.f32 0.0, %v1354
      %v1356 = vpop.f32.mrf.mxu0
      %1357 = vdwg.mxu0
      %vm1358 = vcmp.gt.f32.partialorder %v848, 0.0
      %vm1359 = vcmp.gt.f32.partialorder %v851, 0.0
      %vm1360 = vcmp.gt.f32.partialorder %v856, 0.0
      %vm1361 = vcmp.gt.f32.partialorder %v859, 0.0
      %vm1362 = vcmp.gt.f32.partialorder %v864, 0.0
      %vm1363 = vcmp.gt.f32.partialorder %v867, 0.0
      %vm1364 = vcmp.gt.f32.partialorder %v872, 0.0
      %vm1365 = vcmp.gt.f32.partialorder %v875, 0.0
      %vm1366 = vcmp.gt.f32.partialorder %v880, 0.0
      %vm1367 = vcmp.gt.f32.partialorder %v883, 0.0
      %vm1368 = vcmp.gt.f32.partialorder %v888, 0.0
      %vm1369 = vcmp.gt.f32.partialorder %v891, 0.0
      %vm1370 = vcmp.gt.f32.partialorder %v896, 0.0
      %vm1371 = vcmp.gt.f32.partialorder %v899, 0.0
      %vm1372 = vcmp.gt.f32.partialorder %v904, 0.0
      %vm1373 = vcmp.gt.f32.partialorder %v907, 0.0
      %vm1374 = vcmp.gt.f32.partialorder %v912, 0.0
      %vm1375 = vcmp.gt.f32.partialorder %v915, 0.0
      %vm1376 = vcmp.gt.f32.partialorder %v920, 0.0
      %vm1377 = vcmp.gt.f32.partialorder %v923, 0.0
      %vm1378 = vcmp.gt.f32.partialorder %v928, 0.0
      %vm1379 = vcmp.gt.f32.partialorder %v931, 0.0
      %vm1380 = vcmp.gt.f32.partialorder %v936, 0.0
      %vm1381 = vcmp.gt.f32.partialorder %v939, 0.0
      %vm1382 = vcmp.gt.f32.partialorder %v944, 0.0
      %vm1383 = vcmp.gt.f32.partialorder %v947, 0.0
      %vm1384 = vcmp.gt.f32.partialorder %v952, 0.0
      %vm1385 = vcmp.gt.f32.partialorder %v955, 0.0
      %vm1386 = vcmp.gt.f32.partialorder %v960, 0.0
      %vm1387 = vcmp.gt.f32.partialorder %v963, 0.0
      %vm1388 = vcmp.gt.f32.partialorder %v968, 0.0
      %vm1389 = vcmp.gt.f32.partialorder %v971, 0.0
      %vm1390 = vcmp.gt.f32.partialorder %v976, 0.0
      %vm1391 = vcmp.gt.f32.partialorder %v979, 0.0
      %vm1392 = vcmp.gt.f32.partialorder %v984, 0.0
      %vm1393 = vcmp.gt.f32.partialorder %v987, 0.0
      %vm1394 = vcmp.gt.f32.partialorder %v992, 0.0
      %vm1395 = vcmp.gt.f32.partialorder %v995, 0.0
      %vm1396 = vcmp.gt.f32.partialorder %v1000, 0.0
      %vm1397 = vcmp.gt.f32.partialorder %v1003, 0.0
      %vm1398 = vcmp.gt.f32.partialorder %v1008, 0.0
      %vm1399 = vcmp.gt.f32.partialorder %v1011, 0.0
      %vm1400 = vcmp.gt.f32.partialorder %v1016, 0.0
      %vm1401 = vcmp.gt.f32.partialorder %v1019, 0.0
      %vm1402 = vcmp.gt.f32.partialorder %v1024, 0.0
      %vm1403 = vcmp.gt.f32.partialorder %v1027, 0.0
      %vm1404 = vcmp.gt.f32.partialorder %v1032, 0.0
      %vm1405 = vcmp.gt.f32.partialorder %v1035, 0.0
      %vm1406 = vcmp.gt.f32.partialorder %v1040, 0.0
      %vm1407 = vcmp.gt.f32.partialorder %v1043, 0.0
      %vm1408 = vcmp.gt.f32.partialorder %v1048, 0.0
      %vm1409 = vcmp.gt.f32.partialorder %v1051, 0.0
      %vm1410 = vcmp.gt.f32.partialorder %v1056, 0.0
      %vm1411 = vcmp.gt.f32.partialorder %v1059, 0.0
      %vm1412 = vcmp.gt.f32.partialorder %v1064, 0.0
      %vm1413 = vcmp.gt.f32.partialorder %v1067, 0.0
      %vm1414 = vcmp.gt.f32.partialorder %v1072, 0.0
      %vm1415 = vcmp.gt.f32.partialorder %v1075, 0.0
      %vm1416 = vcmp.gt.f32.partialorder %v1080, 0.0
      %vm1417 = vcmp.gt.f32.partialorder %v1083, 0.0
      %vm1418 = vcmp.gt.f32.partialorder %v1088, 0.0
      %vm1419 = vcmp.gt.f32.partialorder %v1091, 0.0
      %vm1420 = vcmp.gt.f32.partialorder %v1096, 0.0
      %vm1421 = vcmp.gt.f32.partialorder %v1099, 0.0
      %vm1422 = vcmp.gt.f32.partialorder %v1104, 0.0
      %vm1423 = vcmp.gt.f32.partialorder %v1107, 0.0
      %vm1424 = vcmp.gt.f32.partialorder %v1112, 0.0
      %vm1425 = vcmp.gt.f32.partialorder %v1115, 0.0
      %vm1426 = vcmp.gt.f32.partialorder %v1120, 0.0
      %vm1427 = vcmp.gt.f32.partialorder %v1123, 0.0
      %vm1428 = vcmp.gt.f32.partialorder %v1128, 0.0
      %vm1429 = vcmp.gt.f32.partialorder %v1131, 0.0
      %vm1430 = vcmp.gt.f32.partialorder %v1136, 0.0
      %vm1431 = vcmp.gt.f32.partialorder %v1139, 0.0
      %vm1432 = vcmp.gt.f32.partialorder %v1144, 0.0
      %vm1433 = vcmp.gt.f32.partialorder %v1147, 0.0
      %vm1434 = vcmp.gt.f32.partialorder %v1152, 0.0
      %vm1435 = vcmp.gt.f32.partialorder %v1155, 0.0
      %vm1436 = vcmp.gt.f32.partialorder %v1160, 0.0
      %vm1437 = vcmp.gt.f32.partialorder %v1163, 0.0
      %vm1438 = vcmp.gt.f32.partialorder %v1168, 0.0
      %vm1439 = vcmp.gt.f32.partialorder %v1171, 0.0
      %vm1440 = vcmp.gt.f32.partialorder %v1176, 0.0
      %vm1441 = vcmp.gt.f32.partialorder %v1179, 0.0
      %vm1442 = vcmp.gt.f32.partialorder %v1184, 0.0
      %vm1443 = vcmp.gt.f32.partialorder %v1187, 0.0
      %vm1444 = vcmp.gt.f32.partialorder %v1192, 0.0
      %vm1445 = vcmp.gt.f32.partialorder %v1195, 0.0
      %vm1446 = vcmp.gt.f32.partialorder %v1200, 0.0
      %vm1447 = vcmp.gt.f32.partialorder %v1203, 0.0
      %vm1448 = vcmp.gt.f32.partialorder %v1208, 0.0
      %vm1449 = vcmp.gt.f32.partialorder %v1211, 0.0
      %vm1450 = vcmp.gt.f32.partialorder %v1216, 0.0
      %vm1451 = vcmp.gt.f32.partialorder %v1219, 0.0
      %vm1452 = vcmp.gt.f32.partialorder %v1224, 0.0
      %vm1453 = vcmp.gt.f32.partialorder %v1227, 0.0
      %vm1454 = vcmp.gt.f32.partialorder %v1232, 0.0
      %vm1455 = vcmp.gt.f32.partialorder %v1235, 0.0
      %vm1456 = vcmp.gt.f32.partialorder %v1240, 0.0
      %vm1457 = vcmp.gt.f32.partialorder %v1243, 0.0
      %vm1458 = vcmp.gt.f32.partialorder %v1248, 0.0
      %vm1459 = vcmp.gt.f32.partialorder %v1251, 0.0
      %vm1460 = vcmp.gt.f32.partialorder %v1256, 0.0
      %vm1461 = vcmp.gt.f32.partialorder %v1259, 0.0
      %vm1462 = vcmp.gt.f32.partialorder %v1264, 0.0
      %vm1463 = vcmp.gt.f32.partialorder %v1267, 0.0
      %vm1464 = vcmp.gt.f32.partialorder %v1272, 0.0
      %vm1465 = vcmp.gt.f32.partialorder %v1275, 0.0
      %vm1466 = vcmp.gt.f32.partialorder %v1280, 0.0
      %vm1467 = vcmp.gt.f32.partialorder %v1283, 0.0
      %vm1468 = vcmp.gt.f32.partialorder %v1288, 0.0
      %vm1469 = vcmp.gt.f32.partialorder %v1291, 0.0
      %vm1470 = vcmp.gt.f32.partialorder %v1296, 0.0
      %vm1471 = vcmp.gt.f32.partialorder %v1299, 0.0
      %vm1472 = vcmp.gt.f32.partialorder %v1304, 0.0
      %vm1473 = vcmp.gt.f32.partialorder %v1307, 0.0
      %vm1474 = vcmp.gt.f32.partialorder %v1312, 0.0
      %vm1475 = vcmp.gt.f32.partialorder %v1315, 0.0
      %vm1476 = vcmp.gt.f32.partialorder %v1320, 0.0
      %vm1477 = vcmp.gt.f32.partialorder %v1323, 0.0
      %vm1478 = vcmp.gt.f32.partialorder %v1328, 0.0
      %vm1479 = vcmp.gt.f32.partialorder %v1331, 0.0
      %vm1480 = vcmp.gt.f32.partialorder %v1336, 0.0
      %vm1481 = vcmp.gt.f32.partialorder %v1339, 0.0
      %vm1482 = vcmp.gt.f32.partialorder %v1344, 0.0
      %vm1483 = vcmp.gt.f32.partialorder %v1347, 0.0
      %vm1484 = vcmp.gt.f32.partialorder %v1352, 0.0
      %vm1485 = vcmp.gt.f32.partialorder %v1355, 0.0
      %v1486 = vmul.f32 %v848, 0.2
      %v1487 = vmul.f32 %v851, 0.2
      %v1488 = vmul.f32 %v856, 0.2
      %v1489 = vmul.f32 %v859, 0.2
      %v1490 = vmul.f32 %v864, 0.2
      %v1491 = vmul.f32 %v867, 0.2
      %v1492 = vmul.f32 %v872, 0.2
      %v1493 = vmul.f32 %v875, 0.2
      %v1494 = vmul.f32 %v880, 0.2
      %v1495 = vmul.f32 %v883, 0.2
      %v1496 = vmul.f32 %v888, 0.2
      %v1497 = vmul.f32 %v891, 0.2
      %v1498 = vmul.f32 %v896, 0.2
      %v1499 = vmul.f32 %v899, 0.2
      %v1500 = vmul.f32 %v904, 0.2
      %v1501 = vmul.f32 %v907, 0.2
      %v1502 = vmul.f32 %v912, 0.2
      %v1503 = vmul.f32 %v915, 0.2
      %v1504 = vmul.f32 %v920, 0.2
      %v1505 = vmul.f32 %v923, 0.2
      %v1506 = vmul.f32 %v928, 0.2
      %v1507 = vmul.f32 %v931, 0.2
      %v1508 = vmul.f32 %v936, 0.2
      %v1509 = vmul.f32 %v939, 0.2
      %v1510 = vmul.f32 %v944, 0.2
      %v1511 = vmul.f32 %v947, 0.2
      %v1512 = vmul.f32 %v952, 0.2
      %v1513 = vmul.f32 %v955, 0.2
      %v1514 = vmul.f32 %v960, 0.2
      %v1515 = vmul.f32 %v963, 0.2
      %v1516 = vmul.f32 %v968, 0.2
      %v1517 = vmul.f32 %v971, 0.2
      %v1518 = vmul.f32 %v976, 0.2
      %v1519 = vmul.f32 %v979, 0.2
      %v1520 = vmul.f32 %v984, 0.2
      %v1521 = vmul.f32 %v987, 0.2
      %v1522 = vmul.f32 %v992, 0.2
      %v1523 = vmul.f32 %v995, 0.2
      %v1524 = vmul.f32 %v1000, 0.2
      %v1525 = vmul.f32 %v1003, 0.2
      %v1526 = vmul.f32 %v1008, 0.2
      %v1527 = vmul.f32 %v1011, 0.2
      %v1528 = vmul.f32 %v1016, 0.2
      %v1529 = vmul.f32 %v1019, 0.2
      %v1530 = vmul.f32 %v1024, 0.2
      %v1531 = vmul.f32 %v1027, 0.2
      %v1532 = vmul.f32 %v1032, 0.2
      %v1533 = vmul.f32 %v1035, 0.2
      %v1534 = vmul.f32 %v1040, 0.2
      %v1535 = vmul.f32 %v1043, 0.2
      %v1536 = vmul.f32 %v1048, 0.2
      %v1537 = vmul.f32 %v1051, 0.2
      %v1538 = vmul.f32 %v1056, 0.2
      %v1539 = vmul.f32 %v1059, 0.2
      %v1540 = vmul.f32 %v1064, 0.2
      %v1541 = vmul.f32 %v1067, 0.2
      %v1542 = vmul.f32 %v1072, 0.2
      %v1543 = vmul.f32 %v1075, 0.2
      %v1544 = vmul.f32 %v1080, 0.2
      %v1545 = vmul.f32 %v1083, 0.2
      %v1546 = vmul.f32 %v1088, 0.2
      %v1547 = vmul.f32 %v1091, 0.2
      %v1548 = vmul.f32 %v1096, 0.2
      %v1549 = vmul.f32 %v1099, 0.2
      %v1550 = vmul.f32 %v1104, 0.2
      %v1551 = vmul.f32 %v1107, 0.2
      %v1552 = vmul.f32 %v1112, 0.2
      %v1553 = vmul.f32 %v1115, 0.2
      %v1554 = vmul.f32 %v1120, 0.2
      %v1555 = vmul.f32 %v1123, 0.2
      %v1556 = vmul.f32 %v1128, 0.2
      %v1557 = vmul.f32 %v1131, 0.2
      %v1558 = vmul.f32 %v1136, 0.2
      %v1559 = vmul.f32 %v1139, 0.2
      %v1560 = vmul.f32 %v1144, 0.2
      %v1561 = vmul.f32 %v1147, 0.2
      %v1562 = vmul.f32 %v1152, 0.2
      %v1563 = vmul.f32 %v1155, 0.2
      %v1564 = vmul.f32 %v1160, 0.2
      %v1565 = vmul.f32 %v1163, 0.2
      %v1566 = vmul.f32 %v1168, 0.2
      %v1567 = vmul.f32 %v1171, 0.2
      %v1568 = vmul.f32 %v1176, 0.2
      %v1569 = vmul.f32 %v1179, 0.2
      %v1570 = vmul.f32 %v1184, 0.2
      %v1571 = vmul.f32 %v1187, 0.2
      %v1572 = vmul.f32 %v1192, 0.2
      %v1573 = vmul.f32 %v1195, 0.2
      %v1574 = vmul.f32 %v1200, 0.2
      %v1575 = vmul.f32 %v1203, 0.2
      %v1576 = vmul.f32 %v1208, 0.2
      %v1577 = vmul.f32 %v1211, 0.2
      %v1578 = vmul.f32 %v1216, 0.2
      %v1579 = vmul.f32 %v1219, 0.2
      %v1580 = vmul.f32 %v1224, 0.2
      %v1581 = vmul.f32 %v1227, 0.2
      %v1582 = vmul.f32 %v1232, 0.2
      %v1583 = vmul.f32 %v1235, 0.2
      %v1584 = vmul.f32 %v1240, 0.2
      %v1585 = vmul.f32 %v1243, 0.2
      %v1586 = vmul.f32 %v1248, 0.2
      %v1587 = vmul.f32 %v1251, 0.2
      %v1588 = vmul.f32 %v1256, 0.2
      %v1589 = vmul.f32 %v1259, 0.2
      %v1590 = vmul.f32 %v1264, 0.2
      %v1591 = vmul.f32 %v1267, 0.2
      %v1592 = vmul.f32 %v1272, 0.2
      %v1593 = vmul.f32 %v1275, 0.2
      %v1594 = vmul.f32 %v1280, 0.2
      %v1595 = vmul.f32 %v1283, 0.2
      %v1596 = vmul.f32 %v1288, 0.2
      %v1597 = vmul.f32 %v1291, 0.2
      %v1598 = vmul.f32 %v1296, 0.2
      %v1599 = vmul.f32 %v1299, 0.2
      %v1600 = vmul.f32 %v1304, 0.2
      %v1601 = vmul.f32 %v1307, 0.2
      %v1602 = vmul.f32 %v1312, 0.2
      %v1603 = vmul.f32 %v1315, 0.2
      %v1604 = vmul.f32 %v1320, 0.2
      %v1605 = vmul.f32 %v1323, 0.2
      %v1606 = vmul.f32 %v1328, 0.2
      %v1607 = vmul.f32 %v1331, 0.2
      %v1608 = vmul.f32 %v1336, 0.2
      %v1609 = vmul.f32 %v1339, 0.2
      %v1610 = vmul.f32 %v1344, 0.2
      %v1611 = vmul.f32 %v1347, 0.2
      %v1612 = vmul.f32 %v1352, 0.2
      %v1613 = vmul.f32 %v1355, 0.2
      %v1614 = vsel %vm1358, %v848, %v1486
      %v1615 = vsel %vm1359, %v851, %v1487
      %v1616 = vsel %vm1360, %v856, %v1488
      %v1617 = vsel %vm1361, %v859, %v1489
      %v1618 = vsel %vm1362, %v864, %v1490
      %v1619 = vsel %vm1363, %v867, %v1491
      %v1620 = vsel %vm1364, %v872, %v1492
      %v1621 = vsel %vm1365, %v875, %v1493
      %v1622 = vsel %vm1366, %v880, %v1494
      %v1623 = vsel %vm1367, %v883, %v1495
      %v1624 = vsel %vm1368, %v888, %v1496
      %v1625 = vsel %vm1369, %v891, %v1497
      %v1626 = vsel %vm1370, %v896, %v1498
      %v1627 = vsel %vm1371, %v899, %v1499
      %v1628 = vsel %vm1372, %v904, %v1500
      %v1629 = vsel %vm1373, %v907, %v1501
      %v1630 = vsel %vm1374, %v912, %v1502
      %v1631 = vsel %vm1375, %v915, %v1503
      %v1632 = vsel %vm1376, %v920, %v1504
      %v1633 = vsel %vm1377, %v923, %v1505
      %v1634 = vsel %vm1378, %v928, %v1506
      %v1635 = vsel %vm1379, %v931, %v1507
      %v1636 = vsel %vm1380, %v936, %v1508
      %v1637 = vsel %vm1381, %v939, %v1509
      %v1638 = vsel %vm1382, %v944, %v1510
      %v1639 = vsel %vm1383, %v947, %v1511
      %v1640 = vsel %vm1384, %v952, %v1512
      %v1641 = vsel %vm1385, %v955, %v1513
      %v1642 = vsel %vm1386, %v960, %v1514
      %v1643 = vsel %vm1387, %v963, %v1515
      %v1644 = vsel %vm1388, %v968, %v1516
      %v1645 = vsel %vm1389, %v971, %v1517
      %v1646 = vsel %vm1390, %v976, %v1518
      %v1647 = vsel %vm1391, %v979, %v1519
      %v1648 = vsel %vm1392, %v984, %v1520
      %v1649 = vsel %vm1393, %v987, %v1521
      %v1650 = vsel %vm1394, %v992, %v1522
      %v1651 = vsel %vm1395, %v995, %v1523
      %v1652 = vsel %vm1396, %v1000, %v1524
      %v1653 = vsel %vm1397, %v1003, %v1525
      %v1654 = vsel %vm1398, %v1008, %v1526
      %v1655 = vsel %vm1399, %v1011, %v1527
      %v1656 = vsel %vm1400, %v1016, %v1528
      %v1657 = vsel %vm1401, %v1019, %v1529
      %v1658 = vsel %vm1402, %v1024, %v1530
      %v1659 = vsel %vm1403, %v1027, %v1531
      %v1660 = vsel %vm1404, %v1032, %v1532
      %v1661 = vsel %vm1405, %v1035, %v1533
      %v1662 = vsel %vm1406, %v1040, %v1534
      %v1663 = vsel %vm1407, %v1043, %v1535
      %v1664 = vsel %vm1408, %v1048, %v1536
      %v1665 = vsel %vm1409, %v1051, %v1537
      %v1666 = vsel %vm1410, %v1056, %v1538
      %v1667 = vsel %vm1411, %v1059, %v1539
      %v1668 = vsel %vm1412, %v1064, %v1540
      %v1669 = vsel %vm1413, %v1067, %v1541
      %v1670 = vsel %vm1414, %v1072, %v1542
      %v1671 = vsel %vm1415, %v1075, %v1543
      %v1672 = vsel %vm1416, %v1080, %v1544
      %v1673 = vsel %vm1417, %v1083, %v1545
      %v1674 = vsel %vm1418, %v1088, %v1546
      %v1675 = vsel %vm1419, %v1091, %v1547
      %v1676 = vsel %vm1420, %v1096, %v1548
      %v1677 = vsel %vm1421, %v1099, %v1549
      %v1678 = vsel %vm1422, %v1104, %v1550
      %v1679 = vsel %vm1423, %v1107, %v1551
      %v1680 = vsel %vm1424, %v1112, %v1552
      %v1681 = vsel %vm1425, %v1115, %v1553
      %v1682 = vsel %vm1426, %v1120, %v1554
      %v1683 = vsel %vm1427, %v1123, %v1555
      %v1684 = vsel %vm1428, %v1128, %v1556
      %v1685 = vsel %vm1429, %v1131, %v1557
      %v1686 = vsel %vm1430, %v1136, %v1558
      %v1687 = vsel %vm1431, %v1139, %v1559
      %v1688 = vsel %vm1432, %v1144, %v1560
      %v1689 = vsel %vm1433, %v1147, %v1561
      %v1690 = vsel %vm1434, %v1152, %v1562
      %v1691 = vsel %vm1435, %v1155, %v1563
      %v1692 = vsel %vm1436, %v1160, %v1564
      %v1693 = vsel %vm1437, %v1163, %v1565
      %v1694 = vsel %vm1438, %v1168, %v1566
      %v1695 = vsel %vm1439, %v1171, %v1567
      %v1696 = vsel %vm1440, %v1176, %v1568
      %v1697 = vsel %vm1441, %v1179, %v1569
      %v1698 = vsel %vm1442, %v1184, %v1570
      %v1699 = vsel %vm1443, %v1187, %v1571
      %v1700 = vsel %vm1444, %v1192, %v1572
      %v1701 = vsel %vm1445, %v1195, %v1573
      %v1702 = vsel %vm1446, %v1200, %v1574
      %v1703 = vsel %vm1447, %v1203, %v1575
      %v1704 = vsel %vm1448, %v1208, %v1576
      %v1705 = vsel %vm1449, %v1211, %v1577
      %v1706 = vsel %vm1450, %v1216, %v1578
      %v1707 = vsel %vm1451, %v1219, %v1579
      %v1708 = vsel %vm1452, %v1224, %v1580
      %v1709 = vsel %vm1453, %v1227, %v1581
      %v1710 = vsel %vm1454, %v1232, %v1582
      %v1711 = vsel %vm1455, %v1235, %v1583
      %v1712 = vsel %vm1456, %v1240, %v1584
      %v1713 = vsel %vm1457, %v1243, %v1585
      %v1714 = vsel %vm1458, %v1248, %v1586
      %v1715 = vsel %vm1459, %v1251, %v1587
      %v1716 = vsel %vm1460, %v1256, %v1588
      %v1717 = vsel %vm1461, %v1259, %v1589
      %v1718 = vsel %vm1462, %v1264, %v1590
      %v1719 = vsel %vm1463, %v1267, %v1591
      %v1720 = vsel %vm1464, %v1272, %v1592
      %v1721 = vsel %vm1465, %v1275, %v1593
      %v1722 = vsel %vm1466, %v1280, %v1594
      %v1723 = vsel %vm1467, %v1283, %v1595
      %v1724 = vsel %vm1468, %v1288, %v1596
      %v1725 = vsel %vm1469, %v1291, %v1597
      %v1726 = vsel %vm1470, %v1296, %v1598
      %v1727 = vsel %vm1471, %v1299, %v1599
      %v1728 = vsel %vm1472, %v1304, %v1600
      %v1729 = vsel %vm1473, %v1307, %v1601
      %v1730 = vsel %vm1474, %v1312, %v1602
      %v1731 = vsel %vm1475, %v1315, %v1603
      %v1732 = vsel %vm1476, %v1320, %v1604
      %v1733 = vsel %vm1477, %v1323, %v1605
      %v1734 = vsel %vm1478, %v1328, %v1606
      %v1735 = vsel %vm1479, %v1331, %v1607
      %v1736 = vsel %vm1480, %v1336, %v1608
      %v1737 = vsel %vm1481, %v1339, %v1609
      %v1738 = vsel %vm1482, %v1344, %v1610
      %v1739 = vsel %vm1483, %v1347, %v1611
      %v1740 = vsel %vm1484, %v1352, %v1612
      %v1741 = vsel %vm1485, %v1355, %v1613
      %v1742 = vpack.c.bf16 %v1615, %v1614
      %v1743 = vpack.c.bf16 %v1617, %v1616
      %v1744 = vpack.c.bf16 %v1619, %v1618
      %v1745 = vpack.c.bf16 %v1621, %v1620
      %v1746 = vpack.c.bf16 %v1623, %v1622
      %v1747 = vpack.c.bf16 %v1625, %v1624
      %v1748 = vpack.c.bf16 %v1627, %v1626
      %v1749 = vpack.c.bf16 %v1629, %v1628
      %v1750 = vpack.c.bf16 %v1631, %v1630
      %v1751 = vpack.c.bf16 %v1633, %v1632
      %v1752 = vpack.c.bf16 %v1635, %v1634
      %v1753 = vpack.c.bf16 %v1637, %v1636
      %v1754 = vpack.c.bf16 %v1639, %v1638
      %v1755 = vpack.c.bf16 %v1641, %v1640
      %v1756 = vpack.c.bf16 %v1643, %v1642
      %v1757 = vpack.c.bf16 %v1645, %v1644
      %v1758 = vpack.c.bf16 %v1647, %v1646
      %v1759 = vpack.c.bf16 %v1649, %v1648
      %v1760 = vpack.c.bf16 %v1651, %v1650
      %v1761 = vpack.c.bf16 %v1653, %v1652
      %v1762 = vpack.c.bf16 %v1655, %v1654
      %v1763 = vpack.c.bf16 %v1657, %v1656
      %v1764 = vpack.c.bf16 %v1659, %v1658
      %v1765 = vpack.c.bf16 %v1661, %v1660
      %v1766 = vpack.c.bf16 %v1663, %v1662
      %v1767 = vpack.c.bf16 %v1665, %v1664
      %v1768 = vpack.c.bf16 %v1667, %v1666
      %v1769 = vpack.c.bf16 %v1669, %v1668
      %v1770 = vpack.c.bf16 %v1671, %v1670
      %v1771 = vpack.c.bf16 %v1673, %v1672
      %v1772 = vpack.c.bf16 %v1675, %v1674
      %v1773 = vpack.c.bf16 %v1677, %v1676
      %v1774 = vpack.c.bf16 %v1679, %v1678
      %v1775 = vpack.c.bf16 %v1681, %v1680
      %v1776 = vpack.c.bf16 %v1683, %v1682
      %v1777 = vpack.c.bf16 %v1685, %v1684
      %v1778 = vpack.c.bf16 %v1687, %v1686
      %v1779 = vpack.c.bf16 %v1689, %v1688
      %v1780 = vpack.c.bf16 %v1691, %v1690
      %v1781 = vpack.c.bf16 %v1693, %v1692
      %v1782 = vpack.c.bf16 %v1695, %v1694
      %v1783 = vpack.c.bf16 %v1697, %v1696
      %v1784 = vpack.c.bf16 %v1699, %v1698
      %v1785 = vpack.c.bf16 %v1701, %v1700
      %v1786 = vpack.c.bf16 %v1703, %v1702
      %v1787 = vpack.c.bf16 %v1705, %v1704
      %v1788 = vpack.c.bf16 %v1707, %v1706
      %v1789 = vpack.c.bf16 %v1709, %v1708
      %v1790 = vpack.c.bf16 %v1711, %v1710
      %v1791 = vpack.c.bf16 %v1713, %v1712
      %v1792 = vpack.c.bf16 %v1715, %v1714
      %v1793 = vpack.c.bf16 %v1717, %v1716
      %v1794 = vpack.c.bf16 %v1719, %v1718
      %v1795 = vpack.c.bf16 %v1721, %v1720
      %v1796 = vpack.c.bf16 %v1723, %v1722
      %v1797 = vpack.c.bf16 %v1725, %v1724
      %v1798 = vpack.c.bf16 %v1727, %v1726
      %v1799 = vpack.c.bf16 %v1729, %v1728
      %v1800 = vpack.c.bf16 %v1731, %v1730
      %v1801 = vpack.c.bf16 %v1733, %v1732
      %v1802 = vpack.c.bf16 %v1735, %v1734
      %v1803 = vpack.c.bf16 %v1737, %v1736
      %v1804 = vpack.c.bf16 %v1739, %v1738
      %v1805 = vpack.c.bf16 %v1741, %v1740
      %v1870 = vunpack.c.l.b16 %v1742
      %v1871 = vunpack.c.h.b16 %v1742
      %v1872 = vunpack.c.l.b16 %v1743
      %v1873 = vunpack.c.h.b16 %v1743
      %v1874 = vunpack.c.l.b16 %v1744
      %v1875 = vunpack.c.h.b16 %v1744
      %v1876 = vunpack.c.l.b16 %v1745
      %v1877 = vunpack.c.h.b16 %v1745
      %v1878 = vunpack.c.l.b16 %v1746
      %v1879 = vunpack.c.h.b16 %v1746
      %v1880 = vunpack.c.l.b16 %v1747
      %v1881 = vunpack.c.h.b16 %v1747
      %v1882 = vunpack.c.l.b16 %v1748
      %v1883 = vunpack.c.h.b16 %v1748
      %v1884 = vunpack.c.l.b16 %v1749
      %v1885 = vunpack.c.h.b16 %v1749
      %v1886 = vunpack.c.l.b16 %v1750
      %v1887 = vunpack.c.h.b16 %v1750
      %v1888 = vunpack.c.l.b16 %v1751
      %v1889 = vunpack.c.h.b16 %v1751
      %v1890 = vunpack.c.l.b16 %v1752
      %v1891 = vunpack.c.h.b16 %v1752
      %v1892 = vunpack.c.l.b16 %v1753
      %v1893 = vunpack.c.h.b16 %v1753
      %v1894 = vunpack.c.l.b16 %v1754
      %v1895 = vunpack.c.h.b16 %v1754
      %v1896 = vunpack.c.l.b16 %v1755
      %v1897 = vunpack.c.h.b16 %v1755
      %v1898 = vunpack.c.l.b16 %v1756
      %v1899 = vunpack.c.h.b16 %v1756
      %v1900 = vunpack.c.l.b16 %v1757
      %v1901 = vunpack.c.h.b16 %v1757
      %v1902 = vunpack.c.l.b16 %v1758
      %v1903 = vunpack.c.h.b16 %v1758
      %v1904 = vunpack.c.l.b16 %v1759
      %v1905 = vunpack.c.h.b16 %v1759
      %v1906 = vunpack.c.l.b16 %v1760
      %v1907 = vunpack.c.h.b16 %v1760
      %v1908 = vunpack.c.l.b16 %v1761
      %v1909 = vunpack.c.h.b16 %v1761
      %v1910 = vunpack.c.l.b16 %v1762
      %v1911 = vunpack.c.h.b16 %v1762
      %v1912 = vunpack.c.l.b16 %v1763
      %v1913 = vunpack.c.h.b16 %v1763
      %v1914 = vunpack.c.l.b16 %v1764
      %v1915 = vunpack.c.h.b16 %v1764
      %v1916 = vunpack.c.l.b16 %v1765
      %v1917 = vunpack.c.h.b16 %v1765
      %v1918 = vunpack.c.l.b16 %v1766
      %v1919 = vunpack.c.h.b16 %v1766
      %v1920 = vunpack.c.l.b16 %v1767
      %v1921 = vunpack.c.h.b16 %v1767
      %v1922 = vunpack.c.l.b16 %v1768
      %v1923 = vunpack.c.h.b16 %v1768
      %v1924 = vunpack.c.l.b16 %v1769
      %v1925 = vunpack.c.h.b16 %v1769
      %v1926 = vunpack.c.l.b16 %v1770
      %v1927 = vunpack.c.h.b16 %v1770
      %v1928 = vunpack.c.l.b16 %v1771
      %v1929 = vunpack.c.h.b16 %v1771
      %v1930 = vunpack.c.l.b16 %v1772
      %v1931 = vunpack.c.h.b16 %v1772
      %v1932 = vunpack.c.l.b16 %v1773
      %v1933 = vunpack.c.h.b16 %v1773
      %v1934 = vunpack.c.l.b16 %v1774
      %v1935 = vunpack.c.h.b16 %v1774
      %v1936 = vunpack.c.l.b16 %v1775
      %v1937 = vunpack.c.h.b16 %v1775
      %v1938 = vunpack.c.l.b16 %v1776
      %v1939 = vunpack.c.h.b16 %v1776
      %v1940 = vunpack.c.l.b16 %v1777
      %v1941 = vunpack.c.h.b16 %v1777
      %v1942 = vunpack.c.l.b16 %v1778
      %v1943 = vunpack.c.h.b16 %v1778
      %v1944 = vunpack.c.l.b16 %v1779
      %v1945 = vunpack.c.h.b16 %v1779
      %v1946 = vunpack.c.l.b16 %v1780
      %v1947 = vunpack.c.h.b16 %v1780
      %v1948 = vunpack.c.l.b16 %v1781
      %v1949 = vunpack.c.h.b16 %v1781
      %v1950 = vunpack.c.l.b16 %v1782
      %v1951 = vunpack.c.h.b16 %v1782
      %v1952 = vunpack.c.l.b16 %v1783
      %v1953 = vunpack.c.h.b16 %v1783
      %v1954 = vunpack.c.l.b16 %v1784
      %v1955 = vunpack.c.h.b16 %v1784
      %v1956 = vunpack.c.l.b16 %v1785
      %v1957 = vunpack.c.h.b16 %v1785
      %v1958 = vunpack.c.l.b16 %v1786
      %v1959 = vunpack.c.h.b16 %v1786
      %v1960 = vunpack.c.l.b16 %v1787
      %v1961 = vunpack.c.h.b16 %v1787
      %v1962 = vunpack.c.l.b16 %v1788
      %v1963 = vunpack.c.h.b16 %v1788
      %v1964 = vunpack.c.l.b16 %v1789
      %v1965 = vunpack.c.h.b16 %v1789
      %v1966 = vunpack.c.l.b16 %v1790
      %v1967 = vunpack.c.h.b16 %v1790
      %v1968 = vunpack.c.l.b16 %v1791
      %v1969 = vunpack.c.h.b16 %v1791
      %v1970 = vunpack.c.l.b16 %v1792
      %v1971 = vunpack.c.h.b16 %v1792
      %v1972 = vunpack.c.l.b16 %v1793
      %v1973 = vunpack.c.h.b16 %v1793
      %v1974 = vunpack.c.l.b16 %v1794
      %v1975 = vunpack.c.h.b16 %v1794
      %v1976 = vunpack.c.l.b16 %v1795
      %v1977 = vunpack.c.h.b16 %v1795
      %v1978 = vunpack.c.l.b16 %v1796
      %v1979 = vunpack.c.h.b16 %v1796
      %v1980 = vunpack.c.l.b16 %v1797
      %v1981 = vunpack.c.h.b16 %v1797
      %v1982 = vunpack.c.l.b16 %v1798
      %v1983 = vunpack.c.h.b16 %v1798
      %v1984 = vunpack.c.l.b16 %v1799
      %v1985 = vunpack.c.h.b16 %v1799
      %v1986 = vunpack.c.l.b16 %v1800
      %v1987 = vunpack.c.h.b16 %v1800
      %v1988 = vunpack.c.l.b16 %v1801
      %v1989 = vunpack.c.h.b16 %v1801
      %v1990 = vunpack.c.l.b16 %v1802
      %v1991 = vunpack.c.h.b16 %v1802
      %v1992 = vunpack.c.l.b16 %v1803
      %v1993 = vunpack.c.h.b16 %v1803
      %v1994 = vunpack.c.l.b16 %v1804
      %v1995 = vunpack.c.h.b16 %v1804
      %v1996 = vunpack.c.l.b16 %v1805
      %v1997 = vunpack.c.h.b16 %v1805
      %v1998 = vpack.c.b16 %v1870, %v1870
      %v1999 = vpack.c.b16 %v1871, %v1871
      %v2000 = vpack.c.b16 %v1872, %v1872
      %v2001 = vpack.c.b16 %v1873, %v1873
      %v2002 = vpack.c.b16 %v1874, %v1874
      %v2003 = vpack.c.b16 %v1875, %v1875
      %v2004 = vpack.c.b16 %v1876, %v1876
      %v2005 = vpack.c.b16 %v1877, %v1877
      %v2006 = vpack.c.b16 %v1878, %v1878
      %v2007 = vpack.c.b16 %v1879, %v1879
      %v2008 = vpack.c.b16 %v1880, %v1880
      %v2009 = vpack.c.b16 %v1881, %v1881
      %v2010 = vpack.c.b16 %v1882, %v1882
      %v2011 = vpack.c.b16 %v1883, %v1883
      %v2012 = vpack.c.b16 %v1884, %v1884
      %v2013 = vpack.c.b16 %v1885, %v1885
      %v2014 = vpack.c.b16 %v1886, %v1886
      %v2015 = vpack.c.b16 %v1887, %v1887
      %v2016 = vpack.c.b16 %v1888, %v1888
      %v2017 = vpack.c.b16 %v1889, %v1889
      %v2018 = vpack.c.b16 %v1890, %v1890
      %v2019 = vpack.c.b16 %v1891, %v1891
      %v2020 = vpack.c.b16 %v1892, %v1892
      %v2021 = vpack.c.b16 %v1893, %v1893
      %v2022 = vpack.c.b16 %v1894, %v1894
      %v2023 = vpack.c.b16 %v1895, %v1895
      %v2024 = vpack.c.b16 %v1896, %v1896
      %v2025 = vpack.c.b16 %v1897, %v1897
      %v2026 = vpack.c.b16 %v1898, %v1898
      %v2027 = vpack.c.b16 %v1899, %v1899
      %v2028 = vpack.c.b16 %v1900, %v1900
      %v2029 = vpack.c.b16 %v1901, %v1901
      %v2030 = vpack.c.b16 %v1902, %v1902
      %v2031 = vpack.c.b16 %v1903, %v1903
      %v2032 = vpack.c.b16 %v1904, %v1904
      %v2033 = vpack.c.b16 %v1905, %v1905
      %v2034 = vpack.c.b16 %v1906, %v1906
      %v2035 = vpack.c.b16 %v1907, %v1907
      %v2036 = vpack.c.b16 %v1908, %v1908
      %v2037 = vpack.c.b16 %v1909, %v1909
      %v2038 = vpack.c.b16 %v1910, %v1910
      %v2039 = vpack.c.b16 %v1911, %v1911
      %v2040 = vpack.c.b16 %v1912, %v1912
      %v2041 = vpack.c.b16 %v1913, %v1913
      %v2042 = vpack.c.b16 %v1914, %v1914
      %v2043 = vpack.c.b16 %v1915, %v1915
      %v2044 = vpack.c.b16 %v1916, %v1916
      %v2045 = vpack.c.b16 %v1917, %v1917
      %v2046 = vpack.c.b16 %v1918, %v1918
      %v2047 = vpack.c.b16 %v1919, %v1919
      %v2048 = vpack.c.b16 %v1920, %v1920
      %v2049 = vpack.c.b16 %v1921, %v1921
      %v2050 = vpack.c.b16 %v1922, %v1922
      %v2051 = vpack.c.b16 %v1923, %v1923
      %v2052 = vpack.c.b16 %v1924, %v1924
      %v2053 = vpack.c.b16 %v1925, %v1925
      %v2054 = vpack.c.b16 %v1926, %v1926
      %v2055 = vpack.c.b16 %v1927, %v1927
      %v2056 = vpack.c.b16 %v1928, %v1928
      %v2057 = vpack.c.b16 %v1929, %v1929
      %v2058 = vpack.c.b16 %v1930, %v1930
      %v2059 = vpack.c.b16 %v1931, %v1931
      %v2060 = vpack.c.b16 %v1932, %v1932
      %v2061 = vpack.c.b16 %v1933, %v1933
      %v2062 = vpack.c.b16 %v1934, %v1934
      %v2063 = vpack.c.b16 %v1935, %v1935
      %v2064 = vpack.c.b16 %v1936, %v1936
      %v2065 = vpack.c.b16 %v1937, %v1937
      %v2066 = vpack.c.b16 %v1938, %v1938
      %v2067 = vpack.c.b16 %v1939, %v1939
      %v2068 = vpack.c.b16 %v1940, %v1940
      %v2069 = vpack.c.b16 %v1941, %v1941
      %v2070 = vpack.c.b16 %v1942, %v1942
      %v2071 = vpack.c.b16 %v1943, %v1943
      %v2072 = vpack.c.b16 %v1944, %v1944
      %v2073 = vpack.c.b16 %v1945, %v1945
      %v2074 = vpack.c.b16 %v1946, %v1946
      %v2075 = vpack.c.b16 %v1947, %v1947
      %v2076 = vpack.c.b16 %v1948, %v1948
      %v2077 = vpack.c.b16 %v1949, %v1949
      %v2078 = vpack.c.b16 %v1950, %v1950
      %v2079 = vpack.c.b16 %v1951, %v1951
      %v2080 = vpack.c.b16 %v1952, %v1952
      %v2081 = vpack.c.b16 %v1953, %v1953
      %v2082 = vpack.c.b16 %v1954, %v1954
      %v2083 = vpack.c.b16 %v1955, %v1955
      %v2084 = vpack.c.b16 %v1956, %v1956
      %v2085 = vpack.c.b16 %v1957, %v1957
      %v2086 = vpack.c.b16 %v1958, %v1958
      %v2087 = vpack.c.b16 %v1959, %v1959
      %v2088 = vpack.c.b16 %v1960, %v1960
      %v2089 = vpack.c.b16 %v1961, %v1961
      %v2090 = vpack.c.b16 %v1962, %v1962
      %v2091 = vpack.c.b16 %v1963, %v1963
      %v2092 = vpack.c.b16 %v1964, %v1964
      %v2093 = vpack.c.b16 %v1965, %v1965
      %v2094 = vpack.c.b16 %v1966, %v1966
      %v2095 = vpack.c.b16 %v1967, %v1967
      %v2096 = vpack.c.b16 %v1968, %v1968
      %v2097 = vpack.c.b16 %v1969, %v1969
      %v2098 = vpack.c.b16 %v1970, %v1970
      %v2099 = vpack.c.b16 %v1971, %v1971
      %v2100 = vpack.c.b16 %v1972, %v1972
      %v2101 = vpack.c.b16 %v1973, %v1973
      %v2102 = vpack.c.b16 %v1974, %v1974
      %v2103 = vpack.c.b16 %v1975, %v1975
      %v2104 = vpack.c.b16 %v1976, %v1976
      %v2105 = vpack.c.b16 %v1977, %v1977
      %v2106 = vpack.c.b16 %v1978, %v1978
      %v2107 = vpack.c.b16 %v1979, %v1979
      %v2108 = vpack.c.b16 %v1980, %v1980
      %v2109 = vpack.c.b16 %v1981, %v1981
      %v2110 = vpack.c.b16 %v1982, %v1982
      %v2111 = vpack.c.b16 %v1983, %v1983
      %v2112 = vpack.c.b16 %v1984, %v1984
      %v2113 = vpack.c.b16 %v1985, %v1985
      %v2114 = vpack.c.b16 %v1986, %v1986
      %v2115 = vpack.c.b16 %v1987, %v1987
      %v2116 = vpack.c.b16 %v1988, %v1988
      %v2117 = vpack.c.b16 %v1989, %v1989
      %v2118 = vpack.c.b16 %v1990, %v1990
      %v2119 = vpack.c.b16 %v1991, %v1991
      %v2120 = vpack.c.b16 %v1992, %v1992
      %v2121 = vpack.c.b16 %v1993, %v1993
      %v2122 = vpack.c.b16 %v1994, %v1994
      %v2123 = vpack.c.b16 %v1995, %v1995
      %v2124 = vpack.c.b16 %v1996, %v1996
      %v2125 = vpack.c.b16 %v1997, %v1997
      %vm2254 = vcmask 60416
      %2255 = vst.msk [vmem:[%s145] sm:$0xf] %vm2254, %v1998
      %2256 = vst.msk [vmem:[%s145 + $0x4] sm:$0xf] %vm2254, %v1999
      %2257 = vst.msk [vmem:[%s145 + $0x8] sm:$0xf] %vm2254, %v2000
      %2258 = vst.msk [vmem:[%s145 + $0xc] sm:$0xf] %vm2254, %v2001
      %2259 = vst.msk [vmem:[%s145 + $0x10] sm:$0xf] %vm2254, %v2002
      %2260 = vst.msk [vmem:[%s145 + $0x14] sm:$0xf] %vm2254, %v2003
      %2261 = vst.msk [vmem:[%s145 + $0x18] sm:$0xf] %vm2254, %v2004
      %2262 = vst.msk [vmem:[%s145 + $0x1c] sm:$0xf] %vm2254, %v2005
      %2263 = vst.msk [vmem:[%s145 + $0x20] sm:$0xf] %vm2254, %v2006
      %2264 = vst.msk [vmem:[%s145 + $0x24] sm:$0xf] %vm2254, %v2007
      %2265 = vst.msk [vmem:[%s145 + $0x28] sm:$0xf] %vm2254, %v2008
      %2266 = vst.msk [vmem:[%s145 + $0x2c] sm:$0xf] %vm2254, %v2009
      %2267 = vst.msk [vmem:[%s145 + $0x30] sm:$0xf] %vm2254, %v2010
      %2268 = vst.msk [vmem:[%s145 + $0x34] sm:$0xf] %vm2254, %v2011
      %2269 = vst.msk [vmem:[%s145 + $0x38] sm:$0xf] %vm2254, %v2012
      %2270 = vst.msk [vmem:[%s145 + $0x3c] sm:$0xf] %vm2254, %v2013
      %2271 = vst.msk [vmem:[%s145 + $0x40] sm:$0xf] %vm2254, %v2014
      %2272 = vst.msk [vmem:[%s145 + $0x44] sm:$0xf] %vm2254, %v2015
      %2273 = vst.msk [vmem:[%s145 + $0x48] sm:$0xf] %vm2254, %v2016
      %2274 = vst.msk [vmem:[%s145 + $0x4c] sm:$0xf] %vm2254, %v2017
      %2275 = vst.msk [vmem:[%s145 + $0x50] sm:$0xf] %vm2254, %v2018
      %2276 = vst.msk [vmem:[%s145 + $0x54] sm:$0xf] %vm2254, %v2019
      %2277 = vst.msk [vmem:[%s145 + $0x58] sm:$0xf] %vm2254, %v2020
      %2278 = vst.msk [vmem:[%s145 + $0x5c] sm:$0xf] %vm2254, %v2021
      %2279 = vst.msk [vmem:[%s145 + $0x60] sm:$0xf] %vm2254, %v2022
      %2280 = vst.msk [vmem:[%s145 + $0x64] sm:$0xf] %vm2254, %v2023
      %2281 = vst.msk [vmem:[%s145 + $0x68] sm:$0xf] %vm2254, %v2024
      %2282 = vst.msk [vmem:[%s145 + $0x6c] sm:$0xf] %vm2254, %v2025
      %2283 = vst.msk [vmem:[%s145 + $0x70] sm:$0xf] %vm2254, %v2026
      %2284 = vst.msk [vmem:[%s145 + $0x74] sm:$0xf] %vm2254, %v2027
      %2285 = vst.msk [vmem:[%s145 + $0x78] sm:$0xf] %vm2254, %v2028
      %2286 = vst.msk [vmem:[%s145 + $0x7c] sm:$0xf] %vm2254, %v2029
      %2287 = vst.msk [vmem:[%s145 + $0x80] sm:$0xf] %vm2254, %v2030
      %2288 = vst.msk [vmem:[%s145 + $0x84] sm:$0xf] %vm2254, %v2031
      %2289 = vst.msk [vmem:[%s145 + $0x88] sm:$0xf] %vm2254, %v2032
      %2290 = vst.msk [vmem:[%s145 + $0x8c] sm:$0xf] %vm2254, %v2033
      %2291 = vst.msk [vmem:[%s145 + $0x90] sm:$0xf] %vm2254, %v2034
      %2292 = vst.msk [vmem:[%s145 + $0x94] sm:$0xf] %vm2254, %v2035
      %2293 = vst.msk [vmem:[%s145 + $0x98] sm:$0xf] %vm2254, %v2036
      %2294 = vst.msk [vmem:[%s145 + $0x9c] sm:$0xf] %vm2254, %v2037
      %2295 = vst.msk [vmem:[%s145 + $0xa0] sm:$0xf] %vm2254, %v2038
      %2296 = vst.msk [vmem:[%s145 + $0xa4] sm:$0xf] %vm2254, %v2039
      %2297 = vst.msk [vmem:[%s145 + $0xa8] sm:$0xf] %vm2254, %v2040
      %2298 = vst.msk [vmem:[%s145 + $0xac] sm:$0xf] %vm2254, %v2041
      %2299 = vst.msk [vmem:[%s145 + $0xb0] sm:$0xf] %vm2254, %v2042
      %2300 = vst.msk [vmem:[%s145 + $0xb4] sm:$0xf] %vm2254, %v2043
      %2301 = vst.msk [vmem:[%s145 + $0xb8] sm:$0xf] %vm2254, %v2044
      %2302 = vst.msk [vmem:[%s145 + $0xbc] sm:$0xf] %vm2254, %v2045
      %2303 = vst.msk [vmem:[%s145 + $0xc0] sm:$0xf] %vm2254, %v2046
      %2304 = vst.msk [vmem:[%s145 + $0xc4] sm:$0xf] %vm2254, %v2047
      %2305 = vst.msk [vmem:[%s145 + $0xc8] sm:$0xf] %vm2254, %v2048
      %2306 = vst.msk [vmem:[%s145 + $0xcc] sm:$0xf] %vm2254, %v2049
      %2307 = vst.msk [vmem:[%s145 + $0xd0] sm:$0xf] %vm2254, %v2050
      %2308 = vst.msk [vmem:[%s145 + $0xd4] sm:$0xf] %vm2254, %v2051
      %2309 = vst.msk [vmem:[%s145 + $0xd8] sm:$0xf] %vm2254, %v2052
      %2310 = vst.msk [vmem:[%s145 + $0xdc] sm:$0xf] %vm2254, %v2053
      %2311 = vst.msk [vmem:[%s145 + $0xe0] sm:$0xf] %vm2254, %v2054
      %2312 = vst.msk [vmem:[%s145 + $0xe4] sm:$0xf] %vm2254, %v2055
      %2313 = vst.msk [vmem:[%s145 + $0xe8] sm:$0xf] %vm2254, %v2056
      %2314 = vst.msk [vmem:[%s145 + $0xec] sm:$0xf] %vm2254, %v2057
      %2315 = vst.msk [vmem:[%s145 + $0xf0] sm:$0xf] %vm2254, %v2058
      %2316 = vst.msk [vmem:[%s145 + $0xf4] sm:$0xf] %vm2254, %v2059
      %2317 = vst.msk [vmem:[%s145 + $0xf8] sm:$0xf] %vm2254, %v2060
      %2318 = vst.msk [vmem:[%s145 + $0xfc] sm:$0xf] %vm2254, %v2061
      %2319 = vst.msk [vmem:[%s145 + $0x100] sm:$0xf] %vm2254, %v2062
      %2320 = vst.msk [vmem:[%s145 + $0x104] sm:$0xf] %vm2254, %v2063
      %2321 = vst.msk [vmem:[%s145 + $0x108] sm:$0xf] %vm2254, %v2064
      %2322 = vst.msk [vmem:[%s145 + $0x10c] sm:$0xf] %vm2254, %v2065
      %2323 = vst.msk [vmem:[%s145 + $0x110] sm:$0xf] %vm2254, %v2066
      %2324 = vst.msk [vmem:[%s145 + $0x114] sm:$0xf] %vm2254, %v2067
      %2325 = vst.msk [vmem:[%s145 + $0x118] sm:$0xf] %vm2254, %v2068
      %2326 = vst.msk [vmem:[%s145 + $0x11c] sm:$0xf] %vm2254, %v2069
      %2327 = vst.msk [vmem:[%s145 + $0x120] sm:$0xf] %vm2254, %v2070
      %2328 = vst.msk [vmem:[%s145 + $0x124] sm:$0xf] %vm2254, %v2071
      %2329 = vst.msk [vmem:[%s145 + $0x128] sm:$0xf] %vm2254, %v2072
      %2330 = vst.msk [vmem:[%s145 + $0x12c] sm:$0xf] %vm2254, %v2073
      %2331 = vst.msk [vmem:[%s145 + $0x130] sm:$0xf] %vm2254, %v2074
      %2332 = vst.msk [vmem:[%s145 + $0x134] sm:$0xf] %vm2254, %v2075
      %2333 = vst.msk [vmem:[%s145 + $0x138] sm:$0xf] %vm2254, %v2076
      %2334 = vst.msk [vmem:[%s145 + $0x13c] sm:$0xf] %vm2254, %v2077
      %2335 = vst.msk [vmem:[%s145 + $0x140] sm:$0xf] %vm2254, %v2078
      %2336 = vst.msk [vmem:[%s145 + $0x144] sm:$0xf] %vm2254, %v2079
      %2337 = vst.msk [vmem:[%s145 + $0x148] sm:$0xf] %vm2254, %v2080
      %2338 = vst.msk [vmem:[%s145 + $0x14c] sm:$0xf] %vm2254, %v2081
      %2339 = vst.msk [vmem:[%s145 + $0x150] sm:$0xf] %vm2254, %v2082
      %2340 = vst.msk [vmem:[%s145 + $0x154] sm:$0xf] %vm2254, %v2083
      %2341 = vst.msk [vmem:[%s145 + $0x158] sm:$0xf] %vm2254, %v2084
      %2342 = vst.msk [vmem:[%s145 + $0x15c] sm:$0xf] %vm2254, %v2085
      %2343 = vst.msk [vmem:[%s145 + $0x160] sm:$0xf] %vm2254, %v2086
      %2344 = vst.msk [vmem:[%s145 + $0x164] sm:$0xf] %vm2254, %v2087
      %2345 = vst.msk [vmem:[%s145 + $0x168] sm:$0xf] %vm2254, %v2088
      %2346 = vst.msk [vmem:[%s145 + $0x16c] sm:$0xf] %vm2254, %v2089
      %2347 = vst.msk [vmem:[%s145 + $0x170] sm:$0xf] %vm2254, %v2090
      %2348 = vst.msk [vmem:[%s145 + $0x174] sm:$0xf] %vm2254, %v2091
      %2349 = vst.msk [vmem:[%s145 + $0x178] sm:$0xf] %vm2254, %v2092
      %2350 = vst.msk [vmem:[%s145 + $0x17c] sm:$0xf] %vm2254, %v2093
      %2351 = vst.msk [vmem:[%s145 + $0x180] sm:$0xf] %vm2254, %v2094
      %2352 = vst.msk [vmem:[%s145 + $0x184] sm:$0xf] %vm2254, %v2095
      %2353 = vst.msk [vmem:[%s145 + $0x188] sm:$0xf] %vm2254, %v2096
      %2354 = vst.msk [vmem:[%s145 + $0x18c] sm:$0xf] %vm2254, %v2097
      %2355 = vst.msk [vmem:[%s145 + $0x190] sm:$0xf] %vm2254, %v2098
      %2356 = vst.msk [vmem:[%s145 + $0x194] sm:$0xf] %vm2254, %v2099
      %2357 = vst.msk [vmem:[%s145 + $0x198] sm:$0xf] %vm2254, %v2100
      %2358 = vst.msk [vmem:[%s145 + $0x19c] sm:$0xf] %vm2254, %v2101
      %2359 = vst.msk [vmem:[%s145 + $0x1a0] sm:$0xf] %vm2254, %v2102
      %2360 = vst.msk [vmem:[%s145 + $0x1a4] sm:$0xf] %vm2254, %v2103
      %2361 = vst.msk [vmem:[%s145 + $0x1a8] sm:$0xf] %vm2254, %v2104
      %2362 = vst.msk [vmem:[%s145 + $0x1ac] sm:$0xf] %vm2254, %v2105
      %2363 = vst.msk [vmem:[%s145 + $0x1b0] sm:$0xf] %vm2254, %v2106
      %2364 = vst.msk [vmem:[%s145 + $0x1b4] sm:$0xf] %vm2254, %v2107
      %2365 = vst.msk [vmem:[%s145 + $0x1b8] sm:$0xf] %vm2254, %v2108
      %2366 = vst.msk [vmem:[%s145 + $0x1bc] sm:$0xf] %vm2254, %v2109
      %2367 = vst.msk [vmem:[%s145 + $0x1c0] sm:$0xf] %vm2254, %v2110
      %2368 = vst.msk [vmem:[%s145 + $0x1c4] sm:$0xf] %vm2254, %v2111
      %2369 = vst.msk [vmem:[%s145 + $0x1c8] sm:$0xf] %vm2254, %v2112
      %2370 = vst.msk [vmem:[%s145 + $0x1cc] sm:$0xf] %vm2254, %v2113
      %2371 = vst.msk [vmem:[%s145 + $0x1d0] sm:$0xf] %vm2254, %v2114
      %2372 = vst.msk [vmem:[%s145 + $0x1d4] sm:$0xf] %vm2254, %v2115
      %2373 = vst.msk [vmem:[%s145 + $0x1d8] sm:$0xf] %vm2254, %v2116
      %2374 = vst.msk [vmem:[%s145 + $0x1dc] sm:$0xf] %vm2254, %v2117
      %2375 = vst.msk [vmem:[%s145 + $0x1e0] sm:$0xf] %vm2254, %v2118
      %2376 = vst.msk [vmem:[%s145 + $0x1e4] sm:$0xf] %vm2254, %v2119
      %2377 = vst.msk [vmem:[%s145 + $0x1e8] sm:$0xf] %vm2254, %v2120
      %2378 = vst.msk [vmem:[%s145 + $0x1ec] sm:$0xf] %vm2254, %v2121
      %2379 = vst.msk [vmem:[%s145 + $0x1f0] sm:$0xf] %vm2254, %v2122
      %2380 = vst.msk [vmem:[%s145 + $0x1f4] sm:$0xf] %vm2254, %v2123
      %2381 = vst.msk [vmem:[%s145 + $0x1f8] sm:$0xf] %vm2254, %v2124
      %2382 = vst.msk [vmem:[%s145 + $0x1fc] sm:$0xf] %vm2254, %v2125
      %s2383 = smul.u32 128, %s13
      %p2384 = scmp.lt.s32.totalorder %s2383, 255
      %s2385 = scalar_select %p2384, %s2383, 255
      %s2386 = smul.addr %s2385, 4
      %s2387 = scalar_lea.vmem %s2, %s2386
      // Predicated region
      $region29: #{forward.8} parent=27 // pred_check
        %p2388 = pneg %p78
      $region30: #{forward.8} parent=27 // pred_check_branch
        %2390 = sbr.rel (%p2388) target = $region32
      $region31: #{forward.8} parent=27 // pred_region
        %s2391 = smul.u32 128, %s13
      $region32: #{forward.8} parent=27 // pred_fallthru
        _
    $region28: #{forward.8} parent=5 // pred_fallthru
      _
    %p2392 = scmp.le.s32.totalorder 2, %s8
    // Predicated region
    $region33: #{forward.8} parent=5 // pred_check
      %p2393 = pneg %p2392
    $region34: #{forward.8} parent=5 // pred_check_branch
      %2395 = sbr.rel (%p2393) target = $region36
    $region35: #{forward.8} parent=5 // pred_region
      %s2396 = ssub.s32 %s8, 2
      // Predicated region
      $region37: #{forward.8} parent=35 // pred_check
        %p2397 = pneg %p84
      $region38: #{forward.8} parent=35 // pred_check_branch
        %2399 = sbr.rel (%p2397) target = $region40
      $region39: #{forward.8} parent=35 // pred_region
        %s2400 = smul.u32 128, %s14
        %p2401 = scmp.lt.s32.totalorder %s2400, 255
        %s2402 = scalar_select %p2401, %s2400, 255
        %s2403 = smul.addr %s2402, 4
        %s2404 = scalar_lea.vmem %s2, %s2403
      $region40: #{forward.8} parent=35 // pred_fallthru
        _
    $region36: #{forward.8} parent=5 // pred_fallthru
      _
  $region6: #{forward.8} parent=0 // loop_footer
    %s12 = sadd.s32 1, %s8
  $region7: #{forward.8} parent=0 // loop_footer_branch
    %7 = sbr.rel target = $region3
  $region8: #{forward.8} parent=0 // loop_exit
    _

// kernel: forward.9
$region0: #{forward.9}
  #allocation0 [shape = 'u32[]', space=smem, size = 0x4, offset = 0x4, fixed_abs, tag = 'smem constant byte address 0x4 - core index']
  #allocation1 [shape = 'u32[144,128]{1,0:T(1,128)}', space=vmem, size = 0x12000, scoped, tag = 'internal scratch']
  %s0 = inlined_call_operand.vmem [shape: bf16[512,128], index: 0, kind: input, shape index: {}]
  %s1 = inlined_call_operand.vmem [shape: bf16[128,16], index: 1, kind: input, shape index: {}]
  %s2 = inlined_call_operand.vmem [shape: bf16[512,16], index: 2, kind: output, shape index: {0}]
  %s3 = inlined_call_operand.vmem [shape: f32[2,1,16], index: 3, kind: output, shape index: {1}]
  %s4 = inlined_call_operand.vmem [shape: f32[2,1,16], index: 4, kind: output, shape index: {2}]
  %5 = xla_tuple %s2, %s3, %s4
  %s6 = sld [smem:[#allocation0]]
  $region57: #{forward.9} parent=0
    _
  %s8 = ssub.s32 1, %s6
  %s9 = scalar_select 0, %s8, %s6
  loop: start=0, step=1, limit=4
  $region2: #{forward.9} parent=0 // loop_pre_header
    _
  $region3: #{forward.9} parent=0 // loop_header
    %s11 = sphi 0, %s15
    %p12 = scmp.ge.s32.totalorder %s11, 4
    %s21 = sphi 0, %s23
    %s24 = sphi 0, %s21
    %s25 = sphi 0, %s24
    %s41 = sphi 0, %s25
    %s45 = sphi 0, %s45
    %s47 = sphi 0, %s45
    %s48 = sphi 0, %s47
    %s62 = sphi 0, %s48
    %s68 = sphi 0, %s70
    %s71 = sphi 0, %s68
    %s72 = sphi 0, %s71
    %s88 = sphi 0, %s72
    %s94 = sphi 0, %s96
    %s97 = sphi 0, %s94
    %s98 = sphi 0, %s97
    %s114 = sphi 0, %s98
    %s120 = sphi 0, %s122
    %s123 = sphi 0, %s120
    %s124 = sphi 0, %s123
    %s140 = sphi 0, %s124
  $region4: #{forward.9} parent=0 // loop_header_branch
    %14 = sbr.rel (%p12) target = $region8
  $region5: #{forward.9} parent=0 // loop_body
    %s16 = ssub.s32 %s11, 1
    %s17 = ssub.s32 %s11, 2
    %s18 = sadd.s32 %s11, 1
    %s19 = ssub.s32 %s11, %s18
    %p20 = scmp.eq.s32.totalorder %s19, 0
    %s22 = sadd.s32 %s21, 1
    %s23 = scalar_select %p20, %s21, %s22
    %p26 = pneg %p20
    %p27 = scmp.eq.s32.totalorder %s11, 1
    %p28 = por %p26, %p27
    %p29 = scmp.ne.s32.totalorder %s21, %s24
    %p30 = scmp.eq.s32.totalorder %s11, 0
    %p31 = por %p29, %p30
    %p32 = scmp.ne.s32.totalorder %s21, %s24
    %p33 = scmp.eq.s32.totalorder %s16, 1
    %p34 = por %p32, %p33
    %p35 = scmp.ne.s32.totalorder %s24, %s25
    %p36 = scmp.eq.s32.totalorder %s16, 0
    %p37 = por %p35, %p36
    %p38 = scmp.ne.s32.totalorder %s24, %s25
    %p39 = scmp.eq.s32.totalorder %s17, 1
    %p40 = por %p38, %p39
    %p42 = scmp.ne.s32.totalorder %s25, %s41
    %p43 = scmp.eq.s32.totalorder %s17, 0
    %p44 = por %p42, %p43
    %s46 = sadd.s32 %s45, 1
    %p49 = scmp.eq.s32.totalorder %s11, 1
    %p50 = scmp.ne.s32.totalorder %s45, %s47
    %p51 = scmp.eq.s32.totalorder %s11, 0
    %p52 = por %p50, %p51
    %p53 = scmp.ne.s32.totalorder %s45, %s47
    %p54 = scmp.eq.s32.totalorder %s16, 1
    %p55 = por %p53, %p54
    %p56 = scmp.ne.s32.totalorder %s47, %s48
    %p57 = scmp.eq.s32.totalorder %s16, 0
    %p58 = por %p56, %p57
    %p59 = scmp.ne.s32.totalorder %s47, %s48
    %p60 = scmp.eq.s32.totalorder %s17, 1
    %p61 = por %p59, %p60
    %p63 = scmp.ne.s32.totalorder %s48, %s62
    %p64 = scmp.eq.s32.totalorder %s17, 0
    %p65 = por %p63, %p64
    %s66 = ssub.s32 %s11, %s18
    %p67 = scmp.eq.s32.totalorder %s66, 0
    %s69 = sadd.s32 %s68, 1
    %s70 = scalar_select %p67, %s68, %s69
    %p73 = pneg %p67
    %p74 = scmp.eq.s32.totalorder %s11, 1
    %p75 = por %p73, %p74
    %p76 = scmp.ne.s32.totalorder %s68, %s71
    %p77 = scmp.eq.s32.totalorder %s11, 0
    %p78 = por %p76, %p77
    %p79 = scmp.ne.s32.totalorder %s68, %s71
    %p80 = scmp.eq.s32.totalorder %s16, 1
    %p81 = por %p79, %p80
    %p82 = scmp.ne.s32.totalorder %s71, %s72
    %p83 = scmp.eq.s32.totalorder %s16, 0
    %p84 = por %p82, %p83
    %p85 = scmp.ne.s32.totalorder %s71, %s72
    %p86 = scmp.eq.s32.totalorder %s17, 1
    %p87 = por %p85, %p86
    %p89 = scmp.ne.s32.totalorder %s72, %s88
    %p90 = scmp.eq.s32.totalorder %s17, 0
    %p91 = por %p89, %p90
    %s92 = ssub.s32 %s11, %s18
    %p93 = scmp.eq.s32.totalorder %s92, 0
    %s95 = sadd.s32 %s94, 1
    %s96 = scalar_select %p93, %s94, %s95
    %p99 = pneg %p93
    %p100 = scmp.eq.s32.totalorder %s11, 1
    %p101 = por %p99, %p100
    %p102 = scmp.ne.s32.totalorder %s94, %s97
    %p103 = scmp.eq.s32.totalorder %s11, 0
    %p104 = por %p102, %p103
    %p105 = scmp.ne.s32.totalorder %s94, %s97
    %p106 = scmp.eq.s32.totalorder %s16, 1
    %p107 = por %p105, %p106
    %p108 = scmp.ne.s32.totalorder %s97, %s98
    %p109 = scmp.eq.s32.totalorder %s16, 0
    %p110 = por %p108, %p109
    %p111 = scmp.ne.s32.totalorder %s97, %s98
    %p112 = scmp.eq.s32.totalorder %s17, 1
    %p113 = por %p111, %p112
    %p115 = scmp.ne.s32.totalorder %s98, %s114
    %p116 = scmp.eq.s32.totalorder %s17, 0
    %p117 = por %p115, %p116
    %s118 = ssub.s32 %s11, %s18
    %p119 = scmp.eq.s32.totalorder %s118, 0
    %s121 = sadd.s32 %s120, 1
    %s122 = scalar_select %p119, %s120, %s121
    %p125 = pneg %p119
    %p126 = scmp.eq.s32.totalorder %s11, 1
    %p127 = por %p125, %p126
    %p128 = scmp.ne.s32.totalorder %s120, %s123
    %p129 = scmp.eq.s32.totalorder %s11, 0
    %p130 = por %p128, %p129
    %p131 = scmp.ne.s32.totalorder %s120, %s123
    %p132 = scmp.eq.s32.totalorder %s16, 1
    %p133 = por %p131, %p132
    %p134 = scmp.ne.s32.totalorder %s123, %s124
    %p135 = scmp.eq.s32.totalorder %s16, 0
    %p136 = por %p134, %p135
    %p137 = scmp.ne.s32.totalorder %s123, %s124
    %p138 = scmp.eq.s32.totalorder %s17, 1
    %p139 = por %p137, %p138
    %p141 = scmp.ne.s32.totalorder %s124, %s140
    %p142 = scmp.eq.s32.totalorder %s17, 0
    %p143 = por %p141, %p142
    %p144 = scmp.le.s32.totalorder 1, %s11
    %p145 = scmp.lt.s32.totalorder %s11, 3
    %p146 = pnand %p144, %p145
    %p147 = pneg %p146
    // Predicated region
    $region9: #{forward.9} parent=5 // pred_check
      _
    $region10: #{forward.9} parent=5 // pred_check_branch
      %149 = sbr.rel (%p146) target = $region12
    $region11: #{forward.9} parent=5 // pred_region
      %s150 = ssub.s32 %s11, 1
      // Predicated region
      $region13: #{forward.9} parent=11 // pred_check
        %p151 = pneg %p58
      $region14: #{forward.9} parent=11 // pred_check_branch
        %153 = sbr.rel (%p151) target = $region16
      $region15: #{forward.9} parent=11 // pred_region
        _
      $region16: #{forward.9} parent=11 // pred_fallthru
        _
    $region12: #{forward.9} parent=5 // pred_fallthru
      _
    %p154 = scmp.lt.s32.totalorder %s11, 2
    // Predicated region
    $region17: #{forward.9} parent=5 // pred_check
      %p155 = pneg %p154
    $region18: #{forward.9} parent=5 // pred_check_branch
      %157 = sbr.rel (%p155) target = $region20
    $region19: #{forward.9} parent=5 // pred_region
      // Predicated region
      $region21: #{forward.9} parent=19 // pred_check
        %p158 = pneg %p31
      $region22: #{forward.9} parent=19 // pred_check_branch
        %160 = sbr.rel (%p158) target = $region24
      $region23: #{forward.9} parent=19 // pred_region
        %s161 = smul.u32 32, %s11
        %p162 = scmp.lt.s32.totalorder %s161, 63
        %s163 = scalar_select %p162, %s161, 63
        %s164 = smul.addr %s163, 4
        %s165 = scalar_lea.vmem %s0, %s164
        %s166 = smul.u32 32, %s11
      $region24: #{forward.9} parent=19 // pred_fallthru
        _
    $region20: #{forward.9} parent=5 // pred_fallthru
      _
    %p167 = scmp.le.s32.totalorder 1, %s11
    %p168 = scmp.lt.s32.totalorder %s11, 3
    %p169 = pnand %p167, %p168
    %p170 = pneg %p169
    // Predicated region
    $region25: #{forward.9} parent=5 // pred_check
      _
    $region26: #{forward.9} parent=5 // pred_check_branch
      %172 = sbr.rel (%p169) target = $region28
    $region27: #{forward.9} parent=5 // pred_region
      %s173 = ssub.s32 %s11, 1
      %s174 = smul.u32 32, %s16
      %p175 = scmp.lt.s32.totalorder %s174, 63
      %s176 = scalar_select %p175, %s174, 63
      %s177 = smul.addr %s176, 4
      %s178 = scalar_lea.vmem %s0, %s177
      %p179 = pneg %p37
      %p180 = pneg %p34
      %p181 = pneg %p58
      %p182 = pneg %p55
      %p183 = pneg %p84
      %p184 = pneg %p81
      %s185 = smul.u32 32, %s16
      %p186 = scmp.lt.s32.totalorder %s185, 63
      %s187 = scalar_select %p186, %s185, 63
      %s188 = smul.addr %s187, 4
      %s189 = scalar_lea.vmem %s2, %s188
      %p190 = pneg %p110
      %p191 = pneg %p107
      %p192 = scmp.lt.s32.totalorder %s16, 1
      %s193 = scalar_select %p192, %s16, 1
      %s194 = scalar_lea.vmem %s3, %s193
      %p195 = pneg %p136
      %p196 = pneg %p133
      %p197 = scmp.lt.s32.totalorder %s16, 1
      %s198 = scalar_select %p197, %s16, 1
      %s199 = scalar_lea.vmem %s4, %s198
      %s200 = smul.u32 32, %s16
      %p201 = scmp.lt.s32.totalorder %s200, 63
      %s202 = scalar_select %p201, %s200, 63
      %s203 = smul.addr %s202, 4
      %s204 = scalar_lea.vmem %s0, %s203
      %s205 = smul.u32 32, %s16
      %s206 = smul.u32 32, %s16
      %p207 = scmp.lt.s32.totalorder %s206, 63
      %s208 = scalar_select %p207, %s206, 63
      %s209 = smul.addr %s208, 4
      %s210 = scalar_lea.vmem %s2, %s209
      %s211 = smul.u32 32, %s16
      %p212 = scmp.lt.s32.totalorder %s16, 1
      %s213 = scalar_select %p212, %s16, 1
      %s214 = scalar_lea.vmem %s3, %s213
      %p215 = scmp.lt.s32.totalorder %s16, 1
      %s216 = scalar_select %p215, %s16, 1
      %s217 = scalar_lea.vmem %s4, %s216
      %v219 = vld [vmem:[%s204] sm:$0xf]
      %v220 = vld [vmem:[%s204 + $0x4] sm:$0xf]
      %v221 = vld [vmem:[%s204 + $0x8] sm:$0xf]
      %v222 = vld [vmem:[%s204 + $0xc] sm:$0xf]
      %v223 = vld [vmem:[%s204 + $0x10] sm:$0xf]
      %v224 = vld [vmem:[%s204 + $0x14] sm:$0xf]
      %v225 = vld [vmem:[%s204 + $0x18] sm:$0xf]
      %v226 = vld [vmem:[%s204 + $0x1c] sm:$0xf]
      %v227 = vld [vmem:[%s204 + $0x20] sm:$0xf]
      %v228 = vld [vmem:[%s204 + $0x24] sm:$0xf]
      %v229 = vld [vmem:[%s204 + $0x28] sm:$0xf]
      %v230 = vld [vmem:[%s204 + $0x2c] sm:$0xf]
      %v231 = vld [vmem:[%s204 + $0x30] sm:$0xf]
      %v232 = vld [vmem:[%s204 + $0x34] sm:$0xf]
      %v233 = vld [vmem:[%s204 + $0x38] sm:$0xf]
      %v234 = vld [vmem:[%s204 + $0x3c] sm:$0xf]
      %v235 = vld [vmem:[%s204 + $0x40] sm:$0xf]
      %v236 = vld [vmem:[%s204 + $0x44] sm:$0xf]
      %v237 = vld [vmem:[%s204 + $0x48] sm:$0xf]
      %v238 = vld [vmem:[%s204 + $0x4c] sm:$0xf]
      %v239 = vld [vmem:[%s204 + $0x50] sm:$0xf]
      %v240 = vld [vmem:[%s204 + $0x54] sm:$0xf]
      %v241 = vld [vmem:[%s204 + $0x58] sm:$0xf]
      %v242 = vld [vmem:[%s204 + $0x5c] sm:$0xf]
      %v243 = vld [vmem:[%s204 + $0x60] sm:$0xf]
      %v244 = vld [vmem:[%s204 + $0x64] sm:$0xf]
      %v245 = vld [vmem:[%s204 + $0x68] sm:$0xf]
      %v246 = vld [vmem:[%s204 + $0x6c] sm:$0xf]
      %v247 = vld [vmem:[%s204 + $0x70] sm:$0xf]
      %v248 = vld [vmem:[%s204 + $0x74] sm:$0xf]
      %v249 = vld [vmem:[%s204 + $0x78] sm:$0xf]
      %v250 = vld [vmem:[%s204 + $0x7c] sm:$0xf]
      %v251 = vld [vmem:[%s1] sm:$0xf]
      %v252 = vld [vmem:[%s1 + $0x4] sm:$0xf]
      %v253 = vld [vmem:[%s1 + $0x8] sm:$0xf]
      %v254 = vld [vmem:[%s1 + $0xc] sm:$0xf]
      %v255 = vld [vmem:[%s1 + $0x10] sm:$0xf]
      %v256 = vld [vmem:[%s1 + $0x14] sm:$0xf]
      %v257 = vld [vmem:[%s1 + $0x18] sm:$0xf]
      %v258 = vld [vmem:[%s1 + $0x1c] sm:$0xf]
      %v259 = vld [vmem:[%s1 + $0x20] sm:$0xf]
      %v260 = vld [vmem:[%s1 + $0x24] sm:$0xf]
      %v261 = vld [vmem:[%s1 + $0x28] sm:$0xf]
      %v262 = vld [vmem:[%s1 + $0x2c] sm:$0xf]
      %v263 = vld [vmem:[%s1 + $0x30] sm:$0xf]
      %v264 = vld [vmem:[%s1 + $0x34] sm:$0xf]
      %v265 = vld [vmem:[%s1 + $0x38] sm:$0xf]
      %v266 = vld [vmem:[%s1 + $0x3c] sm:$0xf]
      %v299 = vunpack.c.l.b16 %v219
      %v300 = vunpack.c.l.b16 %v220
      %v301 = vunpack.c.l.b16 %v221
      %v302 = vunpack.c.l.b16 %v222
      %v303 = vunpack.c.l.b16 %v223
      %v304 = vunpack.c.l.b16 %v224
      %v305 = vunpack.c.l.b16 %v225
      %v306 = vunpack.c.l.b16 %v226
      %v307 = vunpack.c.l.b16 %v227
      %v308 = vunpack.c.l.b16 %v228
      %v309 = vunpack.c.l.b16 %v229
      %v310 = vunpack.c.l.b16 %v230
      %v311 = vunpack.c.l.b16 %v231
      %v312 = vunpack.c.l.b16 %v232
      %v313 = vunpack.c.l.b16 %v233
      %v314 = vunpack.c.l.b16 %v234
      %v315 = vunpack.c.l.b16 %v235
      %v316 = vunpack.c.l.b16 %v236
      %v317 = vunpack.c.l.b16 %v237
      %v318 = vunpack.c.l.b16 %v238
      %v319 = vunpack.c.l.b16 %v239
      %v320 = vunpack.c.l.b16 %v240
      %v321 = vunpack.c.l.b16 %v241
      %v322 = vunpack.c.l.b16 %v242
      %v323 = vunpack.c.l.b16 %v243
      %v324 = vunpack.c.l.b16 %v244
      %v325 = vunpack.c.l.b16 %v245
      %v326 = vunpack.c.l.b16 %v246
      %v327 = vunpack.c.l.b16 %v247
      %v328 = vunpack.c.l.b16 %v248
      %v329 = vunpack.c.l.b16 %v249
      %v330 = vunpack.c.l.b16 %v250
      %v331 = vpack.c.b16 %v300, %v299
      %v332 = vpack.c.b16 %v302, %v301
      %v333 = vpack.c.b16 %v304, %v303
      %v334 = vpack.c.b16 %v306, %v305
      %v335 = vpack.c.b16 %v308, %v307
      %v336 = vpack.c.b16 %v310, %v309
      %v337 = vpack.c.b16 %v312, %v311
      %v338 = vpack.c.b16 %v314, %v313
      %v339 = vpack.c.b16 %v316, %v315
      %v340 = vpack.c.b16 %v318, %v317
      %v341 = vpack.c.b16 %v320, %v319
      %v342 = vpack.c.b16 %v322, %v321
      %v343 = vpack.c.b16 %v324, %v323
      %v344 = vpack.c.b16 %v326, %v325
      %v345 = vpack.c.b16 %v328, %v327
      %v346 = vpack.c.b16 %v330, %v329
      %v379 = vunpack.c.l.b16 %v251
      %v380 = vunpack.c.l.b16 %v252
      %v381 = vunpack.c.l.b16 %v253
      %v382 = vunpack.c.l.b16 %v254
      %v383 = vunpack.c.l.b16 %v255
      %v384 = vunpack.c.l.b16 %v256
      %v385 = vunpack.c.l.b16 %v257
      %v386 = vunpack.c.l.b16 %v258
      %v387 = vunpack.c.l.b16 %v259
      %v388 = vunpack.c.l.b16 %v260
      %v389 = vunpack.c.l.b16 %v261
      %v390 = vunpack.c.l.b16 %v262
      %v391 = vunpack.c.l.b16 %v263
      %v392 = vunpack.c.l.b16 %v264
      %v393 = vunpack.c.l.b16 %v265
      %v394 = vunpack.c.l.b16 %v266
      %v395 = vpack.c.b16 %v380, %v379
      %v396 = vpack.c.b16 %v382, %v381
      %v397 = vpack.c.b16 %v384, %v383
      %v398 = vpack.c.b16 %v386, %v385
      %v399 = vpack.c.b16 %v388, %v387
      %v400 = vpack.c.b16 %v390, %v389
      %v401 = vpack.c.b16 %v392, %v391
      %v402 = vpack.c.b16 %v394, %v393
      %411 = vmatprep.subr.bf16.mxu0 0
      %412 = vmatpush1.bf16.msra.mxu0 %v402
      %413 = vmatprep.subr.bf16.mxu0 0
      %414 = vmatpush1.bf16.msra.mxu0 %v401
      %415 = vmatprep.subr.bf16.mxu0 0
      %416 = vmatpush1.bf16.msra.mxu0 %v400
      %417 = vmatprep.subr.bf16.mxu0 0
      %418 = vmatpush1.bf16.msra.mxu0 %v399
      %419 = vmatprep.subr.bf16.mxu0 0
      %420 = vmatpush1.bf16.msra.mxu0 %v398
      %421 = vmatprep.subr.bf16.mxu0 0
      %422 = vmatpush1.bf16.msra.mxu0 %v397
      %423 = vmatprep.subr.bf16.mxu0 0
      %424 = vmatpush1.bf16.msra.mxu0 %v396
      %425 = vmatprep.subr.bf16.mxu0 0
      %426 = vmatpush1.bf16.msra.mxu0 %v395
      %427 = vmatprep.subr.bf16.mxu0 0
      %428 = vmatpush2.bf16.msra.mxu0 0
      %429 = vmatprep.subr.bf16.mxu0 0
      %430 = vmatpush2.bf16.msra.mxu0 0
      %431 = vmatprep.subr.bf16.mxu0 0
      %432 = vmatpush2.bf16.msra.mxu0 0
      %433 = vmatprep.subr.bf16.mxu0 0
      %434 = vmatpush2.bf16.msra.mxu0 0
      %435 = vmatprep.subr.bf16.mxu0 0
      %436 = vmatpush2.bf16.msra.mxu0 0
      %437 = vmatprep.subr.bf16.mxu0 0
      %438 = vmatpush2.bf16.msra.mxu0 0
      %439 = vmatprep.subr.bf16.mxu0 0
      %440 = vmatpush2.bf16.msra.mxu0 0
      %441 = vmatprep.subr.bf16.mxu0 0
      %442 = vmatpush2.bf16.msra.mxu0 0
      %443 = vmatprep.mubr.bf16.mxu0 0
      %444 = vmatmul.mubr.bf16.gmra.mxu0 %v331
      %v445 = vpop.f32.mrf.mxu0
      %v446 = vadd.f32 0.0, %v445
      %v447 = vpop.f32.mrf.mxu0
      %v448 = vpop.f32.mrf.mxu0
      %v449 = vadd.f32 0.0, %v448
      %v450 = vpop.f32.mrf.mxu0
      %451 = vmatprep.mubr.bf16.mxu0 0
      %452 = vmatmul.mubr.bf16.gmra.mxu0 %v332
      %v453 = vpop.f32.mrf.mxu0
      %v454 = vadd.f32 0.0, %v453
      %v455 = vpop.f32.mrf.mxu0
      %v456 = vpop.f32.mrf.mxu0
      %v457 = vadd.f32 0.0, %v456
      %v458 = vpop.f32.mrf.mxu0
      %459 = vmatprep.mubr.bf16.mxu0 0
      %460 = vmatmul.mubr.bf16.gmra.mxu0 %v333
      %v461 = vpop.f32.mrf.mxu0
      %v462 = vadd.f32 0.0, %v461
      %v463 = vpop.f32.mrf.mxu0
      %v464 = vpop.f32.mrf.mxu0
      %v465 = vadd.f32 0.0, %v464
      %v466 = vpop.f32.mrf.mxu0
      %467 = vmatprep.mubr.bf16.mxu0 0
      %468 = vmatmul.mubr.bf16.gmra.mxu0 %v334
      %v469 = vpop.f32.mrf.mxu0
      %v470 = vadd.f32 0.0, %v469
      %v471 = vpop.f32.mrf.mxu0
      %v472 = vpop.f32.mrf.mxu0
      %v473 = vadd.f32 0.0, %v472
      %v474 = vpop.f32.mrf.mxu0
      %475 = vmatprep.mubr.bf16.mxu0 0
      %476 = vmatmul.mubr.bf16.gmra.mxu0 %v335
      %v477 = vpop.f32.mrf.mxu0
      %v478 = vadd.f32 0.0, %v477
      %v479 = vpop.f32.mrf.mxu0
      %v480 = vpop.f32.mrf.mxu0
      %v481 = vadd.f32 0.0, %v480
      %v482 = vpop.f32.mrf.mxu0
      %483 = vmatprep.mubr.bf16.mxu0 0
      %484 = vmatmul.mubr.bf16.gmra.mxu0 %v336
      %v485 = vpop.f32.mrf.mxu0
      %v486 = vadd.f32 0.0, %v485
      %v487 = vpop.f32.mrf.mxu0
      %v488 = vpop.f32.mrf.mxu0
      %v489 = vadd.f32 0.0, %v488
      %v490 = vpop.f32.mrf.mxu0
      %491 = vmatprep.mubr.bf16.mxu0 0
      %492 = vmatmul.mubr.bf16.gmra.mxu0 %v337
      %v493 = vpop.f32.mrf.mxu0
      %v494 = vadd.f32 0.0, %v493
      %v495 = vpop.f32.mrf.mxu0
      %v496 = vpop.f32.mrf.mxu0
      %v497 = vadd.f32 0.0, %v496
      %v498 = vpop.f32.mrf.mxu0
      %499 = vmatprep.mubr.bf16.mxu0 0
      %500 = vmatmul.mubr.bf16.gmra.mxu0 %v338
      %v501 = vpop.f32.mrf.mxu0
      %v502 = vadd.f32 0.0, %v501
      %v503 = vpop.f32.mrf.mxu0
      %v504 = vpop.f32.mrf.mxu0
      %v505 = vadd.f32 0.0, %v504
      %v506 = vpop.f32.mrf.mxu0
      %507 = vmatprep.mubr.bf16.mxu0 0
      %508 = vmatmul.mubr.bf16.gmra.mxu0 %v339
      %v509 = vpop.f32.mrf.mxu0
      %v510 = vadd.f32 0.0, %v509
      %v511 = vpop.f32.mrf.mxu0
      %v512 = vpop.f32.mrf.mxu0
      %v513 = vadd.f32 0.0, %v512
      %v514 = vpop.f32.mrf.mxu0
      %515 = vmatprep.mubr.bf16.mxu0 0
      %516 = vmatmul.mubr.bf16.gmra.mxu0 %v340
      %v517 = vpop.f32.mrf.mxu0
      %v518 = vadd.f32 0.0, %v517
      %v519 = vpop.f32.mrf.mxu0
      %v520 = vpop.f32.mrf.mxu0
      %v521 = vadd.f32 0.0, %v520
      %v522 = vpop.f32.mrf.mxu0
      %523 = vmatprep.mubr.bf16.mxu0 0
      %524 = vmatmul.mubr.bf16.gmra.mxu0 %v341
      %v525 = vpop.f32.mrf.mxu0
      %v526 = vadd.f32 0.0, %v525
      %v527 = vpop.f32.mrf.mxu0
      %v528 = vpop.f32.mrf.mxu0
      %v529 = vadd.f32 0.0, %v528
      %v530 = vpop.f32.mrf.mxu0
      %531 = vmatprep.mubr.bf16.mxu0 0
      %532 = vmatmul.mubr.bf16.gmra.mxu0 %v342
      %v533 = vpop.f32.mrf.mxu0
      %v534 = vadd.f32 0.0, %v533
      %v535 = vpop.f32.mrf.mxu0
      %v536 = vpop.f32.mrf.mxu0
      %v537 = vadd.f32 0.0, %v536
      %v538 = vpop.f32.mrf.mxu0
      %539 = vmatprep.mubr.bf16.mxu0 0
      %540 = vmatmul.mubr.bf16.gmra.mxu0 %v343
      %v541 = vpop.f32.mrf.mxu0
      %v542 = vadd.f32 0.0, %v541
      %v543 = vpop.f32.mrf.mxu0
      %v544 = vpop.f32.mrf.mxu0
      %v545 = vadd.f32 0.0, %v544
      %v546 = vpop.f32.mrf.mxu0
      %547 = vmatprep.mubr.bf16.mxu0 0
      %548 = vmatmul.mubr.bf16.gmra.mxu0 %v344
      %v549 = vpop.f32.mrf.mxu0
      %v550 = vadd.f32 0.0, %v549
      %v551 = vpop.f32.mrf.mxu0
      %v552 = vpop.f32.mrf.mxu0
      %v553 = vadd.f32 0.0, %v552
      %v554 = vpop.f32.mrf.mxu0
      %555 = vmatprep.mubr.bf16.mxu0 0
      %556 = vmatmul.mubr.bf16.gmra.mxu0 %v345
      %v557 = vpop.f32.mrf.mxu0
      %v558 = vadd.f32 0.0, %v557
      %v559 = vpop.f32.mrf.mxu0
      %v560 = vpop.f32.mrf.mxu0
      %v561 = vadd.f32 0.0, %v560
      %v562 = vpop.f32.mrf.mxu0
      %563 = vmatprep.mubr.bf16.mxu0 0
      %564 = vmatmul.mubr.bf16.gmra.mxu0 %v346
      %v565 = vpop.f32.mrf.mxu0
      %v566 = vadd.f32 0.0, %v565
      %v567 = vpop.f32.mrf.mxu0
      %v568 = vpop.f32.mrf.mxu0
      %v569 = vadd.f32 0.0, %v568
      %v570 = vpop.f32.mrf.mxu0
      %571 = vdwg.mxu0
      %v572 = vpack.c.bf16 %v449, %v446
      %v573 = vpack.c.bf16 %v457, %v454
      %v574 = vpack.c.bf16 %v465, %v462
      %v575 = vpack.c.bf16 %v473, %v470
      %v576 = vpack.c.bf16 %v481, %v478
      %v577 = vpack.c.bf16 %v489, %v486
      %v578 = vpack.c.bf16 %v497, %v494
      %v579 = vpack.c.bf16 %v505, %v502
      %v580 = vpack.c.bf16 %v513, %v510
      %v581 = vpack.c.bf16 %v521, %v518
      %v582 = vpack.c.bf16 %v529, %v526
      %v583 = vpack.c.bf16 %v537, %v534
      %v584 = vpack.c.bf16 %v545, %v542
      %v585 = vpack.c.bf16 %v553, %v550
      %v586 = vpack.c.bf16 %v561, %v558
      %v587 = vpack.c.bf16 %v569, %v566
      %v604 = vunpack.c.l.b16 %v572
      %v605 = vunpack.c.h.b16 %v572
      %v606 = vunpack.c.l.b16 %v573
      %v607 = vunpack.c.h.b16 %v573
      %v608 = vunpack.c.l.b16 %v574
      %v609 = vunpack.c.h.b16 %v574
      %v610 = vunpack.c.l.b16 %v575
      %v611 = vunpack.c.h.b16 %v575
      %v612 = vunpack.c.l.b16 %v576
      %v613 = vunpack.c.h.b16 %v576
      %v614 = vunpack.c.l.b16 %v577
      %v615 = vunpack.c.h.b16 %v577
      %v616 = vunpack.c.l.b16 %v578
      %v617 = vunpack.c.h.b16 %v578
      %v618 = vunpack.c.l.b16 %v579
      %v619 = vunpack.c.h.b16 %v579
      %v620 = vunpack.c.l.b16 %v580
      %v621 = vunpack.c.h.b16 %v580
      %v622 = vunpack.c.l.b16 %v581
      %v623 = vunpack.c.h.b16 %v581
      %v624 = vunpack.c.l.b16 %v582
      %v625 = vunpack.c.h.b16 %v582
      %v626 = vunpack.c.l.b16 %v583
      %v627 = vunpack.c.h.b16 %v583
      %v628 = vunpack.c.l.b16 %v584
      %v629 = vunpack.c.h.b16 %v584
      %v630 = vunpack.c.l.b16 %v585
      %v631 = vunpack.c.h.b16 %v585
      %v632 = vunpack.c.l.b16 %v586
      %v633 = vunpack.c.h.b16 %v586
      %v634 = vunpack.c.l.b16 %v587
      %v635 = vunpack.c.h.b16 %v587
      %v636 = vpack.c.b16 %v604, %v604
      %v637 = vpack.c.b16 %v605, %v605
      %v638 = vpack.c.b16 %v606, %v606
      %v639 = vpack.c.b16 %v607, %v607
      %v640 = vpack.c.b16 %v608, %v608
      %v641 = vpack.c.b16 %v609, %v609
      %v642 = vpack.c.b16 %v610, %v610
      %v643 = vpack.c.b16 %v611, %v611
      %v644 = vpack.c.b16 %v612, %v612
      %v645 = vpack.c.b16 %v613, %v613
      %v646 = vpack.c.b16 %v614, %v614
      %v647 = vpack.c.b16 %v615, %v615
      %v648 = vpack.c.b16 %v616, %v616
      %v649 = vpack.c.b16 %v617, %v617
      %v650 = vpack.c.b16 %v618, %v618
      %v651 = vpack.c.b16 %v619, %v619
      %v652 = vpack.c.b16 %v620, %v620
      %v653 = vpack.c.b16 %v621, %v621
      %v654 = vpack.c.b16 %v622, %v622
      %v655 = vpack.c.b16 %v623, %v623
      %v656 = vpack.c.b16 %v624, %v624
      %v657 = vpack.c.b16 %v625, %v625
      %v658 = vpack.c.b16 %v626, %v626
      %v659 = vpack.c.b16 %v627, %v627
      %v660 = vpack.c.b16 %v628, %v628
      %v661 = vpack.c.b16 %v629, %v629
      %v662 = vpack.c.b16 %v630, %v630
      %v663 = vpack.c.b16 %v631, %v631
      %v664 = vpack.c.b16 %v632, %v632
      %v665 = vpack.c.b16 %v633, %v633
      %v666 = vpack.c.b16 %v634, %v634
      %v667 = vpack.c.b16 %v635, %v635
      %vm700 = vcmask 125952
      %701 = vst.msk [vmem:[%s210] sm:$0xf] %vm700, %v636
      %702 = vst.msk [vmem:[%s210 + $0x4] sm:$0xf] %vm700, %v637
      %703 = vst.msk [vmem:[%s210 + $0x8] sm:$0xf] %vm700, %v638
      %704 = vst.msk [vmem:[%s210 + $0xc] sm:$0xf] %vm700, %v639
      %705 = vst.msk [vmem:[%s210 + $0x10] sm:$0xf] %vm700, %v640
      %706 = vst.msk [vmem:[%s210 + $0x14] sm:$0xf] %vm700, %v641
      %707 = vst.msk [vmem:[%s210 + $0x18] sm:$0xf] %vm700, %v642
      %708 = vst.msk [vmem:[%s210 + $0x1c] sm:$0xf] %vm700, %v643
      %709 = vst.msk [vmem:[%s210 + $0x20] sm:$0xf] %vm700, %v644
      %710 = vst.msk [vmem:[%s210 + $0x24] sm:$0xf] %vm700, %v645
      %711 = vst.msk [vmem:[%s210 + $0x28] sm:$0xf] %vm700, %v646
      %712 = vst.msk [vmem:[%s210 + $0x2c] sm:$0xf] %vm700, %v647
      %713 = vst.msk [vmem:[%s210 + $0x30] sm:$0xf] %vm700, %v648
      %714 = vst.msk [vmem:[%s210 + $0x34] sm:$0xf] %vm700, %v649
      %715 = vst.msk [vmem:[%s210 + $0x38] sm:$0xf] %vm700, %v650
      %716 = vst.msk [vmem:[%s210 + $0x3c] sm:$0xf] %vm700, %v651
      %717 = vst.msk [vmem:[%s210 + $0x40] sm:$0xf] %vm700, %v652
      %718 = vst.msk [vmem:[%s210 + $0x44] sm:$0xf] %vm700, %v653
      %719 = vst.msk [vmem:[%s210 + $0x48] sm:$0xf] %vm700, %v654
      %720 = vst.msk [vmem:[%s210 + $0x4c] sm:$0xf] %vm700, %v655
      %721 = vst.msk [vmem:[%s210 + $0x50] sm:$0xf] %vm700, %v656
      %722 = vst.msk [vmem:[%s210 + $0x54] sm:$0xf] %vm700, %v657
      %723 = vst.msk [vmem:[%s210 + $0x58] sm:$0xf] %vm700, %v658
      %724 = vst.msk [vmem:[%s210 + $0x5c] sm:$0xf] %vm700, %v659
      %725 = vst.msk [vmem:[%s210 + $0x60] sm:$0xf] %vm700, %v660
      %726 = vst.msk [vmem:[%s210 + $0x64] sm:$0xf] %vm700, %v661
      %727 = vst.msk [vmem:[%s210 + $0x68] sm:$0xf] %vm700, %v662
      %728 = vst.msk [vmem:[%s210 + $0x6c] sm:$0xf] %vm700, %v663
      %729 = vst.msk [vmem:[%s210 + $0x70] sm:$0xf] %vm700, %v664
      %730 = vst.msk [vmem:[%s210 + $0x74] sm:$0xf] %vm700, %v665
      %731 = vst.msk [vmem:[%s210 + $0x78] sm:$0xf] %vm700, %v666
      %732 = vst.msk [vmem:[%s210 + $0x7c] sm:$0xf] %vm700, %v667
      %vm733 = vcmask 130048
      %v734 = vsel %vm733, %v446, 0.0
      %v735 = vsel %vm733, %v449, 0.0
      %v736 = vadd.f32 %v734, %v735
      %v737 = vsel %vm733, %v454, 0.0
      %v738 = vadd.f32 %v736, %v737
      %v739 = vsel %vm733, %v457, 0.0
      %v740 = vadd.f32 %v738, %v739
      %v741 = vsel %vm733, %v462, 0.0
      %v742 = vadd.f32 %v740, %v741
      %v743 = vsel %vm733, %v465, 0.0
      %v744 = vadd.f32 %v742, %v743
      %v745 = vsel %vm733, %v470, 0.0
      %v746 = vadd.f32 %v744, %v745
      %v747 = vsel %vm733, %v473, 0.0
      %v748 = vadd.f32 %v746, %v747
      %v749 = vsel %vm733, %v478, 0.0
      %v750 = vadd.f32 %v748, %v749
      %v751 = vsel %vm733, %v481, 0.0
      %v752 = vadd.f32 %v750, %v751
      %v753 = vsel %vm733, %v486, 0.0
      %v754 = vadd.f32 %v752, %v753
      %v755 = vsel %vm733, %v489, 0.0
      %v756 = vadd.f32 %v754, %v755
      %v757 = vsel %vm733, %v494, 0.0
      %v758 = vadd.f32 %v756, %v757
      %v759 = vsel %vm733, %v497, 0.0
      %v760 = vadd.f32 %v758, %v759
      %v761 = vsel %vm733, %v502, 0.0
      %v762 = vadd.f32 %v760, %v761
      %v763 = vsel %vm733, %v505, 0.0
      %v764 = vadd.f32 %v762, %v763
      %v765 = vsel %vm733, %v510, 0.0
      %v766 = vadd.f32 %v764, %v765
      %v767 = vsel %vm733, %v513, 0.0
      %v768 = vadd.f32 %v766, %v767
      %v769 = vsel %vm733, %v518, 0.0
      %v770 = vadd.f32 %v768, %v769
      %v771 = vsel %vm733, %v521, 0.0
      %v772 = vadd.f32 %v770, %v771
      %v773 = vsel %vm733, %v526, 0.0
      %v774 = vadd.f32 %v772, %v773
      %v775 = vsel %vm733, %v529, 0.0
      %v776 = vadd.f32 %v774, %v775
      %v777 = vsel %vm733, %v534, 0.0
      %v778 = vadd.f32 %v776, %v777
      %v779 = vsel %vm733, %v537, 0.0
      %v780 = vadd.f32 %v778, %v779
      %v781 = vsel %vm733, %v542, 0.0
      %v782 = vadd.f32 %v780, %v781
      %v783 = vsel %vm733, %v545, 0.0
      %v784 = vadd.f32 %v782, %v783
      %v785 = vsel %vm733, %v550, 0.0
      %v786 = vadd.f32 %v784, %v785
      %v787 = vsel %vm733, %v553, 0.0
      %v788 = vadd.f32 %v786, %v787
      %v789 = vsel %vm733, %v558, 0.0
      %v790 = vadd.f32 %v788, %v789
      %v791 = vsel %vm733, %v561, 0.0
      %v792 = vadd.f32 %v790, %v791
      %v793 = vsel %vm733, %v566, 0.0
      %v794 = vadd.f32 %v792, %v793
      %v795 = vsel %vm733, %v569, 0.0
      %v796 = vadd.f32 %v794, %v795
      %v797 = vrot.slane %v796, 4
      %v798 = vadd.f32 %v796, %v797
      %v799 = vrot.slane %v798, 2
      %v800 = vadd.f32 %v798, %v799
      %v801 = vrot.slane %v800, 1
      %v802 = vadd.f32 %v800, %v801
      %vm803 = vcmask 122880
      %804 = vst.msk [vmem:[%s214] sm:$0x1] %vm803, %v802
      %v805 = vmul.f32 %v446, %v446
      %v806 = vmul.f32 %v449, %v449
      %v807 = vmul.f32 %v454, %v454
      %v808 = vmul.f32 %v457, %v457
      %v809 = vmul.f32 %v462, %v462
      %v810 = vmul.f32 %v465, %v465
      %v811 = vmul.f32 %v470, %v470
      %v812 = vmul.f32 %v473, %v473
      %v813 = vmul.f32 %v478, %v478
      %v814 = vmul.f32 %v481, %v481
      %v815 = vmul.f32 %v486, %v486
      %v816 = vmul.f32 %v489, %v489
      %v817 = vmul.f32 %v494, %v494
      %v818 = vmul.f32 %v497, %v497
      %v819 = vmul.f32 %v502, %v502
      %v820 = vmul.f32 %v505, %v505
      %v821 = vmul.f32 %v510, %v510
      %v822 = vmul.f32 %v513, %v513
      %v823 = vmul.f32 %v518, %v518
      %v824 = vmul.f32 %v521, %v521
      %v825 = vmul.f32 %v526, %v526
      %v826 = vmul.f32 %v529, %v529
      %v827 = vmul.f32 %v534, %v534
      %v828 = vmul.f32 %v537, %v537
      %v829 = vmul.f32 %v542, %v542
      %v830 = vmul.f32 %v545, %v545
      %v831 = vmul.f32 %v550, %v550
      %v832 = vmul.f32 %v553, %v553
      %v833 = vmul.f32 %v558, %v558
      %v834 = vmul.f32 %v561, %v561
      %v835 = vmul.f32 %v566, %v566
      %v836 = vmul.f32 %v569, %v569
      %v837 = vsel %vm733, %v805, 0.0
      %v838 = vsel %vm733, %v806, 0.0
      %v839 = vadd.f32 %v837, %v838
      %v840 = vsel %vm733, %v807, 0.0
      %v841 = vadd.f32 %v839, %v840
      %v842 = vsel %vm733, %v808, 0.0
      %v843 = vadd.f32 %v841, %v842
      %v844 = vsel %vm733, %v809, 0.0
      %v845 = vadd.f32 %v843, %v844
      %v846 = vsel %vm733, %v810, 0.0
      %v847 = vadd.f32 %v845, %v846
      %v848 = vsel %vm733, %v811, 0.0
      %v849 = vadd.f32 %v847, %v848
      %v850 = vsel %vm733, %v812, 0.0
      %v851 = vadd.f32 %v849, %v850
      %v852 = vsel %vm733, %v813, 0.0
      %v853 = vadd.f32 %v851, %v852
      %v854 = vsel %vm733, %v814, 0.0
      %v855 = vadd.f32 %v853, %v854
      %v856 = vsel %vm733, %v815, 0.0
      %v857 = vadd.f32 %v855, %v856
      %v858 = vsel %vm733, %v816, 0.0
      %v859 = vadd.f32 %v857, %v858
      %v860 = vsel %vm733, %v817, 0.0
      %v861 = vadd.f32 %v859, %v860
      %v862 = vsel %vm733, %v818, 0.0
      %v863 = vadd.f32 %v861, %v862
      %v864 = vsel %vm733, %v819, 0.0
      %v865 = vadd.f32 %v863, %v864
      %v866 = vsel %vm733, %v820, 0.0
      %v867 = vadd.f32 %v865, %v866
      %v868 = vsel %vm733, %v821, 0.0
      %v869 = vadd.f32 %v867, %v868
      %v870 = vsel %vm733, %v822, 0.0
      %v871 = vadd.f32 %v869, %v870
      %v872 = vsel %vm733, %v823, 0.0
      %v873 = vadd.f32 %v871, %v872
      %v874 = vsel %vm733, %v824, 0.0
      %v875 = vadd.f32 %v873, %v874
      %v876 = vsel %vm733, %v825, 0.0
      %v877 = vadd.f32 %v875, %v876
      %v878 = vsel %vm733, %v826, 0.0
      %v879 = vadd.f32 %v877, %v878
      %v880 = vsel %vm733, %v827, 0.0
      %v881 = vadd.f32 %v879, %v880
      %v882 = vsel %vm733, %v828, 0.0
      %v883 = vadd.f32 %v881, %v882
      %v884 = vsel %vm733, %v829, 0.0
      %v885 = vadd.f32 %v883, %v884
      %v886 = vsel %vm733, %v830, 0.0
      %v887 = vadd.f32 %v885, %v886
      %v888 = vsel %vm733, %v831, 0.0
      %v889 = vadd.f32 %v887, %v888
      %v890 = vsel %vm733, %v832, 0.0
      %v891 = vadd.f32 %v889, %v890
      %v892 = vsel %vm733, %v833, 0.0
      %v893 = vadd.f32 %v891, %v892
      %v894 = vsel %vm733, %v834, 0.0
      %v895 = vadd.f32 %v893, %v894
      %v896 = vsel %vm733, %v835, 0.0
      %v897 = vadd.f32 %v895, %v896
      %v898 = vsel %vm733, %v836, 0.0
      %v899 = vadd.f32 %v897, %v898
      %v900 = vrot.slane %v899, 4
      %v901 = vadd.f32 %v899, %v900
      %v902 = vrot.slane %v901, 2
      %v903 = vadd.f32 %v901, %v902
      %v904 = vrot.slane %v903, 1
      %v905 = vadd.f32 %v903, %v904
      %906 = vst.msk [vmem:[%s217] sm:$0x1] %vm803, %v905
      %s907 = smul.u32 32, %s16
      %p908 = scmp.lt.s32.totalorder %s907, 63
      %s909 = scalar_select %p908, %s907, 63
      %s910 = smul.addr %s909, 4
      %s911 = scalar_lea.vmem %s2, %s910
      %p912 = scmp.lt.s32.totalorder %s16, 1
      %s913 = scalar_select %p912, %s16, 1
      %s914 = scalar_lea.vmem %s3, %s913
      %p915 = scmp.lt.s32.totalorder %s16, 1
      %s916 = scalar_select %p915, %s16, 1
      %s917 = scalar_lea.vmem %s4, %s916
      // Predicated region
      $region29: #{forward.9} parent=27 // pred_check
        %p918 = pneg %p81
      $region30: #{forward.9} parent=27 // pred_check_branch
        %920 = sbr.rel (%p918) target = $region32
      $region31: #{forward.9} parent=27 // pred_region
        %s921 = smul.u32 32, %s16
      $region32: #{forward.9} parent=27 // pred_fallthru
        _
      // Predicated region
      $region33: #{forward.9} parent=27 // pred_check
        %p922 = pneg %p107
      $region34: #{forward.9} parent=27 // pred_check_branch
        %924 = sbr.rel (%p922) target = $region36
      $region35: #{forward.9} parent=27 // pred_region
        _
      $region36: #{forward.9} parent=27 // pred_fallthru
        _
      // Predicated region
      $region37: #{forward.9} parent=27 // pred_check
        %p925 = pneg %p133
      $region38: #{forward.9} parent=27 // pred_check_branch
        %927 = sbr.rel (%p925) target = $region40
      $region39: #{forward.9} parent=27 // pred_region
        _
      $region40: #{forward.9} parent=27 // pred_fallthru
        _
    $region28: #{forward.9} parent=5 // pred_fallthru
      _
    %p928 = scmp.le.s32.totalorder 2, %s11
    // Predicated region
    $region41: #{forward.9} parent=5 // pred_check
      %p929 = pneg %p928
    $region42: #{forward.9} parent=5 // pred_check_branch
      %931 = sbr.rel (%p929) target = $region44
    $region43: #{forward.9} parent=5 // pred_region
      %s932 = ssub.s32 %s11, 2
      // Predicated region
      $region45: #{forward.9} parent=43 // pred_check
        %p933 = pneg %p87
      $region46: #{forward.9} parent=43 // pred_check_branch
        %935 = sbr.rel (%p933) target = $region48
      $region47: #{forward.9} parent=43 // pred_region
        %s936 = smul.u32 32, %s17
        %p937 = scmp.lt.s32.totalorder %s936, 63
        %s938 = scalar_select %p937, %s936, 63
        %s939 = smul.addr %s938, 4
        %s940 = scalar_lea.vmem %s2, %s939
      $region48: #{forward.9} parent=43 // pred_fallthru
        _
      // Predicated region
      $region49: #{forward.9} parent=43 // pred_check
        %p941 = pneg %p113
      $region50: #{forward.9} parent=43 // pred_check_branch
        %943 = sbr.rel (%p941) target = $region52
      $region51: #{forward.9} parent=43 // pred_region
        %p944 = scmp.lt.s32.totalorder %s17, 1
        %s945 = scalar_select %p944, %s17, 1
        %s946 = scalar_lea.vmem %s3, %s945
      $region52: #{forward.9} parent=43 // pred_fallthru
        _
      // Predicated region
      $region53: #{forward.9} parent=43 // pred_check
        %p947 = pneg %p139
      $region54: #{forward.9} parent=43 // pred_check_branch
        %949 = sbr.rel (%p947) target = $region56
      $region55: #{forward.9} parent=43 // pred_region
        %p950 = scmp.lt.s32.totalorder %s17, 1
        %s951 = scalar_select %p950, %s17, 1
        %s952 = scalar_lea.vmem %s4, %s951
      $region56: #{forward.9} parent=43 // pred_fallthru
        _
    $region44: #{forward.9} parent=5 // pred_fallthru
      _
  $region6: #{forward.9} parent=0 // loop_footer
    %s15 = sadd.s32 1, %s11
  $region7: #{forward.9} parent=0 // loop_footer_branch
    %10 = sbr.rel target = $region3
  $region8: #{forward.9} parent=0 // loop_exit
    _

// kernel: forward.10
$region0: #{forward.10}
  #allocation0 [shape = 'u32[]', space=smem, size = 0x4, offset = 0x4, fixed_abs, tag = 'smem constant byte address 0x4 - core index']
  #allocation1 [shape = 'u32[144,128]{1,0:T(1,128)}', space=vmem, size = 0x12000, scoped, tag = 'internal scratch']
  %s0 = inlined_call_operand.vmem [shape: bf16[512,16], index: 0, kind: input, shape index: {}]
  %s1 = inlined_call_operand.vmem [shape: f32[2,16], index: 1, kind: input, shape index: {}]
  %s2 = inlined_call_operand.vmem [shape: bf16[512,16], index: 2, kind: output, shape index: {}]
  %s3 = sld [smem:[#allocation0]]
  $region41: #{forward.10} parent=0
    _
  %s5 = ssub.s32 1, %s3
  %s6 = scalar_select 0, %s5, %s3
  loop: start=0, step=1, limit=4
  $region2: #{forward.10} parent=0 // loop_pre_header
    _
  $region3: #{forward.10} parent=0 // loop_header
    %s8 = sphi 0, %s12
    %p9 = scmp.ge.s32.totalorder %s8, 4
    %s18 = sphi 0, %s20
    %s21 = sphi 0, %s18
    %s22 = sphi 0, %s21
    %s38 = sphi 0, %s22
    %s42 = sphi 0, %s42
    %s44 = sphi 0, %s42
    %s45 = sphi 0, %s44
    %s59 = sphi 0, %s45
    %s65 = sphi 0, %s67
    %s68 = sphi 0, %s65
    %s69 = sphi 0, %s68
    %s85 = sphi 0, %s69
  $region4: #{forward.10} parent=0 // loop_header_branch
    %11 = sbr.rel (%p9) target = $region8
  $region5: #{forward.10} parent=0 // loop_body
    %s13 = ssub.s32 %s8, 1
    %s14 = ssub.s32 %s8, 2
    %s15 = sadd.s32 %s8, 1
    %s16 = ssub.s32 %s8, %s15
    %p17 = scmp.eq.s32.totalorder %s16, 0
    %s19 = sadd.s32 %s18, 1
    %s20 = scalar_select %p17, %s18, %s19
    %p23 = pneg %p17
    %p24 = scmp.eq.s32.totalorder %s8, 1
    %p25 = por %p23, %p24
    %p26 = scmp.ne.s32.totalorder %s18, %s21
    %p27 = scmp.eq.s32.totalorder %s8, 0
    %p28 = por %p26, %p27
    %p29 = scmp.ne.s32.totalorder %s18, %s21
    %p30 = scmp.eq.s32.totalorder %s13, 1
    %p31 = por %p29, %p30
    %p32 = scmp.ne.s32.totalorder %s21, %s22
    %p33 = scmp.eq.s32.totalorder %s13, 0
    %p34 = por %p32, %p33
    %p35 = scmp.ne.s32.totalorder %s21, %s22
    %p36 = scmp.eq.s32.totalorder %s14, 1
    %p37 = por %p35, %p36
    %p39 = scmp.ne.s32.totalorder %s22, %s38
    %p40 = scmp.eq.s32.totalorder %s14, 0
    %p41 = por %p39, %p40
    %s43 = sadd.s32 %s42, 1
    %p46 = scmp.eq.s32.totalorder %s8, 1
    %p47 = scmp.ne.s32.totalorder %s42, %s44
    %p48 = scmp.eq.s32.totalorder %s8, 0
    %p49 = por %p47, %p48
    %p50 = scmp.ne.s32.totalorder %s42, %s44
    %p51 = scmp.eq.s32.totalorder %s13, 1
    %p52 = por %p50, %p51
    %p53 = scmp.ne.s32.totalorder %s44, %s45
    %p54 = scmp.eq.s32.totalorder %s13, 0
    %p55 = por %p53, %p54
    %p56 = scmp.ne.s32.totalorder %s44, %s45
    %p57 = scmp.eq.s32.totalorder %s14, 1
    %p58 = por %p56, %p57
    %p60 = scmp.ne.s32.totalorder %s45, %s59
    %p61 = scmp.eq.s32.totalorder %s14, 0
    %p62 = por %p60, %p61
    %s63 = ssub.s32 %s8, %s15
    %p64 = scmp.eq.s32.totalorder %s63, 0
    %s66 = sadd.s32 %s65, 1
    %s67 = scalar_select %p64, %s65, %s66
    %p70 = pneg %p64
    %p71 = scmp.eq.s32.totalorder %s8, 1
    %p72 = por %p70, %p71
    %p73 = scmp.ne.s32.totalorder %s65, %s68
    %p74 = scmp.eq.s32.totalorder %s8, 0
    %p75 = por %p73, %p74
    %p76 = scmp.ne.s32.totalorder %s65, %s68
    %p77 = scmp.eq.s32.totalorder %s13, 1
    %p78 = por %p76, %p77
    %p79 = scmp.ne.s32.totalorder %s68, %s69
    %p80 = scmp.eq.s32.totalorder %s13, 0
    %p81 = por %p79, %p80
    %p82 = scmp.ne.s32.totalorder %s68, %s69
    %p83 = scmp.eq.s32.totalorder %s14, 1
    %p84 = por %p82, %p83
    %p86 = scmp.ne.s32.totalorder %s69, %s85
    %p87 = scmp.eq.s32.totalorder %s14, 0
    %p88 = por %p86, %p87
    %p89 = scmp.le.s32.totalorder 1, %s8
    %p90 = scmp.lt.s32.totalorder %s8, 3
    %p91 = pnand %p89, %p90
    %p92 = pneg %p91
    // Predicated region
    $region9: #{forward.10} parent=5 // pred_check
      _
    $region10: #{forward.10} parent=5 // pred_check_branch
      %94 = sbr.rel (%p91) target = $region12
    $region11: #{forward.10} parent=5 // pred_region
      %s95 = ssub.s32 %s8, 1
      // Predicated region
      $region13: #{forward.10} parent=11 // pred_check
        %p96 = pneg %p55
      $region14: #{forward.10} parent=11 // pred_check_branch
        %98 = sbr.rel (%p96) target = $region16
      $region15: #{forward.10} parent=11 // pred_region
        _
      $region16: #{forward.10} parent=11 // pred_fallthru
        _
    $region12: #{forward.10} parent=5 // pred_fallthru
      _
    %p99 = scmp.lt.s32.totalorder %s8, 2
    // Predicated region
    $region17: #{forward.10} parent=5 // pred_check
      %p100 = pneg %p99
    $region18: #{forward.10} parent=5 // pred_check_branch
      %102 = sbr.rel (%p100) target = $region20
    $region19: #{forward.10} parent=5 // pred_region
      // Predicated region
      $region21: #{forward.10} parent=19 // pred_check
        %p103 = pneg %p28
      $region22: #{forward.10} parent=19 // pred_check_branch
        %105 = sbr.rel (%p103) target = $region24
      $region23: #{forward.10} parent=19 // pred_region
        %s106 = smul.u32 32, %s8
        %p107 = scmp.lt.s32.totalorder %s106, 63
        %s108 = scalar_select %p107, %s106, 63
        %s109 = smul.addr %s108, 4
        %s110 = scalar_lea.vmem %s0, %s109
        %s111 = smul.u32 32, %s8
      $region24: #{forward.10} parent=19 // pred_fallthru
        _
    $region20: #{forward.10} parent=5 // pred_fallthru
      _
    %p112 = scmp.le.s32.totalorder 1, %s8
    %p113 = scmp.lt.s32.totalorder %s8, 3
    %p114 = pnand %p112, %p113
    %p115 = pneg %p114
    // Predicated region
    $region25: #{forward.10} parent=5 // pred_check
      _
    $region26: #{forward.10} parent=5 // pred_check_branch
      %117 = sbr.rel (%p114) target = $region28
    $region27: #{forward.10} parent=5 // pred_region
      %s118 = ssub.s32 %s8, 1
      %s119 = smul.u32 32, %s13
      %p120 = scmp.lt.s32.totalorder %s119, 63
      %s121 = scalar_select %p120, %s119, 63
      %s122 = smul.addr %s121, 4
      %s123 = scalar_lea.vmem %s0, %s122
      %p124 = pneg %p34
      %p125 = pneg %p31
      %p126 = pneg %p55
      %p127 = pneg %p52
      %p128 = pneg %p81
      %p129 = pneg %p78
      %s130 = smul.u32 32, %s13
      %p131 = scmp.lt.s32.totalorder %s130, 63
      %s132 = scalar_select %p131, %s130, 63
      %s133 = smul.addr %s132, 4
      %s134 = scalar_lea.vmem %s2, %s133
      %s135 = smul.u32 32, %s13
      %p136 = scmp.lt.s32.totalorder %s135, 63
      %s137 = scalar_select %p136, %s135, 63
      %s138 = smul.addr %s137, 4
      %s139 = scalar_lea.vmem %s0, %s138
      %s140 = smul.u32 32, %s13
      %s141 = smul.u32 32, %s13
      %p142 = scmp.lt.s32.totalorder %s141, 63
      %s143 = scalar_select %p142, %s141, 63
      %s144 = smul.addr %s143, 4
      %s145 = scalar_lea.vmem %s2, %s144
      %s146 = smul.u32 32, %s13
      %v147 = vld [vmem:[%s1] sm:$0x3]
      %v148 = vld [vmem:[%s139] sm:$0xf]
      %v149 = vld [vmem:[%s139 + $0x4] sm:$0xf]
      %v150 = vld [vmem:[%s139 + $0x8] sm:$0xf]
      %v151 = vld [vmem:[%s139 + $0xc] sm:$0xf]
      %v152 = vld [vmem:[%s139 + $0x10] sm:$0xf]
      %v153 = vld [vmem:[%s139 + $0x14] sm:$0xf]
      %v154 = vld [vmem:[%s139 + $0x18] sm:$0xf]
      %v155 = vld [vmem:[%s139 + $0x1c] sm:$0xf]
      %v156 = vld [vmem:[%s139 + $0x20] sm:$0xf]
      %v157 = vld [vmem:[%s139 + $0x24] sm:$0xf]
      %v158 = vld [vmem:[%s139 + $0x28] sm:$0xf]
      %v159 = vld [vmem:[%s139 + $0x2c] sm:$0xf]
      %v160 = vld [vmem:[%s139 + $0x30] sm:$0xf]
      %v161 = vld [vmem:[%s139 + $0x34] sm:$0xf]
      %v162 = vld [vmem:[%s139 + $0x38] sm:$0xf]
      %v163 = vld [vmem:[%s139 + $0x3c] sm:$0xf]
      %v164 = vld [vmem:[%s139 + $0x40] sm:$0xf]
      %v165 = vld [vmem:[%s139 + $0x44] sm:$0xf]
      %v166 = vld [vmem:[%s139 + $0x48] sm:$0xf]
      %v167 = vld [vmem:[%s139 + $0x4c] sm:$0xf]
      %v168 = vld [vmem:[%s139 + $0x50] sm:$0xf]
      %v169 = vld [vmem:[%s139 + $0x54] sm:$0xf]
      %v170 = vld [vmem:[%s139 + $0x58] sm:$0xf]
      %v171 = vld [vmem:[%s139 + $0x5c] sm:$0xf]
      %v172 = vld [vmem:[%s139 + $0x60] sm:$0xf]
      %v173 = vld [vmem:[%s139 + $0x64] sm:$0xf]
      %v174 = vld [vmem:[%s139 + $0x68] sm:$0xf]
      %v175 = vld [vmem:[%s139 + $0x6c] sm:$0xf]
      %v176 = vld [vmem:[%s139 + $0x70] sm:$0xf]
      %v177 = vld [vmem:[%s139 + $0x74] sm:$0xf]
      %v178 = vld [vmem:[%s139 + $0x78] sm:$0xf]
      %v179 = vld [vmem:[%s139 + $0x7c] sm:$0xf]
      %v180 = vunpack.c.l.bf16 %v148
      %v181 = vunpack.c.l.bf16 %v149
      %v182 = vunpack.c.l.bf16 %v150
      %v183 = vunpack.c.l.bf16 %v151
      %v184 = vunpack.c.l.bf16 %v152
      %v185 = vunpack.c.l.bf16 %v153
      %v186 = vunpack.c.l.bf16 %v154
      %v187 = vunpack.c.l.bf16 %v155
      %v188 = vunpack.c.l.bf16 %v156
      %v189 = vunpack.c.l.bf16 %v157
      %v190 = vunpack.c.l.bf16 %v158
      %v191 = vunpack.c.l.bf16 %v159
      %v192 = vunpack.c.l.bf16 %v160
      %v193 = vunpack.c.l.bf16 %v161
      %v194 = vunpack.c.l.bf16 %v162
      %v195 = vunpack.c.l.bf16 %v163
      %v196 = vunpack.c.l.bf16 %v164
      %v197 = vunpack.c.l.bf16 %v165
      %v198 = vunpack.c.l.bf16 %v166
      %v199 = vunpack.c.l.bf16 %v167
      %v200 = vunpack.c.l.bf16 %v168
      %v201 = vunpack.c.l.bf16 %v169
      %v202 = vunpack.c.l.bf16 %v170
      %v203 = vunpack.c.l.bf16 %v171
      %v204 = vunpack.c.l.bf16 %v172
      %v205 = vunpack.c.l.bf16 %v173
      %v206 = vunpack.c.l.bf16 %v174
      %v207 = vunpack.c.l.bf16 %v175
      %v208 = vunpack.c.l.bf16 %v176
      %v209 = vunpack.c.l.bf16 %v177
      %v210 = vunpack.c.l.bf16 %v178
      %v211 = vunpack.c.l.bf16 %v179
      %v212 = vlaneseq
      %v213 = vshrl.u32 %v212, 7
      %v214 = vsub.s32 0, %v213
      %v215 = vrot.slane %v147, %v214
      %v216 = vmul.f32 %v180, %v215
      %v217 = vmul.f32 %v181, %v215
      %v218 = vmul.f32 %v182, %v215
      %v219 = vmul.f32 %v183, %v215
      %v220 = vmul.f32 %v184, %v215
      %v221 = vmul.f32 %v185, %v215
      %v222 = vmul.f32 %v186, %v215
      %v223 = vmul.f32 %v187, %v215
      %v224 = vmul.f32 %v188, %v215
      %v225 = vmul.f32 %v189, %v215
      %v226 = vmul.f32 %v190, %v215
      %v227 = vmul.f32 %v191, %v215
      %v228 = vmul.f32 %v192, %v215
      %v229 = vmul.f32 %v193, %v215
      %v230 = vmul.f32 %v194, %v215
      %v231 = vmul.f32 %v195, %v215
      %v232 = vmul.f32 %v196, %v215
      %v233 = vmul.f32 %v197, %v215
      %v234 = vmul.f32 %v198, %v215
      %v235 = vmul.f32 %v199, %v215
      %v236 = vmul.f32 %v200, %v215
      %v237 = vmul.f32 %v201, %v215
      %v238 = vmul.f32 %v202, %v215
      %v239 = vmul.f32 %v203, %v215
      %v240 = vmul.f32 %v204, %v215
      %v241 = vmul.f32 %v205, %v215
      %v242 = vmul.f32 %v206, %v215
      %v243 = vmul.f32 %v207, %v215
      %v244 = vmul.f32 %v208, %v215
      %v245 = vmul.f32 %v209, %v215
      %v246 = vmul.f32 %v210, %v215
      %v247 = vmul.f32 %v211, %v215
      %v248 = vlaneseq
      %v249 = vshrl.u32 %v248, 7
      %v250 = vsub.s32 1, %v249
      %v251 = vrot.slane %v147, %v250
      %v252 = vadd.f32 %v216, %v251
      %v253 = vadd.f32 %v217, %v251
      %v254 = vadd.f32 %v218, %v251
      %v255 = vadd.f32 %v219, %v251
      %v256 = vadd.f32 %v220, %v251
      %v257 = vadd.f32 %v221, %v251
      %v258 = vadd.f32 %v222, %v251
      %v259 = vadd.f32 %v223, %v251
      %v260 = vadd.f32 %v224, %v251
      %v261 = vadd.f32 %v225, %v251
      %v262 = vadd.f32 %v226, %v251
      %v263 = vadd.f32 %v227, %v251
      %v264 = vadd.f32 %v228, %v251
      %v265 = vadd.f32 %v229, %v251
      %v266 = vadd.f32 %v230, %v251
      %v267 = vadd.f32 %v231, %v251
      %v268 = vadd.f32 %v232, %v251
      %v269 = vadd.f32 %v233, %v251
      %v270 = vadd.f32 %v234, %v251
      %v271 = vadd.f32 %v235, %v251
      %v272 = vadd.f32 %v236, %v251
      %v273 = vadd.f32 %v237, %v251
      %v274 = vadd.f32 %v238, %v251
      %v275 = vadd.f32 %v239, %v251
      %v276 = vadd.f32 %v240, %v251
      %v277 = vadd.f32 %v241, %v251
      %v278 = vadd.f32 %v242, %v251
      %v279 = vadd.f32 %v243, %v251
      %v280 = vadd.f32 %v244, %v251
      %v281 = vadd.f32 %v245, %v251
      %v282 = vadd.f32 %v246, %v251
      %v283 = vadd.f32 %v247, %v251
      %vm284 = vcmp.gt.f32.partialorder %v252, 0.0
      %vm285 = vcmp.gt.f32.partialorder %v253, 0.0
      %vm286 = vcmp.gt.f32.partialorder %v254, 0.0
      %vm287 = vcmp.gt.f32.partialorder %v255, 0.0
      %vm288 = vcmp.gt.f32.partialorder %v256, 0.0
      %vm289 = vcmp.gt.f32.partialorder %v257, 0.0
      %vm290 = vcmp.gt.f32.partialorder %v258, 0.0
      %vm291 = vcmp.gt.f32.partialorder %v259, 0.0
      %vm292 = vcmp.gt.f32.partialorder %v260, 0.0
      %vm293 = vcmp.gt.f32.partialorder %v261, 0.0
      %vm294 = vcmp.gt.f32.partialorder %v262, 0.0
      %vm295 = vcmp.gt.f32.partialorder %v263, 0.0
      %vm296 = vcmp.gt.f32.partialorder %v264, 0.0
      %vm297 = vcmp.gt.f32.partialorder %v265, 0.0
      %vm298 = vcmp.gt.f32.partialorder %v266, 0.0
      %vm299 = vcmp.gt.f32.partialorder %v267, 0.0
      %vm300 = vcmp.gt.f32.partialorder %v268, 0.0
      %vm301 = vcmp.gt.f32.partialorder %v269, 0.0
      %vm302 = vcmp.gt.f32.partialorder %v270, 0.0
      %vm303 = vcmp.gt.f32.partialorder %v271, 0.0
      %vm304 = vcmp.gt.f32.partialorder %v272, 0.0
      %vm305 = vcmp.gt.f32.partialorder %v273, 0.0
      %vm306 = vcmp.gt.f32.partialorder %v274, 0.0
      %vm307 = vcmp.gt.f32.partialorder %v275, 0.0
      %vm308 = vcmp.gt.f32.partialorder %v276, 0.0
      %vm309 = vcmp.gt.f32.partialorder %v277, 0.0
      %vm310 = vcmp.gt.f32.partialorder %v278, 0.0
      %vm311 = vcmp.gt.f32.partialorder %v279, 0.0
      %vm312 = vcmp.gt.f32.partialorder %v280, 0.0
      %vm313 = vcmp.gt.f32.partialorder %v281, 0.0
      %vm314 = vcmp.gt.f32.partialorder %v282, 0.0
      %vm315 = vcmp.gt.f32.partialorder %v283, 0.0
      %v316 = vmul.f32 %v252, 0.2
      %v317 = vmul.f32 %v253, 0.2
      %v318 = vmul.f32 %v254, 0.2
      %v319 = vmul.f32 %v255, 0.2
      %v320 = vmul.f32 %v256, 0.2
      %v321 = vmul.f32 %v257, 0.2
      %v322 = vmul.f32 %v258, 0.2
      %v323 = vmul.f32 %v259, 0.2
      %v324 = vmul.f32 %v260, 0.2
      %v325 = vmul.f32 %v261, 0.2
      %v326 = vmul.f32 %v262, 0.2
      %v327 = vmul.f32 %v263, 0.2
      %v328 = vmul.f32 %v264, 0.2
      %v329 = vmul.f32 %v265, 0.2
      %v330 = vmul.f32 %v266, 0.2
      %v331 = vmul.f32 %v267, 0.2
      %v332 = vmul.f32 %v268, 0.2
      %v333 = vmul.f32 %v269, 0.2
      %v334 = vmul.f32 %v270, 0.2
      %v335 = vmul.f32 %v271, 0.2
      %v336 = vmul.f32 %v272, 0.2
      %v337 = vmul.f32 %v273, 0.2
      %v338 = vmul.f32 %v274, 0.2
      %v339 = vmul.f32 %v275, 0.2
      %v340 = vmul.f32 %v276, 0.2
      %v341 = vmul.f32 %v277, 0.2
      %v342 = vmul.f32 %v278, 0.2
      %v343 = vmul.f32 %v279, 0.2
      %v344 = vmul.f32 %v280, 0.2
      %v345 = vmul.f32 %v281, 0.2
      %v346 = vmul.f32 %v282, 0.2
      %v347 = vmul.f32 %v283, 0.2
      %v348 = vsel %vm284, %v252, %v316
      %v349 = vsel %vm285, %v253, %v317
      %v350 = vsel %vm286, %v254, %v318
      %v351 = vsel %vm287, %v255, %v319
      %v352 = vsel %vm288, %v256, %v320
      %v353 = vsel %vm289, %v257, %v321
      %v354 = vsel %vm290, %v258, %v322
      %v355 = vsel %vm291, %v259, %v323
      %v356 = vsel %vm292, %v260, %v324
      %v357 = vsel %vm293, %v261, %v325
      %v358 = vsel %vm294, %v262, %v326
      %v359 = vsel %vm295, %v263, %v327
      %v360 = vsel %vm296, %v264, %v328
      %v361 = vsel %vm297, %v265, %v329
      %v362 = vsel %vm298, %v266, %v330
      %v363 = vsel %vm299, %v267, %v331
      %v364 = vsel %vm300, %v268, %v332
      %v365 = vsel %vm301, %v269, %v333
      %v366 = vsel %vm302, %v270, %v334
      %v367 = vsel %vm303, %v271, %v335
      %v368 = vsel %vm304, %v272, %v336
      %v369 = vsel %vm305, %v273, %v337
      %v370 = vsel %vm306, %v274, %v338
      %v371 = vsel %vm307, %v275, %v339
      %v372 = vsel %vm308, %v276, %v340
      %v373 = vsel %vm309, %v277, %v341
      %v374 = vsel %vm310, %v278, %v342
      %v375 = vsel %vm311, %v279, %v343
      %v376 = vsel %vm312, %v280, %v344
      %v377 = vsel %vm313, %v281, %v345
      %v378 = vsel %vm314, %v282, %v346
      %v379 = vsel %vm315, %v283, %v347
      %v380 = vpack.c.bf16 %v349, %v348
      %v381 = vpack.c.bf16 %v351, %v350
      %v382 = vpack.c.bf16 %v353, %v352
      %v383 = vpack.c.bf16 %v355, %v354
      %v384 = vpack.c.bf16 %v357, %v356
      %v385 = vpack.c.bf16 %v359, %v358
      %v386 = vpack.c.bf16 %v361, %v360
      %v387 = vpack.c.bf16 %v363, %v362
      %v388 = vpack.c.bf16 %v365, %v364
      %v389 = vpack.c.bf16 %v367, %v366
      %v390 = vpack.c.bf16 %v369, %v368
      %v391 = vpack.c.bf16 %v371, %v370
      %v392 = vpack.c.bf16 %v373, %v372
      %v393 = vpack.c.bf16 %v375, %v374
      %v394 = vpack.c.bf16 %v377, %v376
      %v395 = vpack.c.bf16 %v379, %v378
      %v412 = vunpack.c.l.b16 %v380
      %v413 = vunpack.c.h.b16 %v380
      %v414 = vunpack.c.l.b16 %v381
      %v415 = vunpack.c.h.b16 %v381
      %v416 = vunpack.c.l.b16 %v382
      %v417 = vunpack.c.h.b16 %v382
      %v418 = vunpack.c.l.b16 %v383
      %v419 = vunpack.c.h.b16 %v383
      %v420 = vunpack.c.l.b16 %v384
      %v421 = vunpack.c.h.b16 %v384
      %v422 = vunpack.c.l.b16 %v385
      %v423 = vunpack.c.h.b16 %v385
      %v424 = vunpack.c.l.b16 %v386
      %v425 = vunpack.c.h.b16 %v386
      %v426 = vunpack.c.l.b16 %v387
      %v427 = vunpack.c.h.b16 %v387
      %v428 = vunpack.c.l.b16 %v388
      %v429 = vunpack.c.h.b16 %v388
      %v430 = vunpack.c.l.b16 %v389
      %v431 = vunpack.c.h.b16 %v389
      %v432 = vunpack.c.l.b16 %v390
      %v433 = vunpack.c.h.b16 %v390
      %v434 = vunpack.c.l.b16 %v391
      %v435 = vunpack.c.h.b16 %v391
      %v436 = vunpack.c.l.b16 %v392
      %v437 = vunpack.c.h.b16 %v392
      %v438 = vunpack.c.l.b16 %v393
      %v439 = vunpack.c.h.b16 %v393
      %v440 = vunpack.c.l.b16 %v394
      %v441 = vunpack.c.h.b16 %v394
      %v442 = vunpack.c.l.b16 %v395
      %v443 = vunpack.c.h.b16 %v395
      %v444 = vpack.c.b16 %v412, %v412
      %v445 = vpack.c.b16 %v413, %v413
      %v446 = vpack.c.b16 %v414, %v414
      %v447 = vpack.c.b16 %v415, %v415
      %v448 = vpack.c.b16 %v416, %v416
      %v449 = vpack.c.b16 %v417, %v417
      %v450 = vpack.c.b16 %v418, %v418
      %v451 = vpack.c.b16 %v419, %v419
      %v452 = vpack.c.b16 %v420, %v420
      %v453 = vpack.c.b16 %v421, %v421
      %v454 = vpack.c.b16 %v422, %v422
      %v455 = vpack.c.b16 %v423, %v423
      %v456 = vpack.c.b16 %v424, %v424
      %v457 = vpack.c.b16 %v425, %v425
      %v458 = vpack.c.b16 %v426, %v426
      %v459 = vpack.c.b16 %v427, %v427
      %v460 = vpack.c.b16 %v428, %v428
      %v461 = vpack.c.b16 %v429, %v429
      %v462 = vpack.c.b16 %v430, %v430
      %v463 = vpack.c.b16 %v431, %v431
      %v464 = vpack.c.b16 %v432, %v432
      %v465 = vpack.c.b16 %v433, %v433
      %v466 = vpack.c.b16 %v434, %v434
      %v467 = vpack.c.b16 %v435, %v435
      %v468 = vpack.c.b16 %v436, %v436
      %v469 = vpack.c.b16 %v437, %v437
      %v470 = vpack.c.b16 %v438, %v438
      %v471 = vpack.c.b16 %v439, %v439
      %v472 = vpack.c.b16 %v440, %v440
      %v473 = vpack.c.b16 %v441, %v441
      %v474 = vpack.c.b16 %v442, %v442
      %v475 = vpack.c.b16 %v443, %v443
      %vm508 = vcmask 125952
      %509 = vst.msk [vmem:[%s145] sm:$0xf] %vm508, %v444
      %510 = vst.msk [vmem:[%s145 + $0x4] sm:$0xf] %vm508, %v445
      %511 = vst.msk [vmem:[%s145 + $0x8] sm:$0xf] %vm508, %v446
      %512 = vst.msk [vmem:[%s145 + $0xc] sm:$0xf] %vm508, %v447
      %513 = vst.msk [vmem:[%s145 + $0x10] sm:$0xf] %vm508, %v448
      %514 = vst.msk [vmem:[%s145 + $0x14] sm:$0xf] %vm508, %v449
      %515 = vst.msk [vmem:[%s145 + $0x18] sm:$0xf] %vm508, %v450
      %516 = vst.msk [vmem:[%s145 + $0x1c] sm:$0xf] %vm508, %v451
      %517 = vst.msk [vmem:[%s145 + $0x20] sm:$0xf] %vm508, %v452
      %518 = vst.msk [vmem:[%s145 + $0x24] sm:$0xf] %vm508, %v453
      %519 = vst.msk [vmem:[%s145 + $0x28] sm:$0xf] %vm508, %v454
      %520 = vst.msk [vmem:[%s145 + $0x2c] sm:$0xf] %vm508, %v455
      %521 = vst.msk [vmem:[%s145 + $0x30] sm:$0xf] %vm508, %v456
      %522 = vst.msk [vmem:[%s145 + $0x34] sm:$0xf] %vm508, %v457
      %523 = vst.msk [vmem:[%s145 + $0x38] sm:$0xf] %vm508, %v458
      %524 = vst.msk [vmem:[%s145 + $0x3c] sm:$0xf] %vm508, %v459
      %525 = vst.msk [vmem:[%s145 + $0x40] sm:$0xf] %vm508, %v460
      %526 = vst.msk [vmem:[%s145 + $0x44] sm:$0xf] %vm508, %v461
      %527 = vst.msk [vmem:[%s145 + $0x48] sm:$0xf] %vm508, %v462
      %528 = vst.msk [vmem:[%s145 + $0x4c] sm:$0xf] %vm508, %v463
      %529 = vst.msk [vmem:[%s145 + $0x50] sm:$0xf] %vm508, %v464
      %530 = vst.msk [vmem:[%s145 + $0x54] sm:$0xf] %vm508, %v465
      %531 = vst.msk [vmem:[%s145 + $0x58] sm:$0xf] %vm508, %v466
      %532 = vst.msk [vmem:[%s145 + $0x5c] sm:$0xf] %vm508, %v467
      %533 = vst.msk [vmem:[%s145 + $0x60] sm:$0xf] %vm508, %v468
      %534 = vst.msk [vmem:[%s145 + $0x64] sm:$0xf] %vm508, %v469
      %535 = vst.msk [vmem:[%s145 + $0x68] sm:$0xf] %vm508, %v470
      %536 = vst.msk [vmem:[%s145 + $0x6c] sm:$0xf] %vm508, %v471
      %537 = vst.msk [vmem:[%s145 + $0x70] sm:$0xf] %vm508, %v472
      %538 = vst.msk [vmem:[%s145 + $0x74] sm:$0xf] %vm508, %v473
      %539 = vst.msk [vmem:[%s145 + $0x78] sm:$0xf] %vm508, %v474
      %540 = vst.msk [vmem:[%s145 + $0x7c] sm:$0xf] %vm508, %v475
      %s541 = smul.u32 32, %s13
      %p542 = scmp.lt.s32.totalorder %s541, 63
      %s543 = scalar_select %p542, %s541, 63
      %s544 = smul.addr %s543, 4
      %s545 = scalar_lea.vmem %s2, %s544
      // Predicated region
      $region29: #{forward.10} parent=27 // pred_check
        %p546 = pneg %p78
      $region30: #{forward.10} parent=27 // pred_check_branch
        %548 = sbr.rel (%p546) target = $region32
      $region31: #{forward.10} parent=27 // pred_region
        %s549 = smul.u32 32, %s13
      $region32: #{forward.10} parent=27 // pred_fallthru
        _
    $region28: #{forward.10} parent=5 // pred_fallthru
      _
    %p550 = scmp.le.s32.totalorder 2, %s8
    // Predicated region
    $region33: #{forward.10} parent=5 // pred_check
      %p551 = pneg %p550
    $region34: #{forward.10} parent=5 // pred_check_branch
      %553 = sbr.rel (%p551) target = $region36
    $region35: #{forward.10} parent=5 // pred_region
      %s554 = ssub.s32 %s8, 2
      // Predicated region
      $region37: #{forward.10} parent=35 // pred_check
        %p555 = pneg %p84
      $region38: #{forward.10} parent=35 // pred_check_branch
        %557 = sbr.rel (%p555) target = $region40
      $region39: #{forward.10} parent=35 // pred_region
        %s558 = smul.u32 32, %s14
        %p559 = scmp.lt.s32.totalorder %s558, 63
        %s560 = scalar_select %p559, %s558, 63
        %s561 = smul.addr %s560, 4
        %s562 = scalar_lea.vmem %s2, %s561
      $region40: #{forward.10} parent=35 // pred_fallthru
        _
    $region36: #{forward.10} parent=5 // pred_fallthru
      _
  $region6: #{forward.10} parent=0 // loop_footer
    %s12 = sadd.s32 1, %s8
  $region7: #{forward.10} parent=0 // loop_footer_branch
    %7 = sbr.rel target = $region3
  $region8: #{forward.10} parent=0 // loop_exit
    _

// kernel: forward.11
$region0: #{forward.11}
  #allocation0 [shape = 'u32[]', space=smem, size = 0x4, offset = 0x4, fixed_abs, tag = 'smem constant byte address 0x4 - core index']
  #allocation1 [shape = 'u32[144,128]{1,0:T(1,128)}', space=vmem, size = 0x12000, scoped, tag = 'internal scratch']
  %s0 = inlined_call_operand.vmem [shape: bf16[128,256], index: 0, kind: input, shape index: {}]
  %s1 = inlined_call_operand.vmem [shape: bf16[256,32], index: 1, kind: input, shape index: {}]
  %s2 = inlined_call_operand.vmem [shape: bf16[128,32], index: 2, kind: output, shape index: {0}]
  %s3 = inlined_call_operand.vmem [shape: f32[2,1,32], index: 3, kind: output, shape index: {1}]
  %s4 = inlined_call_operand.vmem [shape: f32[2,1,32], index: 4, kind: output, shape index: {2}]
  %5 = xla_tuple %s2, %s3, %s4
  %s6 = sld [smem:[#allocation0]]
  $region57: #{forward.11} parent=0
    _
  %s8 = ssub.s32 1, %s6
  %s9 = scalar_select 0, %s8, %s6
  loop: start=0, step=1, limit=4
  $region2: #{forward.11} parent=0 // loop_pre_header
    _
  $region3: #{forward.11} parent=0 // loop_header
    %s11 = sphi 0, %s15
    %p12 = scmp.ge.s32.totalorder %s11, 4
    %s21 = sphi 0, %s23
    %s24 = sphi 0, %s21
    %s25 = sphi 0, %s24
    %s41 = sphi 0, %s25
    %s45 = sphi 0, %s45
    %s47 = sphi 0, %s45
    %s48 = sphi 0, %s47
    %s62 = sphi 0, %s48
    %s68 = sphi 0, %s70
    %s71 = sphi 0, %s68
    %s72 = sphi 0, %s71
    %s88 = sphi 0, %s72
    %s94 = sphi 0, %s96
    %s97 = sphi 0, %s94
    %s98 = sphi 0, %s97
    %s114 = sphi 0, %s98
    %s120 = sphi 0, %s122
    %s123 = sphi 0, %s120
    %s124 = sphi 0, %s123
    %s140 = sphi 0, %s124
  $region4: #{forward.11} parent=0 // loop_header_branch
    %14 = sbr.rel (%p12) target = $region8
  $region5: #{forward.11} parent=0 // loop_body
    %s16 = ssub.s32 %s11, 1
    %s17 = ssub.s32 %s11, 2
    %s18 = sadd.s32 %s11, 1
    %s19 = ssub.s32 %s11, %s18
    %p20 = scmp.eq.s32.totalorder %s19, 0
    %s22 = sadd.s32 %s21, 1
    %s23 = scalar_select %p20, %s21, %s22
    %p26 = pneg %p20
    %p27 = scmp.eq.s32.totalorder %s11, 1
    %p28 = por %p26, %p27
    %p29 = scmp.ne.s32.totalorder %s21, %s24
    %p30 = scmp.eq.s32.totalorder %s11, 0
    %p31 = por %p29, %p30
    %p32 = scmp.ne.s32.totalorder %s21, %s24
    %p33 = scmp.eq.s32.totalorder %s16, 1
    %p34 = por %p32, %p33
    %p35 = scmp.ne.s32.totalorder %s24, %s25
    %p36 = scmp.eq.s32.totalorder %s16, 0
    %p37 = por %p35, %p36
    %p38 = scmp.ne.s32.totalorder %s24, %s25
    %p39 = scmp.eq.s32.totalorder %s17, 1
    %p40 = por %p38, %p39
    %p42 = scmp.ne.s32.totalorder %s25, %s41
    %p43 = scmp.eq.s32.totalorder %s17, 0
    %p44 = por %p42, %p43
    %s46 = sadd.s32 %s45, 1
    %p49 = scmp.eq.s32.totalorder %s11, 1
    %p50 = scmp.ne.s32.totalorder %s45, %s47
    %p51 = scmp.eq.s32.totalorder %s11, 0
    %p52 = por %p50, %p51
    %p53 = scmp.ne.s32.totalorder %s45, %s47
    %p54 = scmp.eq.s32.totalorder %s16, 1
    %p55 = por %p53, %p54
    %p56 = scmp.ne.s32.totalorder %s47, %s48
    %p57 = scmp.eq.s32.totalorder %s16, 0
    %p58 = por %p56, %p57
    %p59 = scmp.ne.s32.totalorder %s47, %s48
    %p60 = scmp.eq.s32.totalorder %s17, 1
    %p61 = por %p59, %p60
    %p63 = scmp.ne.s32.totalorder %s48, %s62
    %p64 = scmp.eq.s32.totalorder %s17, 0
    %p65 = por %p63, %p64
    %s66 = ssub.s32 %s11, %s18
    %p67 = scmp.eq.s32.totalorder %s66, 0
    %s69 = sadd.s32 %s68, 1
    %s70 = scalar_select %p67, %s68, %s69
    %p73 = pneg %p67
    %p74 = scmp.eq.s32.totalorder %s11, 1
    %p75 = por %p73, %p74
    %p76 = scmp.ne.s32.totalorder %s68, %s71
    %p77 = scmp.eq.s32.totalorder %s11, 0
    %p78 = por %p76, %p77
    %p79 = scmp.ne.s32.totalorder %s68, %s71
    %p80 = scmp.eq.s32.totalorder %s16, 1
    %p81 = por %p79, %p80
    %p82 = scmp.ne.s32.totalorder %s71, %s72
    %p83 = scmp.eq.s32.totalorder %s16, 0
    %p84 = por %p82, %p83
    %p85 = scmp.ne.s32.totalorder %s71, %s72
    %p86 = scmp.eq.s32.totalorder %s17, 1
    %p87 = por %p85, %p86
    %p89 = scmp.ne.s32.totalorder %s72, %s88
    %p90 = scmp.eq.s32.totalorder %s17, 0
    %p91 = por %p89, %p90
    %s92 = ssub.s32 %s11, %s18
    %p93 = scmp.eq.s32.totalorder %s92, 0
    %s95 = sadd.s32 %s94, 1
    %s96 = scalar_select %p93, %s94, %s95
    %p99 = pneg %p93
    %p100 = scmp.eq.s32.totalorder %s11, 1
    %p101 = por %p99, %p100
    %p102 = scmp.ne.s32.totalorder %s94, %s97
    %p103 = scmp.eq.s32.totalorder %s11, 0
    %p104 = por %p102, %p103
    %p105 = scmp.ne.s32.totalorder %s94, %s97
    %p106 = scmp.eq.s32.totalorder %s16, 1
    %p107 = por %p105, %p106
    %p108 = scmp.ne.s32.totalorder %s97, %s98
    %p109 = scmp.eq.s32.totalorder %s16, 0
    %p110 = por %p108, %p109
    %p111 = scmp.ne.s32.totalorder %s97, %s98
    %p112 = scmp.eq.s32.totalorder %s17, 1
    %p113 = por %p111, %p112
    %p115 = scmp.ne.s32.totalorder %s98, %s114
    %p116 = scmp.eq.s32.totalorder %s17, 0
    %p117 = por %p115, %p116
    %s118 = ssub.s32 %s11, %s18
    %p119 = scmp.eq.s32.totalorder %s118, 0
    %s121 = sadd.s32 %s120, 1
    %s122 = scalar_select %p119, %s120, %s121
    %p125 = pneg %p119
    %p126 = scmp.eq.s32.totalorder %s11, 1
    %p127 = por %p125, %p126
    %p128 = scmp.ne.s32.totalorder %s120, %s123
    %p129 = scmp.eq.s32.totalorder %s11, 0
    %p130 = por %p128, %p129
    %p131 = scmp.ne.s32.totalorder %s120, %s123
    %p132 = scmp.eq.s32.totalorder %s16, 1
    %p133 = por %p131, %p132
    %p134 = scmp.ne.s32.totalorder %s123, %s124
    %p135 = scmp.eq.s32.totalorder %s16, 0
    %p136 = por %p134, %p135
    %p137 = scmp.ne.s32.totalorder %s123, %s124
    %p138 = scmp.eq.s32.totalorder %s17, 1
    %p139 = por %p137, %p138
    %p141 = scmp.ne.s32.totalorder %s124, %s140
    %p142 = scmp.eq.s32.totalorder %s17, 0
    %p143 = por %p141, %p142
    %p144 = scmp.le.s32.totalorder 1, %s11
    %p145 = scmp.lt.s32.totalorder %s11, 3
    %p146 = pnand %p144, %p145
    %p147 = pneg %p146
    // Predicated region
    $region9: #{forward.11} parent=5 // pred_check
      _
    $region10: #{forward.11} parent=5 // pred_check_branch
      %149 = sbr.rel (%p146) target = $region12
    $region11: #{forward.11} parent=5 // pred_region
      %s150 = ssub.s32 %s11, 1
      // Predicated region
      $region13: #{forward.11} parent=11 // pred_check
        %p151 = pneg %p58
      $region14: #{forward.11} parent=11 // pred_check_branch
        %153 = sbr.rel (%p151) target = $region16
      $region15: #{forward.11} parent=11 // pred_region
        _
      $region16: #{forward.11} parent=11 // pred_fallthru
        _
    $region12: #{forward.11} parent=5 // pred_fallthru
      _
    %p154 = scmp.lt.s32.totalorder %s11, 2
    // Predicated region
    $region17: #{forward.11} parent=5 // pred_check
      %p155 = pneg %p154
    $region18: #{forward.11} parent=5 // pred_check_branch
      %157 = sbr.rel (%p155) target = $region20
    $region19: #{forward.11} parent=5 // pred_region
      // Predicated region
      $region21: #{forward.11} parent=19 // pred_check
        %p158 = pneg %p31
      $region22: #{forward.11} parent=19 // pred_check_branch
        %160 = sbr.rel (%p158) target = $region24
      $region23: #{forward.11} parent=19 // pred_region
        %s161 = smul.u32 8, %s11
        %p162 = scmp.lt.s32.totalorder %s161, 15
        %s163 = scalar_select %p162, %s161, 15
        %s164 = smul.addr %s163, 2
        %s165 = smul.addr %s164, 4
        %s166 = scalar_lea.vmem %s0, %s165
        %s167 = smul.u32 8, %s11
      $region24: #{forward.11} parent=19 // pred_fallthru
        _
    $region20: #{forward.11} parent=5 // pred_fallthru
      _
    %p168 = scmp.le.s32.totalorder 1, %s11
    %p169 = scmp.lt.s32.totalorder %s11, 3
    %p170 = pnand %p168, %p169
    %p171 = pneg %p170
    // Predicated region
    $region25: #{forward.11} parent=5 // pred_check
      _
    $region26: #{forward.11} parent=5 // pred_check_branch
      %173 = sbr.rel (%p170) target = $region28
    $region27: #{forward.11} parent=5 // pred_region
      %s174 = ssub.s32 %s11, 1
      %s175 = smul.u32 8, %s16
      %p176 = scmp.lt.s32.totalorder %s175, 15
      %s177 = scalar_select %p176, %s175, 15
      %s178 = smul.addr %s177, 2
      %s179 = smul.addr %s178, 4
      %s180 = scalar_lea.vmem %s0, %s179
      %p181 = pneg %p37
      %p182 = pneg %p34
      %p183 = pneg %p58
      %p184 = pneg %p55
      %p185 = pneg %p84
      %p186 = pneg %p81
      %s187 = smul.u32 8, %s16
      %p188 = scmp.lt.s32.totalorder %s187, 15
      %s189 = scalar_select %p188, %s187, 15
      %s190 = smul.addr %s189, 4
      %s191 = scalar_lea.vmem %s2, %s190
      %p192 = pneg %p110
      %p193 = pneg %p107
      %p194 = scmp.lt.s32.totalorder %s16, 1
      %s195 = scalar_select %p194, %s16, 1
      %s196 = scalar_lea.vmem %s3, %s195
      %p197 = pneg %p136
      %p198 = pneg %p133
      %p199 = scmp.lt.s32.totalorder %s16, 1
      %s200 = scalar_select %p199, %s16, 1
      %s201 = scalar_lea.vmem %s4, %s200
      %s202 = smul.u32 8, %s16
      %p203 = scmp.lt.s32.totalorder %s202, 15
      %s204 = scalar_select %p203, %s202, 15
      %s205 = smul.addr %s204, 2
      %s206 = smul.addr %s205, 4
      %s207 = scalar_lea.vmem %s0, %s206
      %s208 = smul.u32 8, %s16
      %s209 = smul.u32 8, %s16
      %p210 = scmp.lt.s32.totalorder %s209, 15
      %s211 = scalar_select %p210, %s209, 15
      %s212 = smul.addr %s211, 4
      %s213 = scalar_lea.vmem %s2, %s212
      %s214 = smul.u32 8, %s16
      %p215 = scmp.lt.s32.totalorder %s16, 1
      %s216 = scalar_select %p215, %s16, 1
      %s217 = scalar_lea.vmem %s3, %s216
      %p218 = scmp.lt.s32.totalorder %s16, 1
      %s219 = scalar_select %p218, %s16, 1
      %s220 = scalar_lea.vmem %s4, %s219
      %v222 = vld [vmem:[%s207] sm:$0xff]
      %v223 = vld [vmem:[%s207 + $0x8] sm:$0xff]
      %v224 = vld [vmem:[%s207 + $0x10] sm:$0xff]
      %v225 = vld [vmem:[%s207 + $0x18] sm:$0xff]
      %v226 = vld [vmem:[%s207 + $0x20] sm:$0xff]
      %v227 = vld [vmem:[%s207 + $0x28] sm:$0xff]
      %v228 = vld [vmem:[%s207 + $0x30] sm:$0xff]
      %v229 = vld [vmem:[%s207 + $0x38] sm:$0xff]
      %v230 = vld [vmem:[%s1] sm:$0xf]
      %v231 = vld [vmem:[%s1 + $0x4] sm:$0xf]
      %v232 = vld [vmem:[%s1 + $0x8] sm:$0xf]
      %v233 = vld [vmem:[%s1 + $0xc] sm:$0xf]
      %v234 = vld [vmem:[%s1 + $0x10] sm:$0xf]
      %v235 = vld [vmem:[%s1 + $0x14] sm:$0xf]
      %v236 = vld [vmem:[%s1 + $0x18] sm:$0xf]
      %v237 = vld [vmem:[%s1 + $0x1c] sm:$0xf]
      %v238 = vld [vmem:[%s1 + $0x20] sm:$0xf]
      %v239 = vld [vmem:[%s1 + $0x24] sm:$0xf]
      %v240 = vld [vmem:[%s1 + $0x28] sm:$0xf]
      %v241 = vld [vmem:[%s1 + $0x2c] sm:$0xf]
      %v242 = vld [vmem:[%s1 + $0x30] sm:$0xf]
      %v243 = vld [vmem:[%s1 + $0x34] sm:$0xf]
      %v244 = vld [vmem:[%s1 + $0x38] sm:$0xf]
      %v245 = vld [vmem:[%s1 + $0x3c] sm:$0xf]
      %v246 = vld [vmem:[%s1 + $0x40] sm:$0xf]
      %v247 = vld [vmem:[%s1 + $0x44] sm:$0xf]
      %v248 = vld [vmem:[%s1 + $0x48] sm:$0xf]
      %v249 = vld [vmem:[%s1 + $0x4c] sm:$0xf]
      %v250 = vld [vmem:[%s1 + $0x50] sm:$0xf]
      %v251 = vld [vmem:[%s1 + $0x54] sm:$0xf]
      %v252 = vld [vmem:[%s1 + $0x58] sm:$0xf]
      %v253 = vld [vmem:[%s1 + $0x5c] sm:$0xf]
      %v254 = vld [vmem:[%s1 + $0x60] sm:$0xf]
      %v255 = vld [vmem:[%s1 + $0x64] sm:$0xf]
      %v256 = vld [vmem:[%s1 + $0x68] sm:$0xf]
      %v257 = vld [vmem:[%s1 + $0x6c] sm:$0xf]
      %v258 = vld [vmem:[%s1 + $0x70] sm:$0xf]
      %v259 = vld [vmem:[%s1 + $0x74] sm:$0xf]
      %v260 = vld [vmem:[%s1 + $0x78] sm:$0xf]
      %v261 = vld [vmem:[%s1 + $0x7c] sm:$0xf]
      %v270 = vunpack.c.l.b16 %v222
      %v271 = vunpack.c.h.b16 %v222
      %v272 = vunpack.c.l.b16 %v223
      %v273 = vunpack.c.h.b16 %v223
      %v274 = vunpack.c.l.b16 %v224
      %v275 = vunpack.c.h.b16 %v224
      %v276 = vunpack.c.l.b16 %v225
      %v277 = vunpack.c.h.b16 %v225
      %v278 = vunpack.c.l.b16 %v226
      %v279 = vunpack.c.h.b16 %v226
      %v280 = vunpack.c.l.b16 %v227
      %v281 = vunpack.c.h.b16 %v227
      %v282 = vunpack.c.l.b16 %v228
      %v283 = vunpack.c.h.b16 %v228
      %v284 = vunpack.c.l.b16 %v229
      %v285 = vunpack.c.h.b16 %v229
      %v286 = vpack.c.b16 %v272, %v270
      %v287 = vpack.c.b16 %v273, %v271
      %v288 = vpack.c.b16 %v276, %v274
      %v289 = vpack.c.b16 %v277, %v275
      %v290 = vpack.c.b16 %v280, %v278
      %v291 = vpack.c.b16 %v281, %v279
      %v292 = vpack.c.b16 %v284, %v282
      %v293 = vpack.c.b16 %v285, %v283
      %v334 = vunpack.c.l.b16 %v230
      %v335 = vunpack.c.l.b16 %v231
      %v336 = vunpack.c.l.b16 %v232
      %v337 = vunpack.c.l.b16 %v233
      %v338 = vunpack.c.l.b16 %v234
      %v339 = vunpack.c.l.b16 %v235
      %v340 = vunpack.c.l.b16 %v236
      %v341 = vunpack.c.l.b16 %v237
      %v342 = vunpack.c.l.b16 %v238
      %v343 = vunpack.c.l.b16 %v239
      %v344 = vunpack.c.l.b16 %v240
      %v345 = vunpack.c.l.b16 %v241
      %v346 = vunpack.c.l.b16 %v242
      %v347 = vunpack.c.l.b16 %v243
      %v348 = vunpack.c.l.b16 %v244
      %v349 = vunpack.c.l.b16 %v245
      %v350 = vunpack.c.l.b16 %v246
      %v351 = vunpack.c.l.b16 %v247
      %v352 = vunpack.c.l.b16 %v248
      %v353 = vunpack.c.l.b16 %v249
      %v354 = vunpack.c.l.b16 %v250
      %v355 = vunpack.c.l.b16 %v251
      %v356 = vunpack.c.l.b16 %v252
      %v357 = vunpack.c.l.b16 %v253
      %v358 = vunpack.c.l.b16 %v254
      %v359 = vunpack.c.l.b16 %v255
      %v360 = vunpack.c.l.b16 %v256
      %v361 = vunpack.c.l.b16 %v257
      %v362 = vunpack.c.l.b16 %v258
      %v363 = vunpack.c.l.b16 %v259
      %v364 = vunpack.c.l.b16 %v260
      %v365 = vunpack.c.l.b16 %v261
      %v366 = vpack.c.b16 %v335, %v334
      %v367 = vpack.c.b16 %v337, %v336
      %v368 = vpack.c.b16 %v339, %v338
      %v369 = vpack.c.b16 %v341, %v340
      %v370 = vpack.c.b16 %v343, %v342
      %v371 = vpack.c.b16 %v345, %v344
      %v372 = vpack.c.b16 %v347, %v346
      %v373 = vpack.c.b16 %v349, %v348
      %v374 = vpack.c.b16 %v351, %v350
      %v375 = vpack.c.b16 %v353, %v352
      %v376 = vpack.c.b16 %v355, %v354
      %v377 = vpack.c.b16 %v357, %v356
      %v378 = vpack.c.b16 %v359, %v358
      %v379 = vpack.c.b16 %v361, %v360
      %v380 = vpack.c.b16 %v363, %v362
      %v381 = vpack.c.b16 %v365, %v364
      %398 = vmatprep.subr.bf16.mxu0 0
      %399 = vmatpush1.bf16.msra.mxu0 %v373
      %400 = vmatprep.subr.bf16.mxu0 0
      %401 = vmatpush1.bf16.msra.mxu0 %v372
      %402 = vmatprep.subr.bf16.mxu0 0
      %403 = vmatpush1.bf16.msra.mxu0 %v371
      %404 = vmatprep.subr.bf16.mxu0 0
      %405 = vmatpush1.bf16.msra.mxu0 %v370
      %406 = vmatprep.subr.bf16.mxu0 0
      %407 = vmatpush1.bf16.msra.mxu0 %v369
      %408 = vmatprep.subr.bf16.mxu0 0
      %409 = vmatpush1.bf16.msra.mxu0 %v368
      %410 = vmatprep.subr.bf16.mxu0 0
      %411 = vmatpush1.bf16.msra.mxu0 %v367
      %412 = vmatprep.subr.bf16.mxu0 0
      %413 = vmatpush1.bf16.msra.mxu0 %v366
      %414 = vmatprep.subr.bf16.mxu0 0
      %415 = vmatpush2.bf16.msra.mxu0 %v381
      %416 = vmatprep.subr.bf16.mxu0 0
      %417 = vmatpush2.bf16.msra.mxu0 %v380
      %418 = vmatprep.subr.bf16.mxu0 0
      %419 = vmatpush2.bf16.msra.mxu0 %v379
      %420 = vmatprep.subr.bf16.mxu0 0
      %421 = vmatpush2.bf16.msra.mxu0 %v378
      %422 = vmatprep.subr.bf16.mxu0 0
      %423 = vmatpush2.bf16.msra.mxu0 %v377
      %424 = vmatprep.subr.bf16.mxu0 0
      %425 = vmatpush2.bf16.msra.mxu0 %v376
      %426 = vmatprep.subr.bf16.mxu0 0
      %427 = vmatpush2.bf16.msra.mxu0 %v375
      %428 = vmatprep.subr.bf16.mxu0 0
      %429 = vmatpush2.bf16.msra.mxu0 %v374
      %430 = vmatprep.mubr.bf16.mxu0 %v287
      %431 = vmatmul.mubr.bf16.gmra.mxu0 %v286
      %v432 = vpop.f32.mrf.mxu0
      %v433 = vadd.f32 0.0, %v432
      %v434 = vpop.f32.mrf.mxu0
      %v435 = vpop.f32.mrf.mxu0
      %v436 = vadd.f32 0.0, %v435
      %v437 = vpop.f32.mrf.mxu0
      %438 = vmatprep.mubr.bf16.mxu0 %v289
      %439 = vmatmul.mubr.bf16.gmra.mxu0 %v288
      %v440 = vpop.f32.mrf.mxu0
      %v441 = vadd.f32 0.0, %v440
      %v442 = vpop.f32.mrf.mxu0
      %v443 = vpop.f32.mrf.mxu0
      %v444 = vadd.f32 0.0, %v443
      %v445 = vpop.f32.mrf.mxu0
      %446 = vmatprep.mubr.bf16.mxu0 %v291
      %447 = vmatmul.mubr.bf16.gmra.mxu0 %v290
      %v448 = vpop.f32.mrf.mxu0
      %v449 = vadd.f32 0.0, %v448
      %v450 = vpop.f32.mrf.mxu0
      %v451 = vpop.f32.mrf.mxu0
      %v452 = vadd.f32 0.0, %v451
      %v453 = vpop.f32.mrf.mxu0
      %454 = vmatprep.mubr.bf16.mxu0 %v293
      %455 = vmatmul.mubr.bf16.gmra.mxu0 %v292
      %v456 = vpop.f32.mrf.mxu0
      %v457 = vadd.f32 0.0, %v456
      %v458 = vpop.f32.mrf.mxu0
      %v459 = vpop.f32.mrf.mxu0
      %v460 = vadd.f32 0.0, %v459
      %v461 = vpop.f32.mrf.mxu0
      %462 = vdwg.mxu0
      %v463 = vpack.c.bf16 %v436, %v433
      %v464 = vpack.c.bf16 %v444, %v441
      %v465 = vpack.c.bf16 %v452, %v449
      %v466 = vpack.c.bf16 %v460, %v457
      %v471 = vunpack.c.l.b16 %v463
      %v472 = vunpack.c.h.b16 %v463
      %v473 = vunpack.c.l.b16 %v464
      %v474 = vunpack.c.h.b16 %v464
      %v475 = vunpack.c.l.b16 %v465
      %v476 = vunpack.c.h.b16 %v465
      %v477 = vunpack.c.l.b16 %v466
      %v478 = vunpack.c.h.b16 %v466
      %v479 = vpack.c.b16 %v471, %v471
      %v480 = vpack.c.b16 %v472, %v472
      %v481 = vpack.c.b16 %v473, %v473
      %v482 = vpack.c.b16 %v474, %v474
      %v483 = vpack.c.b16 %v475, %v475
      %v484 = vpack.c.b16 %v476, %v476
      %v485 = vpack.c.b16 %v477, %v477
      %v486 = vpack.c.b16 %v478, %v478
      %vm495 = vcmask 257024
      %496 = vst.msk [vmem:[%s213] sm:$0xf] %vm495, %v479
      %497 = vst.msk [vmem:[%s213 + $0x4] sm:$0xf] %vm495, %v480
      %498 = vst.msk [vmem:[%s213 + $0x8] sm:$0xf] %vm495, %v481
      %499 = vst.msk [vmem:[%s213 + $0xc] sm:$0xf] %vm495, %v482
      %500 = vst.msk [vmem:[%s213 + $0x10] sm:$0xf] %vm495, %v483
      %501 = vst.msk [vmem:[%s213 + $0x14] sm:$0xf] %vm495, %v484
      %502 = vst.msk [vmem:[%s213 + $0x18] sm:$0xf] %vm495, %v485
      %503 = vst.msk [vmem:[%s213 + $0x1c] sm:$0xf] %vm495, %v486
      %vm504 = vcmask 261120
      %v505 = vsel %vm504, %v433, 0.0
      %v506 = vsel %vm504, %v436, 0.0
      %v507 = vadd.f32 %v505, %v506
      %v508 = vsel %vm504, %v441, 0.0
      %v509 = vadd.f32 %v507, %v508
      %v510 = vsel %vm504, %v444, 0.0
      %v511 = vadd.f32 %v509, %v510
      %v512 = vsel %vm504, %v449, 0.0
      %v513 = vadd.f32 %v511, %v512
      %v514 = vsel %vm504, %v452, 0.0
      %v515 = vadd.f32 %v513, %v514
      %v516 = vsel %vm504, %v457, 0.0
      %v517 = vadd.f32 %v515, %v516
      %v518 = vsel %vm504, %v460, 0.0
      %v519 = vadd.f32 %v517, %v518
      %v520 = vrot.slane %v519, 4
      %v521 = vadd.f32 %v519, %v520
      %v522 = vrot.slane %v521, 2
      %v523 = vadd.f32 %v521, %v522
      %v524 = vrot.slane %v523, 1
      %v525 = vadd.f32 %v523, %v524
      %vm526 = vcmask 253952
      %527 = vst.msk [vmem:[%s217] sm:$0x1] %vm526, %v525
      %v528 = vmul.f32 %v433, %v433
      %v529 = vmul.f32 %v436, %v436
      %v530 = vmul.f32 %v441, %v441
      %v531 = vmul.f32 %v444, %v444
      %v532 = vmul.f32 %v449, %v449
      %v533 = vmul.f32 %v452, %v452
      %v534 = vmul.f32 %v457, %v457
      %v535 = vmul.f32 %v460, %v460
      %v536 = vsel %vm504, %v528, 0.0
      %v537 = vsel %vm504, %v529, 0.0
      %v538 = vadd.f32 %v536, %v537
      %v539 = vsel %vm504, %v530, 0.0
      %v540 = vadd.f32 %v538, %v539
      %v541 = vsel %vm504, %v531, 0.0
      %v542 = vadd.f32 %v540, %v541
      %v543 = vsel %vm504, %v532, 0.0
      %v544 = vadd.f32 %v542, %v543
      %v545 = vsel %vm504, %v533, 0.0
      %v546 = vadd.f32 %v544, %v545
      %v547 = vsel %vm504, %v534, 0.0
      %v548 = vadd.f32 %v546, %v547
      %v549 = vsel %vm504, %v535, 0.0
      %v550 = vadd.f32 %v548, %v549
      %v551 = vrot.slane %v550, 4
      %v552 = vadd.f32 %v550, %v551
      %v553 = vrot.slane %v552, 2
      %v554 = vadd.f32 %v552, %v553
      %v555 = vrot.slane %v554, 1
      %v556 = vadd.f32 %v554, %v555
      %557 = vst.msk [vmem:[%s220] sm:$0x1] %vm526, %v556
      %s558 = smul.u32 8, %s16
      %p559 = scmp.lt.s32.totalorder %s558, 15
      %s560 = scalar_select %p559, %s558, 15
      %s561 = smul.addr %s560, 4
      %s562 = scalar_lea.vmem %s2, %s561
      %p563 = scmp.lt.s32.totalorder %s16, 1
      %s564 = scalar_select %p563, %s16, 1
      %s565 = scalar_lea.vmem %s3, %s564
      %p566 = scmp.lt.s32.totalorder %s16, 1
      %s567 = scalar_select %p566, %s16, 1
      %s568 = scalar_lea.vmem %s4, %s567
      // Predicated region
      $region29: #{forward.11} parent=27 // pred_check
        %p569 = pneg %p81
      $region30: #{forward.11} parent=27 // pred_check_branch
        %571 = sbr.rel (%p569) target = $region32
      $region31: #{forward.11} parent=27 // pred_region
        %s572 = smul.u32 8, %s16
      $region32: #{forward.11} parent=27 // pred_fallthru
        _
      // Predicated region
      $region33: #{forward.11} parent=27 // pred_check
        %p573 = pneg %p107
      $region34: #{forward.11} parent=27 // pred_check_branch
        %575 = sbr.rel (%p573) target = $region36
      $region35: #{forward.11} parent=27 // pred_region
        _
      $region36: #{forward.11} parent=27 // pred_fallthru
        _
      // Predicated region
      $region37: #{forward.11} parent=27 // pred_check
        %p576 = pneg %p133
      $region38: #{forward.11} parent=27 // pred_check_branch
        %578 = sbr.rel (%p576) target = $region40
      $region39: #{forward.11} parent=27 // pred_region
        _
      $region40: #{forward.11} parent=27 // pred_fallthru
        _
    $region28: #{forward.11} parent=5 // pred_fallthru
      _
    %p579 = scmp.le.s32.totalorder 2, %s11
    // Predicated region
    $region41: #{forward.11} parent=5 // pred_check
      %p580 = pneg %p579
    $region42: #{forward.11} parent=5 // pred_check_branch
      %582 = sbr.rel (%p580) target = $region44
    $region43: #{forward.11} parent=5 // pred_region
      %s583 = ssub.s32 %s11, 2
      // Predicated region
      $region45: #{forward.11} parent=43 // pred_check
        %p584 = pneg %p87
      $region46: #{forward.11} parent=43 // pred_check_branch
        %586 = sbr.rel (%p584) target = $region48
      $region47: #{forward.11} parent=43 // pred_region
        %s587 = smul.u32 8, %s17
        %p588 = scmp.lt.s32.totalorder %s587, 15
        %s589 = scalar_select %p588, %s587, 15
        %s590 = smul.addr %s589, 4
        %s591 = scalar_lea.vmem %s2, %s590
      $region48: #{forward.11} parent=43 // pred_fallthru
        _
      // Predicated region
      $region49: #{forward.11} parent=43 // pred_check
        %p592 = pneg %p113
      $region50: #{forward.11} parent=43 // pred_check_branch
        %594 = sbr.rel (%p592) target = $region52
      $region51: #{forward.11} parent=43 // pred_region
        %p595 = scmp.lt.s32.totalorder %s17, 1
        %s596 = scalar_select %p595, %s17, 1
        %s597 = scalar_lea.vmem %s3, %s596
      $region52: #{forward.11} parent=43 // pred_fallthru
        _
      // Predicated region
      $region53: #{forward.11} parent=43 // pred_check
        %p598 = pneg %p139
      $region54: #{forward.11} parent=43 // pred_check_branch
        %600 = sbr.rel (%p598) target = $region56
      $region55: #{forward.11} parent=43 // pred_region
        %p601 = scmp.lt.s32.totalorder %s17, 1
        %s602 = scalar_select %p601, %s17, 1
        %s603 = scalar_lea.vmem %s4, %s602
      $region56: #{forward.11} parent=43 // pred_fallthru
        _
    $region44: #{forward.11} parent=5 // pred_fallthru
      _
  $region6: #{forward.11} parent=0 // loop_footer
    %s15 = sadd.s32 1, %s11
  $region7: #{forward.11} parent=0 // loop_footer_branch
    %10 = sbr.rel target = $region3
  $region8: #{forward.11} parent=0 // loop_exit
    _

// kernel: forward.12
$region0: #{forward.12}
  #allocation0 [shape = 'u32[]', space=smem, size = 0x4, offset = 0x4, fixed_abs, tag = 'smem constant byte address 0x4 - core index']
  #allocation1 [shape = 'u32[144,128]{1,0:T(1,128)}', space=vmem, size = 0x12000, scoped, tag = 'internal scratch']
  %s0 = inlined_call_operand.vmem [shape: bf16[128,32], index: 0, kind: input, shape index: {}]
  %s1 = inlined_call_operand.vmem [shape: f32[2,32], index: 1, kind: input, shape index: {}]
  %s2 = inlined_call_operand.vmem [shape: bf16[128,32], index: 2, kind: output, shape index: {}]
  %s3 = sld [smem:[#allocation0]]
  $region41: #{forward.12} parent=0
    _
  %s5 = ssub.s32 1, %s3
  %s6 = scalar_select 0, %s5, %s3
  loop: start=0, step=1, limit=4
  $region2: #{forward.12} parent=0 // loop_pre_header
    _
  $region3: #{forward.12} parent=0 // loop_header
    %s8 = sphi 0, %s12
    %p9 = scmp.ge.s32.totalorder %s8, 4
    %s18 = sphi 0, %s20
    %s21 = sphi 0, %s18
    %s22 = sphi 0, %s21
    %s38 = sphi 0, %s22
    %s42 = sphi 0, %s42
    %s44 = sphi 0, %s42
    %s45 = sphi 0, %s44
    %s59 = sphi 0, %s45
    %s65 = sphi 0, %s67
    %s68 = sphi 0, %s65
    %s69 = sphi 0, %s68
    %s85 = sphi 0, %s69
  $region4: #{forward.12} parent=0 // loop_header_branch
    %11 = sbr.rel (%p9) target = $region8
  $region5: #{forward.12} parent=0 // loop_body
    %s13 = ssub.s32 %s8, 1
    %s14 = ssub.s32 %s8, 2
    %s15 = sadd.s32 %s8, 1
    %s16 = ssub.s32 %s8, %s15
    %p17 = scmp.eq.s32.totalorder %s16, 0
    %s19 = sadd.s32 %s18, 1
    %s20 = scalar_select %p17, %s18, %s19
    %p23 = pneg %p17
    %p24 = scmp.eq.s32.totalorder %s8, 1
    %p25 = por %p23, %p24
    %p26 = scmp.ne.s32.totalorder %s18, %s21
    %p27 = scmp.eq.s32.totalorder %s8, 0
    %p28 = por %p26, %p27
    %p29 = scmp.ne.s32.totalorder %s18, %s21
    %p30 = scmp.eq.s32.totalorder %s13, 1
    %p31 = por %p29, %p30
    %p32 = scmp.ne.s32.totalorder %s21, %s22
    %p33 = scmp.eq.s32.totalorder %s13, 0
    %p34 = por %p32, %p33
    %p35 = scmp.ne.s32.totalorder %s21, %s22
    %p36 = scmp.eq.s32.totalorder %s14, 1
    %p37 = por %p35, %p36
    %p39 = scmp.ne.s32.totalorder %s22, %s38
    %p40 = scmp.eq.s32.totalorder %s14, 0
    %p41 = por %p39, %p40
    %s43 = sadd.s32 %s42, 1
    %p46 = scmp.eq.s32.totalorder %s8, 1
    %p47 = scmp.ne.s32.totalorder %s42, %s44
    %p48 = scmp.eq.s32.totalorder %s8, 0
    %p49 = por %p47, %p48
    %p50 = scmp.ne.s32.totalorder %s42, %s44
    %p51 = scmp.eq.s32.totalorder %s13, 1
    %p52 = por %p50, %p51
    %p53 = scmp.ne.s32.totalorder %s44, %s45
    %p54 = scmp.eq.s32.totalorder %s13, 0
    %p55 = por %p53, %p54
    %p56 = scmp.ne.s32.totalorder %s44, %s45
    %p57 = scmp.eq.s32.totalorder %s14, 1
    %p58 = por %p56, %p57
    %p60 = scmp.ne.s32.totalorder %s45, %s59
    %p61 = scmp.eq.s32.totalorder %s14, 0
    %p62 = por %p60, %p61
    %s63 = ssub.s32 %s8, %s15
    %p64 = scmp.eq.s32.totalorder %s63, 0
    %s66 = sadd.s32 %s65, 1
    %s67 = scalar_select %p64, %s65, %s66
    %p70 = pneg %p64
    %p71 = scmp.eq.s32.totalorder %s8, 1
    %p72 = por %p70, %p71
    %p73 = scmp.ne.s32.totalorder %s65, %s68
    %p74 = scmp.eq.s32.totalorder %s8, 0
    %p75 = por %p73, %p74
    %p76 = scmp.ne.s32.totalorder %s65, %s68
    %p77 = scmp.eq.s32.totalorder %s13, 1
    %p78 = por %p76, %p77
    %p79 = scmp.ne.s32.totalorder %s68, %s69
    %p80 = scmp.eq.s32.totalorder %s13, 0
    %p81 = por %p79, %p80
    %p82 = scmp.ne.s32.totalorder %s68, %s69
    %p83 = scmp.eq.s32.totalorder %s14, 1
    %p84 = por %p82, %p83
    %p86 = scmp.ne.s32.totalorder %s69, %s85
    %p87 = scmp.eq.s32.totalorder %s14, 0
    %p88 = por %p86, %p87
    %p89 = scmp.le.s32.totalorder 1, %s8
    %p90 = scmp.lt.s32.totalorder %s8, 3
    %p91 = pnand %p89, %p90
    %p92 = pneg %p91
    // Predicated region
    $region9: #{forward.12} parent=5 // pred_check
      _
    $region10: #{forward.12} parent=5 // pred_check_branch
      %94 = sbr.rel (%p91) target = $region12
    $region11: #{forward.12} parent=5 // pred_region
      %s95 = ssub.s32 %s8, 1
      // Predicated region
      $region13: #{forward.12} parent=11 // pred_check
        %p96 = pneg %p55
      $region14: #{forward.12} parent=11 // pred_check_branch
        %98 = sbr.rel (%p96) target = $region16
      $region15: #{forward.12} parent=11 // pred_region
        _
      $region16: #{forward.12} parent=11 // pred_fallthru
        _
    $region12: #{forward.12} parent=5 // pred_fallthru
      _
    %p99 = scmp.lt.s32.totalorder %s8, 2
    // Predicated region
    $region17: #{forward.12} parent=5 // pred_check
      %p100 = pneg %p99
    $region18: #{forward.12} parent=5 // pred_check_branch
      %102 = sbr.rel (%p100) target = $region20
    $region19: #{forward.12} parent=5 // pred_region
      // Predicated region
      $region21: #{forward.12} parent=19 // pred_check
        %p103 = pneg %p28
      $region22: #{forward.12} parent=19 // pred_check_branch
        %105 = sbr.rel (%p103) target = $region24
      $region23: #{forward.12} parent=19 // pred_region
        %s106 = smul.u32 8, %s8
        %p107 = scmp.lt.s32.totalorder %s106, 15
        %s108 = scalar_select %p107, %s106, 15
        %s109 = smul.addr %s108, 4
        %s110 = scalar_lea.vmem %s0, %s109
        %s111 = smul.u32 8, %s8
      $region24: #{forward.12} parent=19 // pred_fallthru
        _
    $region20: #{forward.12} parent=5 // pred_fallthru
      _
    %p112 = scmp.le.s32.totalorder 1, %s8
    %p113 = scmp.lt.s32.totalorder %s8, 3
    %p114 = pnand %p112, %p113
    %p115 = pneg %p114
    // Predicated region
    $region25: #{forward.12} parent=5 // pred_check
      _
    $region26: #{forward.12} parent=5 // pred_check_branch
      %117 = sbr.rel (%p114) target = $region28
    $region27: #{forward.12} parent=5 // pred_region
      %s118 = ssub.s32 %s8, 1
      %s119 = smul.u32 8, %s13
      %p120 = scmp.lt.s32.totalorder %s119, 15
      %s121 = scalar_select %p120, %s119, 15
      %s122 = smul.addr %s121, 4
      %s123 = scalar_lea.vmem %s0, %s122
      %p124 = pneg %p34
      %p125 = pneg %p31
      %p126 = pneg %p55
      %p127 = pneg %p52
      %p128 = pneg %p81
      %p129 = pneg %p78
      %s130 = smul.u32 8, %s13
      %p131 = scmp.lt.s32.totalorder %s130, 15
      %s132 = scalar_select %p131, %s130, 15
      %s133 = smul.addr %s132, 4
      %s134 = scalar_lea.vmem %s2, %s133
      %s135 = smul.u32 8, %s13
      %p136 = scmp.lt.s32.totalorder %s135, 15
      %s137 = scalar_select %p136, %s135, 15
      %s138 = smul.addr %s137, 4
      %s139 = scalar_lea.vmem %s0, %s138
      %s140 = smul.u32 8, %s13
      %s141 = smul.u32 8, %s13
      %p142 = scmp.lt.s32.totalorder %s141, 15
      %s143 = scalar_select %p142, %s141, 15
      %s144 = smul.addr %s143, 4
      %s145 = scalar_lea.vmem %s2, %s144
      %s146 = smul.u32 8, %s13
      %v147 = vld [vmem:[%s1] sm:$0x3]
      %v148 = vld [vmem:[%s139] sm:$0xf]
      %v149 = vld [vmem:[%s139 + $0x4] sm:$0xf]
      %v150 = vld [vmem:[%s139 + $0x8] sm:$0xf]
      %v151 = vld [vmem:[%s139 + $0xc] sm:$0xf]
      %v152 = vld [vmem:[%s139 + $0x10] sm:$0xf]
      %v153 = vld [vmem:[%s139 + $0x14] sm:$0xf]
      %v154 = vld [vmem:[%s139 + $0x18] sm:$0xf]
      %v155 = vld [vmem:[%s139 + $0x1c] sm:$0xf]
      %v156 = vunpack.c.l.bf16 %v148
      %v157 = vunpack.c.l.bf16 %v149
      %v158 = vunpack.c.l.bf16 %v150
      %v159 = vunpack.c.l.bf16 %v151
      %v160 = vunpack.c.l.bf16 %v152
      %v161 = vunpack.c.l.bf16 %v153
      %v162 = vunpack.c.l.bf16 %v154
      %v163 = vunpack.c.l.bf16 %v155
      %v164 = vlaneseq
      %v165 = vshrl.u32 %v164, 7
      %v166 = vsub.s32 0, %v165
      %v167 = vrot.slane %v147, %v166
      %v168 = vmul.f32 %v156, %v167
      %v169 = vmul.f32 %v157, %v167
      %v170 = vmul.f32 %v158, %v167
      %v171 = vmul.f32 %v159, %v167
      %v172 = vmul.f32 %v160, %v167
      %v173 = vmul.f32 %v161, %v167
      %v174 = vmul.f32 %v162, %v167
      %v175 = vmul.f32 %v163, %v167
      %v176 = vlaneseq
      %v177 = vshrl.u32 %v176, 7
      %v178 = vsub.s32 1, %v177
      %v179 = vrot.slane %v147, %v178
      %v180 = vadd.f32 %v168, %v179
      %v181 = vadd.f32 %v169, %v179
      %v182 = vadd.f32 %v170, %v179
      %v183 = vadd.f32 %v171, %v179
      %v184 = vadd.f32 %v172, %v179
      %v185 = vadd.f32 %v173, %v179
      %v186 = vadd.f32 %v174, %v179
      %v187 = vadd.f32 %v175, %v179
      %vm188 = vcmp.gt.f32.partialorder %v180, 0.0
      %vm189 = vcmp.gt.f32.partialorder %v181, 0.0
      %vm190 = vcmp.gt.f32.partialorder %v182, 0.0
      %vm191 = vcmp.gt.f32.partialorder %v183, 0.0
      %vm192 = vcmp.gt.f32.partialorder %v184, 0.0
      %vm193 = vcmp.gt.f32.partialorder %v185, 0.0
      %vm194 = vcmp.gt.f32.partialorder %v186, 0.0
      %vm195 = vcmp.gt.f32.partialorder %v187, 0.0
      %v196 = vmul.f32 %v180, 0.2
      %v197 = vmul.f32 %v181, 0.2
      %v198 = vmul.f32 %v182, 0.2
      %v199 = vmul.f32 %v183, 0.2
      %v200 = vmul.f32 %v184, 0.2
      %v201 = vmul.f32 %v185, 0.2
      %v202 = vmul.f32 %v186, 0.2
      %v203 = vmul.f32 %v187, 0.2
      %v204 = vsel %vm188, %v180, %v196
      %v205 = vsel %vm189, %v181, %v197
      %v206 = vsel %vm190, %v182, %v198
      %v207 = vsel %vm191, %v183, %v199
      %v208 = vsel %vm192, %v184, %v200
      %v209 = vsel %vm193, %v185, %v201
      %v210 = vsel %vm194, %v186, %v202
      %v211 = vsel %vm195, %v187, %v203
      %v212 = vpack.c.bf16 %v205, %v204
      %v213 = vpack.c.bf16 %v207, %v206
      %v214 = vpack.c.bf16 %v209, %v208
      %v215 = vpack.c.bf16 %v211, %v210
      %v220 = vunpack.c.l.b16 %v212
      %v221 = vunpack.c.h.b16 %v212
      %v222 = vunpack.c.l.b16 %v213
      %v223 = vunpack.c.h.b16 %v213
      %v224 = vunpack.c.l.b16 %v214
      %v225 = vunpack.c.h.b16 %v214
      %v226 = vunpack.c.l.b16 %v215
      %v227 = vunpack.c.h.b16 %v215
      %v228 = vpack.c.b16 %v220, %v220
      %v229 = vpack.c.b16 %v221, %v221
      %v230 = vpack.c.b16 %v222, %v222
      %v231 = vpack.c.b16 %v223, %v223
      %v232 = vpack.c.b16 %v224, %v224
      %v233 = vpack.c.b16 %v225, %v225
      %v234 = vpack.c.b16 %v226, %v226
      %v235 = vpack.c.b16 %v227, %v227
      %vm244 = vcmask 257024
      %245 = vst.msk [vmem:[%s145] sm:$0xf] %vm244, %v228
      %246 = vst.msk [vmem:[%s145 + $0x4] sm:$0xf] %vm244, %v229
      %247 = vst.msk [vmem:[%s145 + $0x8] sm:$0xf] %vm244, %v230
      %248 = vst.msk [vmem:[%s145 + $0xc] sm:$0xf] %vm244, %v231
      %249 = vst.msk [vmem:[%s145 + $0x10] sm:$0xf] %vm244, %v232
      %250 = vst.msk [vmem:[%s145 + $0x14] sm:$0xf] %vm244, %v233
      %251 = vst.msk [vmem:[%s145 + $0x18] sm:$0xf] %vm244, %v234
      %252 = vst.msk [vmem:[%s145 + $0x1c] sm:$0xf] %vm244, %v235
      %s253 = smul.u32 8, %s13
      %p254 = scmp.lt.s32.totalorder %s253, 15
      %s255 = scalar_select %p254, %s253, 15
      %s256 = smul.addr %s255, 4
      %s257 = scalar_lea.vmem %s2, %s256
      // Predicated region
      $region29: #{forward.12} parent=27 // pred_check
        %p258 = pneg %p78
      $region30: #{forward.12} parent=27 // pred_check_branch
        %260 = sbr.rel (%p258) target = $region32
      $region31: #{forward.12} parent=27 // pred_region
        %s261 = smul.u32 8, %s13
      $region32: #{forward.12} parent=27 // pred_fallthru
        _
    $region28: #{forward.12} parent=5 // pred_fallthru
      _
    %p262 = scmp.le.s32.totalorder 2, %s8
    // Predicated region
    $region33: #{forward.12} parent=5 // pred_check
      %p263 = pneg %p262
    $region34: #{forward.12} parent=5 // pred_check_branch
      %265 = sbr.rel (%p263) target = $region36
    $region35: #{forward.12} parent=5 // pred_region
      %s266 = ssub.s32 %s8, 2
      // Predicated region
      $region37: #{forward.12} parent=35 // pred_check
        %p267 = pneg %p84
      $region38: #{forward.12} parent=35 // pred_check_branch
        %269 = sbr.rel (%p267) target = $region40
      $region39: #{forward.12} parent=35 // pred_region
        %s270 = smul.u32 8, %s14
        %p271 = scmp.lt.s32.totalorder %s270, 15
        %s272 = scalar_select %p271, %s270, 15
        %s273 = smul.addr %s272, 4
        %s274 = scalar_lea.vmem %s2, %s273
      $region40: #{forward.12} parent=35 // pred_fallthru
        _
    $region36: #{forward.12} parent=5 // pred_fallthru
      _
  $region6: #{forward.12} parent=0 // loop_footer
    %s12 = sadd.s32 1, %s8
  $region7: #{forward.12} parent=0 // loop_footer_branch
    %7 = sbr.rel target = $region3
  $region8: #{forward.12} parent=0 // loop_exit
    _

// kernel: forward.14
$region0: #{forward.14}
  #allocation0 [shape = 'u32[]', space=smem, size = 0x4, offset = 0x4, fixed_abs, tag = 'smem constant byte address 0x4 - core index']
  #allocation1 [shape = 'u32[144,128]{1,0:T(1,128)}', space=vmem, size = 0x12000, scoped, tag = 'internal scratch']
  %s0 = inlined_call_operand.vmem [shape: bf16[32,64], index: 0, kind: input, shape index: {}]
  %s1 = inlined_call_operand.vmem [shape: f32[2,64], index: 1, kind: input, shape index: {}]
  %s2 = inlined_call_operand.vmem [shape: bf16[32,64], index: 2, kind: output, shape index: {}]
  %s3 = sld [smem:[#allocation0]]
  $region41: #{forward.14} parent=0
    _
  %s5 = ssub.s32 1, %s3
  %s6 = scalar_select 0, %s5, %s3
  loop: start=0, step=1, limit=4
  $region2: #{forward.14} parent=0 // loop_pre_header
    _
  $region3: #{forward.14} parent=0 // loop_header
    %s8 = sphi 0, %s12
    %p9 = scmp.ge.s32.totalorder %s8, 4
    %s18 = sphi 0, %s20
    %s21 = sphi 0, %s18
    %s22 = sphi 0, %s21
    %s38 = sphi 0, %s22
    %s42 = sphi 0, %s42
    %s44 = sphi 0, %s42
    %s45 = sphi 0, %s44
    %s59 = sphi 0, %s45
    %s65 = sphi 0, %s67
    %s68 = sphi 0, %s65
    %s69 = sphi 0, %s68
    %s85 = sphi 0, %s69
  $region4: #{forward.14} parent=0 // loop_header_branch
    %11 = sbr.rel (%p9) target = $region8
  $region5: #{forward.14} parent=0 // loop_body
    %s13 = ssub.s32 %s8, 1
    %s14 = ssub.s32 %s8, 2
    %s15 = sadd.s32 %s8, 1
    %s16 = ssub.s32 %s8, %s15
    %p17 = scmp.eq.s32.totalorder %s16, 0
    %s19 = sadd.s32 %s18, 1
    %s20 = scalar_select %p17, %s18, %s19
    %p23 = pneg %p17
    %p24 = scmp.eq.s32.totalorder %s8, 1
    %p25 = por %p23, %p24
    %p26 = scmp.ne.s32.totalorder %s18, %s21
    %p27 = scmp.eq.s32.totalorder %s8, 0
    %p28 = por %p26, %p27
    %p29 = scmp.ne.s32.totalorder %s18, %s21
    %p30 = scmp.eq.s32.totalorder %s13, 1
    %p31 = por %p29, %p30
    %p32 = scmp.ne.s32.totalorder %s21, %s22
    %p33 = scmp.eq.s32.totalorder %s13, 0
    %p34 = por %p32, %p33
    %p35 = scmp.ne.s32.totalorder %s21, %s22
    %p36 = scmp.eq.s32.totalorder %s14, 1
    %p37 = por %p35, %p36
    %p39 = scmp.ne.s32.totalorder %s22, %s38
    %p40 = scmp.eq.s32.totalorder %s14, 0
    %p41 = por %p39, %p40
    %s43 = sadd.s32 %s42, 1
    %p46 = scmp.eq.s32.totalorder %s8, 1
    %p47 = scmp.ne.s32.totalorder %s42, %s44
    %p48 = scmp.eq.s32.totalorder %s8, 0
    %p49 = por %p47, %p48
    %p50 = scmp.ne.s32.totalorder %s42, %s44
    %p51 = scmp.eq.s32.totalorder %s13, 1
    %p52 = por %p50, %p51
    %p53 = scmp.ne.s32.totalorder %s44, %s45
    %p54 = scmp.eq.s32.totalorder %s13, 0
    %p55 = por %p53, %p54
    %p56 = scmp.ne.s32.totalorder %s44, %s45
    %p57 = scmp.eq.s32.totalorder %s14, 1
    %p58 = por %p56, %p57
    %p60 = scmp.ne.s32.totalorder %s45, %s59
    %p61 = scmp.eq.s32.totalorder %s14, 0
    %p62 = por %p60, %p61
    %s63 = ssub.s32 %s8, %s15
    %p64 = scmp.eq.s32.totalorder %s63, 0
    %s66 = sadd.s32 %s65, 1
    %s67 = scalar_select %p64, %s65, %s66
    %p70 = pneg %p64
    %p71 = scmp.eq.s32.totalorder %s8, 1
    %p72 = por %p70, %p71
    %p73 = scmp.ne.s32.totalorder %s65, %s68
    %p74 = scmp.eq.s32.totalorder %s8, 0
    %p75 = por %p73, %p74
    %p76 = scmp.ne.s32.totalorder %s65, %s68
    %p77 = scmp.eq.s32.totalorder %s13, 1
    %p78 = por %p76, %p77
    %p79 = scmp.ne.s32.totalorder %s68, %s69
    %p80 = scmp.eq.s32.totalorder %s13, 0
    %p81 = por %p79, %p80
    %p82 = scmp.ne.s32.totalorder %s68, %s69
    %p83 = scmp.eq.s32.totalorder %s14, 1
    %p84 = por %p82, %p83
    %p86 = scmp.ne.s32.totalorder %s69, %s85
    %p87 = scmp.eq.s32.totalorder %s14, 0
    %p88 = por %p86, %p87
    %p89 = scmp.le.s32.totalorder 1, %s8
    %p90 = scmp.lt.s32.totalorder %s8, 3
    %p91 = pnand %p89, %p90
    %p92 = pneg %p91
    // Predicated region
    $region9: #{forward.14} parent=5 // pred_check
      _
    $region10: #{forward.14} parent=5 // pred_check_branch
      %94 = sbr.rel (%p91) target = $region12
    $region11: #{forward.14} parent=5 // pred_region
      %s95 = ssub.s32 %s8, 1
      // Predicated region
      $region13: #{forward.14} parent=11 // pred_check
        %p96 = pneg %p55
      $region14: #{forward.14} parent=11 // pred_check_branch
        %98 = sbr.rel (%p96) target = $region16
      $region15: #{forward.14} parent=11 // pred_region
        _
      $region16: #{forward.14} parent=11 // pred_fallthru
        _
    $region12: #{forward.14} parent=5 // pred_fallthru
      _
    %p99 = scmp.lt.s32.totalorder %s8, 2
    // Predicated region
    $region17: #{forward.14} parent=5 // pred_check
      %p100 = pneg %p99
    $region18: #{forward.14} parent=5 // pred_check_branch
      %102 = sbr.rel (%p100) target = $region20
    $region19: #{forward.14} parent=5 // pred_region
      // Predicated region
      $region21: #{forward.14} parent=19 // pred_check
        %p103 = pneg %p28
      $region22: #{forward.14} parent=19 // pred_check_branch
        %105 = sbr.rel (%p103) target = $region24
      $region23: #{forward.14} parent=19 // pred_region
        %s106 = smul.u32 2, %s8
        %p107 = scmp.lt.s32.totalorder %s106, 3
        %s108 = scalar_select %p107, %s106, 3
        %s109 = smul.addr %s108, 4
        %s110 = scalar_lea.vmem %s0, %s109
        %s111 = smul.u32 2, %s8
      $region24: #{forward.14} parent=19 // pred_fallthru
        _
    $region20: #{forward.14} parent=5 // pred_fallthru
      _
    %p112 = scmp.le.s32.totalorder 1, %s8
    %p113 = scmp.lt.s32.totalorder %s8, 3
    %p114 = pnand %p112, %p113
    %p115 = pneg %p114
    // Predicated region
    $region25: #{forward.14} parent=5 // pred_check
      _
    $region26: #{forward.14} parent=5 // pred_check_branch
      %117 = sbr.rel (%p114) target = $region28
    $region27: #{forward.14} parent=5 // pred_region
      %s118 = ssub.s32 %s8, 1
      %s119 = smul.u32 2, %s13
      %p120 = scmp.lt.s32.totalorder %s119, 3
      %s121 = scalar_select %p120, %s119, 3
      %s122 = smul.addr %s121, 4
      %s123 = scalar_lea.vmem %s0, %s122
      %p124 = pneg %p34
      %p125 = pneg %p31
      %p126 = pneg %p55
      %p127 = pneg %p52
      %p128 = pneg %p81
      %p129 = pneg %p78
      %s130 = smul.u32 2, %s13
      %p131 = scmp.lt.s32.totalorder %s130, 3
      %s132 = scalar_select %p131, %s130, 3
      %s133 = smul.addr %s132, 4
      %s134 = scalar_lea.vmem %s2, %s133
      %s135 = smul.u32 2, %s13
      %p136 = scmp.lt.s32.totalorder %s135, 3
      %s137 = scalar_select %p136, %s135, 3
      %s138 = smul.addr %s137, 4
      %s139 = scalar_lea.vmem %s0, %s138
      %s140 = smul.u32 2, %s13
      %s141 = smul.u32 2, %s13
      %p142 = scmp.lt.s32.totalorder %s141, 3
      %s143 = scalar_select %p142, %s141, 3
      %s144 = smul.addr %s143, 4
      %s145 = scalar_lea.vmem %s2, %s144
      %s146 = smul.u32 2, %s13
      %v147 = vld [vmem:[%s1] sm:$0x3]
      %v148 = vld [vmem:[%s139] sm:$0xf]
      %v149 = vld [vmem:[%s139 + $0x4] sm:$0xf]
      %v150 = vunpack.c.l.bf16 %v148
      %v151 = vunpack.c.l.bf16 %v149
      %v152 = vlaneseq
      %v153 = vshrl.u32 %v152, 7
      %v154 = vsub.s32 0, %v153
      %v155 = vrot.slane %v147, %v154
      %v156 = vmul.f32 %v150, %v155
      %v157 = vmul.f32 %v151, %v155
      %v158 = vlaneseq
      %v159 = vshrl.u32 %v158, 7
      %v160 = vsub.s32 1, %v159
      %v161 = vrot.slane %v147, %v160
      %v162 = vadd.f32 %v156, %v161
      %v163 = vadd.f32 %v157, %v161
      %vm164 = vcmp.gt.f32.partialorder %v162, 0.0
      %vm165 = vcmp.gt.f32.partialorder %v163, 0.0
      %v166 = vmul.f32 %v162, 0.2
      %v167 = vmul.f32 %v163, 0.2
      %v168 = vsel %vm164, %v162, %v166
      %v169 = vsel %vm165, %v163, %v167
      %v170 = vpack.c.bf16 %v169, %v168
      %v172 = vunpack.c.l.b16 %v170
      %v173 = vunpack.c.h.b16 %v170
      %v174 = vpack.c.b16 %v172, %v172
      %v175 = vpack.c.b16 %v173, %v173
      %vm178 = vcmask 519168
      %179 = vst.msk [vmem:[%s145] sm:$0xf] %vm178, %v174
      %180 = vst.msk [vmem:[%s145 + $0x4] sm:$0xf] %vm178, %v175
      %s181 = smul.u32 2, %s13
      %p182 = scmp.lt.s32.totalorder %s181, 3
      %s183 = scalar_select %p182, %s181, 3
      %s184 = smul.addr %s183, 4
      %s185 = scalar_lea.vmem %s2, %s184
      // Predicated region
      $region29: #{forward.14} parent=27 // pred_check
        %p186 = pneg %p78
      $region30: #{forward.14} parent=27 // pred_check_branch
        %188 = sbr.rel (%p186) target = $region32
      $region31: #{forward.14} parent=27 // pred_region
        %s189 = smul.u32 2, %s13
      $region32: #{forward.14} parent=27 // pred_fallthru
        _
    $region28: #{forward.14} parent=5 // pred_fallthru
      _
    %p190 = scmp.le.s32.totalorder 2, %s8
    // Predicated region
    $region33: #{forward.14} parent=5 // pred_check
      %p191 = pneg %p190
    $region34: #{forward.14} parent=5 // pred_check_branch
      %193 = sbr.rel (%p191) target = $region36
    $region35: #{forward.14} parent=5 // pred_region
      %s194 = ssub.s32 %s8, 2
      // Predicated region
      $region37: #{forward.14} parent=35 // pred_check
        %p195 = pneg %p84
      $region38: #{forward.14} parent=35 // pred_check_branch
        %197 = sbr.rel (%p195) target = $region40
      $region39: #{forward.14} parent=35 // pred_region
        %s198 = smul.u32 2, %s14
        %p199 = scmp.lt.s32.totalorder %s198, 3
        %s200 = scalar_select %p199, %s198, 3
        %s201 = smul.addr %s200, 4
        %s202 = scalar_lea.vmem %s2, %s201
      $region40: #{forward.14} parent=35 // pred_fallthru
        _
    $region36: #{forward.14} parent=5 // pred_fallthru
      _
  $region6: #{forward.14} parent=0 // loop_footer
    %s12 = sadd.s32 1, %s8
  $region7: #{forward.14} parent=0 // loop_footer_branch
    %7 = sbr.rel target = $region3
  $region8: #{forward.14} parent=0 // loop_exit
    _

// kernel: forward.13
$region0: #{forward.13}
  #allocation0 [shape = 'u32[]', space=smem, size = 0x4, offset = 0x4, fixed_abs, tag = 'smem constant byte address 0x4 - core index']
  #allocation1 [shape = 'u32[144,128]{1,0:T(1,128)}', space=vmem, size = 0x12000, scoped, tag = 'internal scratch']
  %s0 = inlined_call_operand.vmem [shape: bf16[32,512], index: 0, kind: input, shape index: {}]
  %s1 = inlined_call_operand.vmem [shape: bf16[512,64], index: 1, kind: input, shape index: {}]
  %s2 = inlined_call_operand.vmem [shape: bf16[32,64], index: 2, kind: output, shape index: {0}]
  %s3 = inlined_call_operand.vmem [shape: f32[2,1,64], index: 3, kind: output, shape index: {1}]
  %s4 = inlined_call_operand.vmem [shape: f32[2,1,64], index: 4, kind: output, shape index: {2}]
  %5 = xla_tuple %s2, %s3, %s4
  %s6 = sld [smem:[#allocation0]]
  $region57: #{forward.13} parent=0
    _
  %s8 = ssub.s32 1, %s6
  %s9 = scalar_select 0, %s8, %s6
  loop: start=0, step=1, limit=4
  $region2: #{forward.13} parent=0 // loop_pre_header
    _
  $region3: #{forward.13} parent=0 // loop_header
    %s11 = sphi 0, %s15
    %p12 = scmp.ge.s32.totalorder %s11, 4
    %s21 = sphi 0, %s23
    %s24 = sphi 0, %s21
    %s25 = sphi 0, %s24
    %s41 = sphi 0, %s25
    %s45 = sphi 0, %s45
    %s47 = sphi 0, %s45
    %s48 = sphi 0, %s47
    %s62 = sphi 0, %s48
    %s68 = sphi 0, %s70
    %s71 = sphi 0, %s68
    %s72 = sphi 0, %s71
    %s88 = sphi 0, %s72
    %s94 = sphi 0, %s96
    %s97 = sphi 0, %s94
    %s98 = sphi 0, %s97
    %s114 = sphi 0, %s98
    %s120 = sphi 0, %s122
    %s123 = sphi 0, %s120
    %s124 = sphi 0, %s123
    %s140 = sphi 0, %s124
  $region4: #{forward.13} parent=0 // loop_header_branch
    %14 = sbr.rel (%p12) target = $region8
  $region5: #{forward.13} parent=0 // loop_body
    %s16 = ssub.s32 %s11, 1
    %s17 = ssub.s32 %s11, 2
    %s18 = sadd.s32 %s11, 1
    %s19 = ssub.s32 %s11, %s18
    %p20 = scmp.eq.s32.totalorder %s19, 0
    %s22 = sadd.s32 %s21, 1
    %s23 = scalar_select %p20, %s21, %s22
    %p26 = pneg %p20
    %p27 = scmp.eq.s32.totalorder %s11, 1
    %p28 = por %p26, %p27
    %p29 = scmp.ne.s32.totalorder %s21, %s24
    %p30 = scmp.eq.s32.totalorder %s11, 0
    %p31 = por %p29, %p30
    %p32 = scmp.ne.s32.totalorder %s21, %s24
    %p33 = scmp.eq.s32.totalorder %s16, 1
    %p34 = por %p32, %p33
    %p35 = scmp.ne.s32.totalorder %s24, %s25
    %p36 = scmp.eq.s32.totalorder %s16, 0
    %p37 = por %p35, %p36
    %p38 = scmp.ne.s32.totalorder %s24, %s25
    %p39 = scmp.eq.s32.totalorder %s17, 1
    %p40 = por %p38, %p39
    %p42 = scmp.ne.s32.totalorder %s25, %s41
    %p43 = scmp.eq.s32.totalorder %s17, 0
    %p44 = por %p42, %p43
    %s46 = sadd.s32 %s45, 1
    %p49 = scmp.eq.s32.totalorder %s11, 1
    %p50 = scmp.ne.s32.totalorder %s45, %s47
    %p51 = scmp.eq.s32.totalorder %s11, 0
    %p52 = por %p50, %p51
    %p53 = scmp.ne.s32.totalorder %s45, %s47
    %p54 = scmp.eq.s32.totalorder %s16, 1
    %p55 = por %p53, %p54
    %p56 = scmp.ne.s32.totalorder %s47, %s48
    %p57 = scmp.eq.s32.totalorder %s16, 0
    %p58 = por %p56, %p57
    %p59 = scmp.ne.s32.totalorder %s47, %s48
    %p60 = scmp.eq.s32.totalorder %s17, 1
    %p61 = por %p59, %p60
    %p63 = scmp.ne.s32.totalorder %s48, %s62
    %p64 = scmp.eq.s32.totalorder %s17, 0
    %p65 = por %p63, %p64
    %s66 = ssub.s32 %s11, %s18
    %p67 = scmp.eq.s32.totalorder %s66, 0
    %s69 = sadd.s32 %s68, 1
    %s70 = scalar_select %p67, %s68, %s69
    %p73 = pneg %p67
    %p74 = scmp.eq.s32.totalorder %s11, 1
    %p75 = por %p73, %p74
    %p76 = scmp.ne.s32.totalorder %s68, %s71
    %p77 = scmp.eq.s32.totalorder %s11, 0
    %p78 = por %p76, %p77
    %p79 = scmp.ne.s32.totalorder %s68, %s71
    %p80 = scmp.eq.s32.totalorder %s16, 1
    %p81 = por %p79, %p80
    %p82 = scmp.ne.s32.totalorder %s71, %s72
    %p83 = scmp.eq.s32.totalorder %s16, 0
    %p84 = por %p82, %p83
    %p85 = scmp.ne.s32.totalorder %s71, %s72
    %p86 = scmp.eq.s32.totalorder %s17, 1
    %p87 = por %p85, %p86
    %p89 = scmp.ne.s32.totalorder %s72, %s88
    %p90 = scmp.eq.s32.totalorder %s17, 0
    %p91 = por %p89, %p90
    %s92 = ssub.s32 %s11, %s18
    %p93 = scmp.eq.s32.totalorder %s92, 0
    %s95 = sadd.s32 %s94, 1
    %s96 = scalar_select %p93, %s94, %s95
    %p99 = pneg %p93
    %p100 = scmp.eq.s32.totalorder %s11, 1
    %p101 = por %p99, %p100
    %p102 = scmp.ne.s32.totalorder %s94, %s97
    %p103 = scmp.eq.s32.totalorder %s11, 0
    %p104 = por %p102, %p103
    %p105 = scmp.ne.s32.totalorder %s94, %s97
    %p106 = scmp.eq.s32.totalorder %s16, 1
    %p107 = por %p105, %p106
    %p108 = scmp.ne.s32.totalorder %s97, %s98
    %p109 = scmp.eq.s32.totalorder %s16, 0
    %p110 = por %p108, %p109
    %p111 = scmp.ne.s32.totalorder %s97, %s98
    %p112 = scmp.eq.s32.totalorder %s17, 1
    %p113 = por %p111, %p112
    %p115 = scmp.ne.s32.totalorder %s98, %s114
    %p116 = scmp.eq.s32.totalorder %s17, 0
    %p117 = por %p115, %p116
    %s118 = ssub.s32 %s11, %s18
    %p119 = scmp.eq.s32.totalorder %s118, 0
    %s121 = sadd.s32 %s120, 1
    %s122 = scalar_select %p119, %s120, %s121
    %p125 = pneg %p119
    %p126 = scmp.eq.s32.totalorder %s11, 1
    %p127 = por %p125, %p126
    %p128 = scmp.ne.s32.totalorder %s120, %s123
    %p129 = scmp.eq.s32.totalorder %s11, 0
    %p130 = por %p128, %p129
    %p131 = scmp.ne.s32.totalorder %s120, %s123
    %p132 = scmp.eq.s32.totalorder %s16, 1
    %p133 = por %p131, %p132
    %p134 = scmp.ne.s32.totalorder %s123, %s124
    %p135 = scmp.eq.s32.totalorder %s16, 0
    %p136 = por %p134, %p135
    %p137 = scmp.ne.s32.totalorder %s123, %s124
    %p138 = scmp.eq.s32.totalorder %s17, 1
    %p139 = por %p137, %p138
    %p141 = scmp.ne.s32.totalorder %s124, %s140
    %p142 = scmp.eq.s32.totalorder %s17, 0
    %p143 = por %p141, %p142
    %p144 = scmp.le.s32.totalorder 1, %s11
    %p145 = scmp.lt.s32.totalorder %s11, 3
    %p146 = pnand %p144, %p145
    %p147 = pneg %p146
    // Predicated region
    $region9: #{forward.13} parent=5 // pred_check
      _
    $region10: #{forward.13} parent=5 // pred_check_branch
      %149 = sbr.rel (%p146) target = $region12
    $region11: #{forward.13} parent=5 // pred_region
      %s150 = ssub.s32 %s11, 1
      // Predicated region
      $region13: #{forward.13} parent=11 // pred_check
        %p151 = pneg %p58
      $region14: #{forward.13} parent=11 // pred_check_branch
        %153 = sbr.rel (%p151) target = $region16
      $region15: #{forward.13} parent=11 // pred_region
        _
      $region16: #{forward.13} parent=11 // pred_fallthru
        _
    $region12: #{forward.13} parent=5 // pred_fallthru
      _
    %p154 = scmp.lt.s32.totalorder %s11, 2
    // Predicated region
    $region17: #{forward.13} parent=5 // pred_check
      %p155 = pneg %p154
    $region18: #{forward.13} parent=5 // pred_check_branch
      %157 = sbr.rel (%p155) target = $region20
    $region19: #{forward.13} parent=5 // pred_region
      // Predicated region
      $region21: #{forward.13} parent=19 // pred_check
        %p158 = pneg %p31
      $region22: #{forward.13} parent=19 // pred_check_branch
        %160 = sbr.rel (%p158) target = $region24
      $region23: #{forward.13} parent=19 // pred_region
        %s161 = smul.u32 2, %s11
        %p162 = scmp.lt.s32.totalorder %s161, 3
        %s163 = scalar_select %p162, %s161, 3
        %s164 = smul.addr %s163, 4
        %s165 = smul.addr %s164, 4
        %s166 = scalar_lea.vmem %s0, %s165
        %s167 = smul.u32 2, %s11
      $region24: #{forward.13} parent=19 // pred_fallthru
        _
    $region20: #{forward.13} parent=5 // pred_fallthru
      _
    %p168 = scmp.le.s32.totalorder 1, %s11
    %p169 = scmp.lt.s32.totalorder %s11, 3
    %p170 = pnand %p168, %p169
    %p171 = pneg %p170
    // Predicated region
    $region25: #{forward.13} parent=5 // pred_check
      _
    $region26: #{forward.13} parent=5 // pred_check_branch
      %173 = sbr.rel (%p170) target = $region28
    $region27: #{forward.13} parent=5 // pred_region
      %s174 = ssub.s32 %s11, 1
      %s175 = smul.u32 2, %s16
      %p176 = scmp.lt.s32.totalorder %s175, 3
      %s177 = scalar_select %p176, %s175, 3
      %s178 = smul.addr %s177, 4
      %s179 = smul.addr %s178, 4
      %s180 = scalar_lea.vmem %s0, %s179
      %p181 = pneg %p37
      %p182 = pneg %p34
      %p183 = pneg %p58
      %p184 = pneg %p55
      %p185 = pneg %p84
      %p186 = pneg %p81
      %s187 = smul.u32 2, %s16
      %p188 = scmp.lt.s32.totalorder %s187, 3
      %s189 = scalar_select %p188, %s187, 3
      %s190 = smul.addr %s189, 4
      %s191 = scalar_lea.vmem %s2, %s190
      %p192 = pneg %p110
      %p193 = pneg %p107
      %p194 = scmp.lt.s32.totalorder %s16, 1
      %s195 = scalar_select %p194, %s16, 1
      %s196 = scalar_lea.vmem %s3, %s195
      %p197 = pneg %p136
      %p198 = pneg %p133
      %p199 = scmp.lt.s32.totalorder %s16, 1
      %s200 = scalar_select %p199, %s16, 1
      %s201 = scalar_lea.vmem %s4, %s200
      %s202 = smul.u32 2, %s16
      %p203 = scmp.lt.s32.totalorder %s202, 3
      %s204 = scalar_select %p203, %s202, 3
      %s205 = smul.addr %s204, 4
      %s206 = smul.addr %s205, 4
      %s207 = scalar_lea.vmem %s0, %s206
      %s208 = smul.u32 2, %s16
      %s209 = smul.u32 2, %s16
      %p210 = scmp.lt.s32.totalorder %s209, 3
      %s211 = scalar_select %p210, %s209, 3
      %s212 = smul.addr %s211, 4
      %s213 = scalar_lea.vmem %s2, %s212
      %s214 = smul.u32 2, %s16
      %p215 = scmp.lt.s32.totalorder %s16, 1
      %s216 = scalar_select %p215, %s16, 1
      %s217 = scalar_lea.vmem %s3, %s216
      %p218 = scmp.lt.s32.totalorder %s16, 1
      %s219 = scalar_select %p218, %s16, 1
      %s220 = scalar_lea.vmem %s4, %s219
      %v222 = vld [vmem:[%s207] sm:$0xff]
      %v223 = vld [vmem:[%s207 + $0x8] sm:$0xff]
      %v224 = vld [vmem:[%s207 + $0x10] sm:$0xff]
      %v225 = vld [vmem:[%s207 + $0x18] sm:$0xff]
      %v226 = vld [vmem:[%s1] sm:$0xf]
      %v227 = vld [vmem:[%s1 + $0x4] sm:$0xf]
      %v228 = vld [vmem:[%s1 + $0x8] sm:$0xf]
      %v229 = vld [vmem:[%s1 + $0xc] sm:$0xf]
      %v230 = vld [vmem:[%s1 + $0x10] sm:$0xf]
      %v231 = vld [vmem:[%s1 + $0x14] sm:$0xf]
      %v232 = vld [vmem:[%s1 + $0x18] sm:$0xf]
      %v233 = vld [vmem:[%s1 + $0x1c] sm:$0xf]
      %v234 = vld [vmem:[%s1 + $0x20] sm:$0xf]
      %v235 = vld [vmem:[%s1 + $0x24] sm:$0xf]
      %v236 = vld [vmem:[%s1 + $0x28] sm:$0xf]
      %v237 = vld [vmem:[%s1 + $0x2c] sm:$0xf]
      %v238 = vld [vmem:[%s1 + $0x30] sm:$0xf]
      %v239 = vld [vmem:[%s1 + $0x34] sm:$0xf]
      %v240 = vld [vmem:[%s1 + $0x38] sm:$0xf]
      %v241 = vld [vmem:[%s1 + $0x3c] sm:$0xf]
      %v242 = vld [vmem:[%s1 + $0x40] sm:$0xf]
      %v243 = vld [vmem:[%s1 + $0x44] sm:$0xf]
      %v244 = vld [vmem:[%s1 + $0x48] sm:$0xf]
      %v245 = vld [vmem:[%s1 + $0x4c] sm:$0xf]
      %v246 = vld [vmem:[%s1 + $0x50] sm:$0xf]
      %v247 = vld [vmem:[%s1 + $0x54] sm:$0xf]
      %v248 = vld [vmem:[%s1 + $0x58] sm:$0xf]
      %v249 = vld [vmem:[%s1 + $0x5c] sm:$0xf]
      %v250 = vld [vmem:[%s1 + $0x60] sm:$0xf]
      %v251 = vld [vmem:[%s1 + $0x64] sm:$0xf]
      %v252 = vld [vmem:[%s1 + $0x68] sm:$0xf]
      %v253 = vld [vmem:[%s1 + $0x6c] sm:$0xf]
      %v254 = vld [vmem:[%s1 + $0x70] sm:$0xf]
      %v255 = vld [vmem:[%s1 + $0x74] sm:$0xf]
      %v256 = vld [vmem:[%s1 + $0x78] sm:$0xf]
      %v257 = vld [vmem:[%s1 + $0x7c] sm:$0xf]
      %v258 = vld [vmem:[%s1 + $0x80] sm:$0xf]
      %v259 = vld [vmem:[%s1 + $0x84] sm:$0xf]
      %v260 = vld [vmem:[%s1 + $0x88] sm:$0xf]
      %v261 = vld [vmem:[%s1 + $0x8c] sm:$0xf]
      %v262 = vld [vmem:[%s1 + $0x90] sm:$0xf]
      %v263 = vld [vmem:[%s1 + $0x94] sm:$0xf]
      %v264 = vld [vmem:[%s1 + $0x98] sm:$0xf]
      %v265 = vld [vmem:[%s1 + $0x9c] sm:$0xf]
      %v266 = vld [vmem:[%s1 + $0xa0] sm:$0xf]
      %v267 = vld [vmem:[%s1 + $0xa4] sm:$0xf]
      %v268 = vld [vmem:[%s1 + $0xa8] sm:$0xf]
      %v269 = vld [vmem:[%s1 + $0xac] sm:$0xf]
      %v270 = vld [vmem:[%s1 + $0xb0] sm:$0xf]
      %v271 = vld [vmem:[%s1 + $0xb4] sm:$0xf]
      %v272 = vld [vmem:[%s1 + $0xb8] sm:$0xf]
      %v273 = vld [vmem:[%s1 + $0xbc] sm:$0xf]
      %v274 = vld [vmem:[%s1 + $0xc0] sm:$0xf]
      %v275 = vld [vmem:[%s1 + $0xc4] sm:$0xf]
      %v276 = vld [vmem:[%s1 + $0xc8] sm:$0xf]
      %v277 = vld [vmem:[%s1 + $0xcc] sm:$0xf]
      %v278 = vld [vmem:[%s1 + $0xd0] sm:$0xf]
      %v279 = vld [vmem:[%s1 + $0xd4] sm:$0xf]
      %v280 = vld [vmem:[%s1 + $0xd8] sm:$0xf]
      %v281 = vld [vmem:[%s1 + $0xdc] sm:$0xf]
      %v282 = vld [vmem:[%s1 + $0xe0] sm:$0xf]
      %v283 = vld [vmem:[%s1 + $0xe4] sm:$0xf]
      %v284 = vld [vmem:[%s1 + $0xe8] sm:$0xf]
      %v285 = vld [vmem:[%s1 + $0xec] sm:$0xf]
      %v286 = vld [vmem:[%s1 + $0xf0] sm:$0xf]
      %v287 = vld [vmem:[%s1 + $0xf4] sm:$0xf]
      %v288 = vld [vmem:[%s1 + $0xf8] sm:$0xf]
      %v289 = vld [vmem:[%s1 + $0xfc] sm:$0xf]
      %v294 = vunpack.c.l.b16 %v222
      %v295 = vunpack.c.h.b16 %v222
      %v296 = vunpack.c.l.b16 %v223
      %v297 = vunpack.c.h.b16 %v223
      %v298 = vunpack.c.l.b16 %v224
      %v299 = vunpack.c.h.b16 %v224
      %v300 = vunpack.c.l.b16 %v225
      %v301 = vunpack.c.h.b16 %v225
      %v302 = vpack.c.b16 %v298, %v294
      %v303 = vpack.c.b16 %v299, %v295
      %v304 = vpack.c.b16 %v300, %v296
      %v305 = vpack.c.b16 %v301, %v297
      %v374 = vunpack.c.l.b16 %v226
      %v375 = vunpack.c.l.b16 %v227
      %v376 = vunpack.c.l.b16 %v228
      %v377 = vunpack.c.l.b16 %v229
      %v378 = vunpack.c.l.b16 %v230
      %v379 = vunpack.c.l.b16 %v231
      %v380 = vunpack.c.l.b16 %v232
      %v381 = vunpack.c.l.b16 %v233
      %v382 = vunpack.c.l.b16 %v234
      %v383 = vunpack.c.l.b16 %v235
      %v384 = vunpack.c.l.b16 %v236
      %v385 = vunpack.c.l.b16 %v237
      %v386 = vunpack.c.l.b16 %v238
      %v387 = vunpack.c.l.b16 %v239
      %v388 = vunpack.c.l.b16 %v240
      %v389 = vunpack.c.l.b16 %v241
      %v390 = vunpack.c.l.b16 %v242
      %v391 = vunpack.c.l.b16 %v243
      %v392 = vunpack.c.l.b16 %v244
      %v393 = vunpack.c.l.b16 %v245
      %v394 = vunpack.c.l.b16 %v246
      %v395 = vunpack.c.l.b16 %v247
      %v396 = vunpack.c.l.b16 %v248
      %v397 = vunpack.c.l.b16 %v249
      %v398 = vunpack.c.l.b16 %v250
      %v399 = vunpack.c.l.b16 %v251
      %v400 = vunpack.c.l.b16 %v252
      %v401 = vunpack.c.l.b16 %v253
      %v402 = vunpack.c.l.b16 %v254
      %v403 = vunpack.c.l.b16 %v255
      %v404 = vunpack.c.l.b16 %v256
      %v405 = vunpack.c.l.b16 %v257
      %v406 = vunpack.c.l.b16 %v258
      %v407 = vunpack.c.l.b16 %v259
      %v408 = vunpack.c.l.b16 %v260
      %v409 = vunpack.c.l.b16 %v261
      %v410 = vunpack.c.l.b16 %v262
      %v411 = vunpack.c.l.b16 %v263
      %v412 = vunpack.c.l.b16 %v264
      %v413 = vunpack.c.l.b16 %v265
      %v414 = vunpack.c.l.b16 %v266
      %v415 = vunpack.c.l.b16 %v267
      %v416 = vunpack.c.l.b16 %v268
      %v417 = vunpack.c.l.b16 %v269
      %v418 = vunpack.c.l.b16 %v270
      %v419 = vunpack.c.l.b16 %v271
      %v420 = vunpack.c.l.b16 %v272
      %v421 = vunpack.c.l.b16 %v273
      %v422 = vunpack.c.l.b16 %v274
      %v423 = vunpack.c.l.b16 %v275
      %v424 = vunpack.c.l.b16 %v276
      %v425 = vunpack.c.l.b16 %v277
      %v426 = vunpack.c.l.b16 %v278
      %v427 = vunpack.c.l.b16 %v279
      %v428 = vunpack.c.l.b16 %v280
      %v429 = vunpack.c.l.b16 %v281
      %v430 = vunpack.c.l.b16 %v282
      %v431 = vunpack.c.l.b16 %v283
      %v432 = vunpack.c.l.b16 %v284
      %v433 = vunpack.c.l.b16 %v285
      %v434 = vunpack.c.l.b16 %v286
      %v435 = vunpack.c.l.b16 %v287
      %v436 = vunpack.c.l.b16 %v288
      %v437 = vunpack.c.l.b16 %v289
      %v438 = vpack.c.b16 %v375, %v374
      %v439 = vpack.c.b16 %v377, %v376
      %v440 = vpack.c.b16 %v379, %v378
      %v441 = vpack.c.b16 %v381, %v380
      %v442 = vpack.c.b16 %v383, %v382
      %v443 = vpack.c.b16 %v385, %v384
      %v444 = vpack.c.b16 %v387, %v386
      %v445 = vpack.c.b16 %v389, %v388
      %v446 = vpack.c.b16 %v391, %v390
      %v447 = vpack.c.b16 %v393, %v392
      %v448 = vpack.c.b16 %v395, %v394
      %v449 = vpack.c.b16 %v397, %v396
      %v450 = vpack.c.b16 %v399, %v398
      %v451 = vpack.c.b16 %v401, %v400
      %v452 = vpack.c.b16 %v403, %v402
      %v453 = vpack.c.b16 %v405, %v404
      %v454 = vpack.c.b16 %v407, %v406
      %v455 = vpack.c.b16 %v409, %v408
      %v456 = vpack.c.b16 %v411, %v410
      %v457 = vpack.c.b16 %v413, %v412
      %v458 = vpack.c.b16 %v415, %v414
      %v459 = vpack.c.b16 %v417, %v416
      %v460 = vpack.c.b16 %v419, %v418
      %v461 = vpack.c.b16 %v421, %v420
      %v462 = vpack.c.b16 %v423, %v422
      %v463 = vpack.c.b16 %v425, %v424
      %v464 = vpack.c.b16 %v427, %v426
      %v465 = vpack.c.b16 %v429, %v428
      %v466 = vpack.c.b16 %v431, %v430
      %v467 = vpack.c.b16 %v433, %v432
      %v468 = vpack.c.b16 %v435, %v434
      %v469 = vpack.c.b16 %v437, %v436
      %502 = vmatprep.subr.bf16.mxu0 0
      %503 = vmatpush1.bf16.msra.mxu0 %v445
      %504 = vmatprep.subr.bf16.mxu0 0
      %505 = vmatpush1.bf16.msra.mxu0 %v444
      %506 = vmatprep.subr.bf16.mxu0 0
      %507 = vmatpush1.bf16.msra.mxu0 %v443
      %508 = vmatprep.subr.bf16.mxu0 0
      %509 = vmatpush1.bf16.msra.mxu0 %v442
      %510 = vmatprep.subr.bf16.mxu0 0
      %511 = vmatpush1.bf16.msra.mxu0 %v441
      %512 = vmatprep.subr.bf16.mxu0 0
      %513 = vmatpush1.bf16.msra.mxu0 %v440
      %514 = vmatprep.subr.bf16.mxu0 0
      %515 = vmatpush1.bf16.msra.mxu0 %v439
      %516 = vmatprep.subr.bf16.mxu0 0
      %517 = vmatpush1.bf16.msra.mxu0 %v438
      %518 = vmatprep.subr.bf16.mxu0 0
      %519 = vmatpush2.bf16.msra.mxu0 %v453
      %520 = vmatprep.subr.bf16.mxu0 0
      %521 = vmatpush2.bf16.msra.mxu0 %v452
      %522 = vmatprep.subr.bf16.mxu0 0
      %523 = vmatpush2.bf16.msra.mxu0 %v451
      %524 = vmatprep.subr.bf16.mxu0 0
      %525 = vmatpush2.bf16.msra.mxu0 %v450
      %526 = vmatprep.subr.bf16.mxu0 0
      %527 = vmatpush2.bf16.msra.mxu0 %v449
      %528 = vmatprep.subr.bf16.mxu0 0
      %529 = vmatpush2.bf16.msra.mxu0 %v448
      %530 = vmatprep.subr.bf16.mxu0 0
      %531 = vmatpush2.bf16.msra.mxu0 %v447
      %532 = vmatprep.subr.bf16.mxu0 0
      %533 = vmatpush2.bf16.msra.mxu0 %v446
      %534 = vmatprep.mubr.bf16.mxu0 %v303
      %535 = vmatmul.mubr.bf16.gmra.mxu0 %v302
      %v536 = vpop.f32.mrf.mxu0
      %v537 = vadd.f32 0.0, %v536
      %v538 = vpop.f32.mrf.mxu0
      %v539 = vpop.f32.mrf.mxu0
      %v540 = vadd.f32 0.0, %v539
      %v541 = vpop.f32.mrf.mxu0
      %542 = vdwg.mxu0
      %543 = vmatprep.subr.bf16.mxu0 0
      %544 = vmatpush1.bf16.msra.mxu0 %v461
      %545 = vmatprep.subr.bf16.mxu0 0
      %546 = vmatpush1.bf16.msra.mxu0 %v460
      %547 = vmatprep.subr.bf16.mxu0 0
      %548 = vmatpush1.bf16.msra.mxu0 %v459
      %549 = vmatprep.subr.bf16.mxu0 0
      %550 = vmatpush1.bf16.msra.mxu0 %v458
      %551 = vmatprep.subr.bf16.mxu0 0
      %552 = vmatpush1.bf16.msra.mxu0 %v457
      %553 = vmatprep.subr.bf16.mxu0 0
      %554 = vmatpush1.bf16.msra.mxu0 %v456
      %555 = vmatprep.subr.bf16.mxu0 0
      %556 = vmatpush1.bf16.msra.mxu0 %v455
      %557 = vmatprep.subr.bf16.mxu0 0
      %558 = vmatpush1.bf16.msra.mxu0 %v454
      %559 = vmatprep.subr.bf16.mxu0 0
      %560 = vmatpush2.bf16.msra.mxu0 %v469
      %561 = vmatprep.subr.bf16.mxu0 0
      %562 = vmatpush2.bf16.msra.mxu0 %v468
      %563 = vmatprep.subr.bf16.mxu0 0
      %564 = vmatpush2.bf16.msra.mxu0 %v467
      %565 = vmatprep.subr.bf16.mxu0 0
      %566 = vmatpush2.bf16.msra.mxu0 %v466
      %567 = vmatprep.subr.bf16.mxu0 0
      %568 = vmatpush2.bf16.msra.mxu0 %v465
      %569 = vmatprep.subr.bf16.mxu0 0
      %570 = vmatpush2.bf16.msra.mxu0 %v464
      %571 = vmatprep.subr.bf16.mxu0 0
      %572 = vmatpush2.bf16.msra.mxu0 %v463
      %573 = vmatprep.subr.bf16.mxu0 0
      %574 = vmatpush2.bf16.msra.mxu0 %v462
      %575 = vmatprep.mubr.bf16.mxu0 %v305
      %576 = vmatmul.mubr.bf16.gmra.mxu0 %v304
      %v577 = vpop.f32.mrf.mxu0
      %v578 = vadd.f32 %v537, %v577
      %v579 = vpop.f32.mrf.mxu0
      %v580 = vpop.f32.mrf.mxu0
      %v581 = vadd.f32 %v540, %v580
      %v582 = vpop.f32.mrf.mxu0
      %583 = vdwg.mxu0
      %v584 = vpack.c.bf16 %v581, %v578
      %v586 = vunpack.c.l.b16 %v584
      %v587 = vunpack.c.h.b16 %v584
      %v588 = vpack.c.b16 %v586, %v586
      %v589 = vpack.c.b16 %v587, %v587
      %vm592 = vcmask 519168
      %593 = vst.msk [vmem:[%s213] sm:$0xf] %vm592, %v588
      %594 = vst.msk [vmem:[%s213 + $0x4] sm:$0xf] %vm592, %v589
      %vm595 = vcmask 523264
      %v596 = vsel %vm595, %v578, 0.0
      %v597 = vsel %vm595, %v581, 0.0
      %v598 = vadd.f32 %v596, %v597
      %v599 = vrot.slane %v598, 4
      %v600 = vadd.f32 %v598, %v599
      %v601 = vrot.slane %v600, 2
      %v602 = vadd.f32 %v600, %v601
      %v603 = vrot.slane %v602, 1
      %v604 = vadd.f32 %v602, %v603
      %vm605 = vcmask 516096
      %606 = vst.msk [vmem:[%s217] sm:$0x1] %vm605, %v604
      %v607 = vmul.f32 %v578, %v578
      %v608 = vmul.f32 %v581, %v581
      %v609 = vsel %vm595, %v607, 0.0
      %v610 = vsel %vm595, %v608, 0.0
      %v611 = vadd.f32 %v609, %v610
      %v612 = vrot.slane %v611, 4
      %v613 = vadd.f32 %v611, %v612
      %v614 = vrot.slane %v613, 2
      %v615 = vadd.f32 %v613, %v614
      %v616 = vrot.slane %v615, 1
      %v617 = vadd.f32 %v615, %v616
      %618 = vst.msk [vmem:[%s220] sm:$0x1] %vm605, %v617
      %s619 = smul.u32 2, %s16
      %p620 = scmp.lt.s32.totalorder %s619, 3
      %s621 = scalar_select %p620, %s619, 3
      %s622 = smul.addr %s621, 4
      %s623 = scalar_lea.vmem %s2, %s622
      %p624 = scmp.lt.s32.totalorder %s16, 1
      %s625 = scalar_select %p624, %s16, 1
      %s626 = scalar_lea.vmem %s3, %s625
      %p627 = scmp.lt.s32.totalorder %s16, 1
      %s628 = scalar_select %p627, %s16, 1
      %s629 = scalar_lea.vmem %s4, %s628
      // Predicated region
      $region29: #{forward.13} parent=27 // pred_check
        %p630 = pneg %p81
      $region30: #{forward.13} parent=27 // pred_check_branch
        %632 = sbr.rel (%p630) target = $region32
      $region31: #{forward.13} parent=27 // pred_region
        %s633 = smul.u32 2, %s16
      $region32: #{forward.13} parent=27 // pred_fallthru
        _
      // Predicated region
      $region33: #{forward.13} parent=27 // pred_check
        %p634 = pneg %p107
      $region34: #{forward.13} parent=27 // pred_check_branch
        %636 = sbr.rel (%p634) target = $region36
      $region35: #{forward.13} parent=27 // pred_region
        _
      $region36: #{forward.13} parent=27 // pred_fallthru
        _
      // Predicated region
      $region37: #{forward.13} parent=27 // pred_check
        %p637 = pneg %p133
      $region38: #{forward.13} parent=27 // pred_check_branch
        %639 = sbr.rel (%p637) target = $region40
      $region39: #{forward.13} parent=27 // pred_region
        _
      $region40: #{forward.13} parent=27 // pred_fallthru
        _
    $region28: #{forward.13} parent=5 // pred_fallthru
      _
    %p640 = scmp.le.s32.totalorder 2, %s11
    // Predicated region
    $region41: #{forward.13} parent=5 // pred_check
      %p641 = pneg %p640
    $region42: #{forward.13} parent=5 // pred_check_branch
      %643 = sbr.rel (%p641) target = $region44
    $region43: #{forward.13} parent=5 // pred_region
      %s644 = ssub.s32 %s11, 2
      // Predicated region
      $region45: #{forward.13} parent=43 // pred_check
        %p645 = pneg %p87
      $region46: #{forward.13} parent=43 // pred_check_branch
        %647 = sbr.rel (%p645) target = $region48
      $region47: #{forward.13} parent=43 // pred_region
        %s648 = smul.u32 2, %s17
        %p649 = scmp.lt.s32.totalorder %s648, 3
        %s650 = scalar_select %p649, %s648, 3
        %s651 = smul.addr %s650, 4
        %s652 = scalar_lea.vmem %s2, %s651
      $region48: #{forward.13} parent=43 // pred_fallthru
        _
      // Predicated region
      $region49: #{forward.13} parent=43 // pred_check
        %p653 = pneg %p113
      $region50: #{forward.13} parent=43 // pred_check_branch
        %655 = sbr.rel (%p653) target = $region52
      $region51: #{forward.13} parent=43 // pred_region
        %p656 = scmp.lt.s32.totalorder %s17, 1
        %s657 = scalar_select %p656, %s17, 1
        %s658 = scalar_lea.vmem %s3, %s657
      $region52: #{forward.13} parent=43 // pred_fallthru
        _
      // Predicated region
      $region53: #{forward.13} parent=43 // pred_check
        %p659 = pneg %p139
      $region54: #{forward.13} parent=43 // pred_check_branch
        %661 = sbr.rel (%p659) target = $region56
      $region55: #{forward.13} parent=43 // pred_region
        %p662 = scmp.lt.s32.totalorder %s17, 1
        %s663 = scalar_select %p662, %s17, 1
        %s664 = scalar_lea.vmem %s4, %s663
      $region56: #{forward.13} parent=43 // pred_fallthru
        _
    $region44: #{forward.13} parent=5 // pred_fallthru
      _
  $region6: #{forward.13} parent=0 // loop_footer
    %s15 = sadd.s32 1, %s11
  $region7: #{forward.13} parent=0 // loop_footer_branch
    %10 = sbr.rel target = $region3
  $region8: #{forward.13} parent=0 // loop_exit
    _

// kernel: forward.15
$region0: #{forward.15}
  #allocation0 [shape = 'u32[]', space=smem, size = 0x4, offset = 0x4, fixed_abs, tag = 'smem constant byte address 0x4 - core index']
  #allocation1 [shape = 'u32[144,128]{1,0:T(1,128)}', space=vmem, size = 0x12000, scoped, tag = 'internal scratch']
  %s0 = inlined_call_operand.vmem [shape: bf16[2,1024], index: 0, kind: input, shape index: {}]
  %s1 = inlined_call_operand.vmem [shape: bf16[1024,1], index: 1, kind: input, shape index: {}]
  %s2 = inlined_call_operand.vmem [shape: f32[2,1], index: 2, kind: output, shape index: {}]
  %s3 = sld [smem:[#allocation0]]
  $region18: #{forward.15} parent=0
    _
  %s5 = ssub.s32 1, %s3
  %s6 = scalar_select 0, %s5, %s3
  // Predicated region
  $region2: #{forward.15} parent=0 // pred_check
    _
  $region3: #{forward.15} parent=0 // pred_check_branch
    %8 = sbr.rel (0) target = $region5
  $region4: #{forward.15} parent=0 // pred_region
    _
  $region5: #{forward.15} parent=0 // pred_fallthru
    _
  // Predicated region
  $region6: #{forward.15} parent=0 // pred_check
    _
  $region7: #{forward.15} parent=0 // pred_check_branch
    %10 = sbr.rel (0) target = $region9
  $region8: #{forward.15} parent=0 // pred_region
    _
  $region9: #{forward.15} parent=0 // pred_fallthru
    _
  %v12 = vld [vmem:[%s0] sm:$0xff]
  %v13 = vld [vmem:[%s1] sm:$0xf]
  %v14 = vld [vmem:[%s1 + $0x4] sm:$0xf]
  %v15 = vld [vmem:[%s1 + $0x8] sm:$0xf]
  %v16 = vld [vmem:[%s1 + $0xc] sm:$0xf]
  %v17 = vld [vmem:[%s1 + $0x10] sm:$0xf]
  %v18 = vld [vmem:[%s1 + $0x14] sm:$0xf]
  %v19 = vld [vmem:[%s1 + $0x18] sm:$0xf]
  %v20 = vld [vmem:[%s1 + $0x1c] sm:$0xf]
  %v21 = vld [vmem:[%s1 + $0x20] sm:$0xf]
  %v22 = vld [vmem:[%s1 + $0x24] sm:$0xf]
  %v23 = vld [vmem:[%s1 + $0x28] sm:$0xf]
  %v24 = vld [vmem:[%s1 + $0x2c] sm:$0xf]
  %v25 = vld [vmem:[%s1 + $0x30] sm:$0xf]
  %v26 = vld [vmem:[%s1 + $0x34] sm:$0xf]
  %v27 = vld [vmem:[%s1 + $0x38] sm:$0xf]
  %v28 = vld [vmem:[%s1 + $0x3c] sm:$0xf]
  %v29 = vld [vmem:[%s1 + $0x40] sm:$0xf]
  %v30 = vld [vmem:[%s1 + $0x44] sm:$0xf]
  %v31 = vld [vmem:[%s1 + $0x48] sm:$0xf]
  %v32 = vld [vmem:[%s1 + $0x4c] sm:$0xf]
  %v33 = vld [vmem:[%s1 + $0x50] sm:$0xf]
  %v34 = vld [vmem:[%s1 + $0x54] sm:$0xf]
  %v35 = vld [vmem:[%s1 + $0x58] sm:$0xf]
  %v36 = vld [vmem:[%s1 + $0x5c] sm:$0xf]
  %v37 = vld [vmem:[%s1 + $0x60] sm:$0xf]
  %v38 = vld [vmem:[%s1 + $0x64] sm:$0xf]
  %v39 = vld [vmem:[%s1 + $0x68] sm:$0xf]
  %v40 = vld [vmem:[%s1 + $0x6c] sm:$0xf]
  %v41 = vld [vmem:[%s1 + $0x70] sm:$0xf]
  %v42 = vld [vmem:[%s1 + $0x74] sm:$0xf]
  %v43 = vld [vmem:[%s1 + $0x78] sm:$0xf]
  %v44 = vld [vmem:[%s1 + $0x7c] sm:$0xf]
  %v45 = vld [vmem:[%s1 + $0x80] sm:$0xf]
  %v46 = vld [vmem:[%s1 + $0x84] sm:$0xf]
  %v47 = vld [vmem:[%s1 + $0x88] sm:$0xf]
  %v48 = vld [vmem:[%s1 + $0x8c] sm:$0xf]
  %v49 = vld [vmem:[%s1 + $0x90] sm:$0xf]
  %v50 = vld [vmem:[%s1 + $0x94] sm:$0xf]
  %v51 = vld [vmem:[%s1 + $0x98] sm:$0xf]
  %v52 = vld [vmem:[%s1 + $0x9c] sm:$0xf]
  %v53 = vld [vmem:[%s1 + $0xa0] sm:$0xf]
  %v54 = vld [vmem:[%s1 + $0xa4] sm:$0xf]
  %v55 = vld [vmem:[%s1 + $0xa8] sm:$0xf]
  %v56 = vld [vmem:[%s1 + $0xac] sm:$0xf]
  %v57 = vld [vmem:[%s1 + $0xb0] sm:$0xf]
  %v58 = vld [vmem:[%s1 + $0xb4] sm:$0xf]
  %v59 = vld [vmem:[%s1 + $0xb8] sm:$0xf]
  %v60 = vld [vmem:[%s1 + $0xbc] sm:$0xf]
  %v61 = vld [vmem:[%s1 + $0xc0] sm:$0xf]
  %v62 = vld [vmem:[%s1 + $0xc4] sm:$0xf]
  %v63 = vld [vmem:[%s1 + $0xc8] sm:$0xf]
  %v64 = vld [vmem:[%s1 + $0xcc] sm:$0xf]
  %v65 = vld [vmem:[%s1 + $0xd0] sm:$0xf]
  %v66 = vld [vmem:[%s1 + $0xd4] sm:$0xf]
  %v67 = vld [vmem:[%s1 + $0xd8] sm:$0xf]
  %v68 = vld [vmem:[%s1 + $0xdc] sm:$0xf]
  %v69 = vld [vmem:[%s1 + $0xe0] sm:$0xf]
  %v70 = vld [vmem:[%s1 + $0xe4] sm:$0xf]
  %v71 = vld [vmem:[%s1 + $0xe8] sm:$0xf]
  %v72 = vld [vmem:[%s1 + $0xec] sm:$0xf]
  %v73 = vld [vmem:[%s1 + $0xf0] sm:$0xf]
  %v74 = vld [vmem:[%s1 + $0xf4] sm:$0xf]
  %v75 = vld [vmem:[%s1 + $0xf8] sm:$0xf]
  %v76 = vld [vmem:[%s1 + $0xfc] sm:$0xf]
  %v77 = vld [vmem:[%s1 + $0x100] sm:$0xf]
  %v78 = vld [vmem:[%s1 + $0x104] sm:$0xf]
  %v79 = vld [vmem:[%s1 + $0x108] sm:$0xf]
  %v80 = vld [vmem:[%s1 + $0x10c] sm:$0xf]
  %v81 = vld [vmem:[%s1 + $0x110] sm:$0xf]
  %v82 = vld [vmem:[%s1 + $0x114] sm:$0xf]
  %v83 = vld [vmem:[%s1 + $0x118] sm:$0xf]
  %v84 = vld [vmem:[%s1 + $0x11c] sm:$0xf]
  %v85 = vld [vmem:[%s1 + $0x120] sm:$0xf]
  %v86 = vld [vmem:[%s1 + $0x124] sm:$0xf]
  %v87 = vld [vmem:[%s1 + $0x128] sm:$0xf]
  %v88 = vld [vmem:[%s1 + $0x12c] sm:$0xf]
  %v89 = vld [vmem:[%s1 + $0x130] sm:$0xf]
  %v90 = vld [vmem:[%s1 + $0x134] sm:$0xf]
  %v91 = vld [vmem:[%s1 + $0x138] sm:$0xf]
  %v92 = vld [vmem:[%s1 + $0x13c] sm:$0xf]
  %v93 = vld [vmem:[%s1 + $0x140] sm:$0xf]
  %v94 = vld [vmem:[%s1 + $0x144] sm:$0xf]
  %v95 = vld [vmem:[%s1 + $0x148] sm:$0xf]
  %v96 = vld [vmem:[%s1 + $0x14c] sm:$0xf]
  %v97 = vld [vmem:[%s1 + $0x150] sm:$0xf]
  %v98 = vld [vmem:[%s1 + $0x154] sm:$0xf]
  %v99 = vld [vmem:[%s1 + $0x158] sm:$0xf]
  %v100 = vld [vmem:[%s1 + $0x15c] sm:$0xf]
  %v101 = vld [vmem:[%s1 + $0x160] sm:$0xf]
  %v102 = vld [vmem:[%s1 + $0x164] sm:$0xf]
  %v103 = vld [vmem:[%s1 + $0x168] sm:$0xf]
  %v104 = vld [vmem:[%s1 + $0x16c] sm:$0xf]
  %v105 = vld [vmem:[%s1 + $0x170] sm:$0xf]
  %v106 = vld [vmem:[%s1 + $0x174] sm:$0xf]
  %v107 = vld [vmem:[%s1 + $0x178] sm:$0xf]
  %v108 = vld [vmem:[%s1 + $0x17c] sm:$0xf]
  %v109 = vld [vmem:[%s1 + $0x180] sm:$0xf]
  %v110 = vld [vmem:[%s1 + $0x184] sm:$0xf]
  %v111 = vld [vmem:[%s1 + $0x188] sm:$0xf]
  %v112 = vld [vmem:[%s1 + $0x18c] sm:$0xf]
  %v113 = vld [vmem:[%s1 + $0x190] sm:$0xf]
  %v114 = vld [vmem:[%s1 + $0x194] sm:$0xf]
  %v115 = vld [vmem:[%s1 + $0x198] sm:$0xf]
  %v116 = vld [vmem:[%s1 + $0x19c] sm:$0xf]
  %v117 = vld [vmem:[%s1 + $0x1a0] sm:$0xf]
  %v118 = vld [vmem:[%s1 + $0x1a4] sm:$0xf]
  %v119 = vld [vmem:[%s1 + $0x1a8] sm:$0xf]
  %v120 = vld [vmem:[%s1 + $0x1ac] sm:$0xf]
  %v121 = vld [vmem:[%s1 + $0x1b0] sm:$0xf]
  %v122 = vld [vmem:[%s1 + $0x1b4] sm:$0xf]
  %v123 = vld [vmem:[%s1 + $0x1b8] sm:$0xf]
  %v124 = vld [vmem:[%s1 + $0x1bc] sm:$0xf]
  %v125 = vld [vmem:[%s1 + $0x1c0] sm:$0xf]
  %v126 = vld [vmem:[%s1 + $0x1c4] sm:$0xf]
  %v127 = vld [vmem:[%s1 + $0x1c8] sm:$0xf]
  %v128 = vld [vmem:[%s1 + $0x1cc] sm:$0xf]
  %v129 = vld [vmem:[%s1 + $0x1d0] sm:$0xf]
  %v130 = vld [vmem:[%s1 + $0x1d4] sm:$0xf]
  %v131 = vld [vmem:[%s1 + $0x1d8] sm:$0xf]
  %v132 = vld [vmem:[%s1 + $0x1dc] sm:$0xf]
  %v133 = vld [vmem:[%s1 + $0x1e0] sm:$0xf]
  %v134 = vld [vmem:[%s1 + $0x1e4] sm:$0xf]
  %v135 = vld [vmem:[%s1 + $0x1e8] sm:$0xf]
  %v136 = vld [vmem:[%s1 + $0x1ec] sm:$0xf]
  %v137 = vld [vmem:[%s1 + $0x1f0] sm:$0xf]
  %v138 = vld [vmem:[%s1 + $0x1f4] sm:$0xf]
  %v139 = vld [vmem:[%s1 + $0x1f8] sm:$0xf]
  %v140 = vld [vmem:[%s1 + $0x1fc] sm:$0xf]
  %v142 = vcombine.high %v12, %v12
  %v144 = vunpack.c.l.s4 1966171168
  %v145 = vunpack.c.0.s8 %v144
  %v146 = vlaneseq
  %v147 = vshrl.u32 %v146, 7
  %v148 = vsub.s32 %v145, %v147
  %v149 = vrot.slane %v12, %v148
  %v151 = vunpack.c.l.s4 1966171168
  %v152 = vunpack.c.0.s8 %v151
  %v153 = vlaneseq
  %v154 = vshrl.u32 %v153, 7
  %v155 = vsub.s32 %v152, %v154
  %v156 = vrot.slane %v142, %v155
  %v157 = vcombine.high %v149, %v149
  %v158 = vcombine.high %v156, %v156
  %v160 = vunpack.c.l.s4 1966171168
  %v161 = vunpack.c.0.s8 %v160
  %v162 = vlaneseq
  %v163 = vshrl.u32 %v162, 7
  %v164 = vsub.s32 %v161, %v163
  %v165 = vrot.slane %v149, %v164
  %v167 = vunpack.c.l.s4 1966171168
  %v168 = vunpack.c.0.s8 %v167
  %v169 = vlaneseq
  %v170 = vshrl.u32 %v169, 7
  %v171 = vsub.s32 %v168, %v170
  %v172 = vrot.slane %v156, %v171
  %v174 = vunpack.c.l.s4 1966171168
  %v175 = vunpack.c.0.s8 %v174
  %v176 = vlaneseq
  %v177 = vshrl.u32 %v176, 7
  %v178 = vsub.s32 %v175, %v177
  %v179 = vrot.slane %v157, %v178
  %v181 = vunpack.c.l.s4 1966171168
  %v182 = vunpack.c.0.s8 %v181
  %v183 = vlaneseq
  %v184 = vshrl.u32 %v183, 7
  %v185 = vsub.s32 %v182, %v184
  %v186 = vrot.slane %v158, %v185
  %v187 = vcombine.high %v165, %v165
  %v188 = vcombine.high %v172, %v172
  %v189 = vcombine.high %v179, %v179
  %v190 = vcombine.high %v186, %v186
  %v327 = vunpack.c.l.b16 %v13
  %v328 = vunpack.c.l.b16 %v14
  %v329 = vunpack.c.l.b16 %v15
  %v330 = vunpack.c.l.b16 %v16
  %v331 = vunpack.c.l.b16 %v17
  %v332 = vunpack.c.l.b16 %v18
  %v333 = vunpack.c.l.b16 %v19
  %v334 = vunpack.c.l.b16 %v20
  %v335 = vunpack.c.l.b16 %v21
  %v336 = vunpack.c.l.b16 %v22
  %v337 = vunpack.c.l.b16 %v23
  %v338 = vunpack.c.l.b16 %v24
  %v339 = vunpack.c.l.b16 %v25
  %v340 = vunpack.c.l.b16 %v26
  %v341 = vunpack.c.l.b16 %v27
  %v342 = vunpack.c.l.b16 %v28
  %v343 = vunpack.c.l.b16 %v29
  %v344 = vunpack.c.l.b16 %v30
  %v345 = vunpack.c.l.b16 %v31
  %v346 = vunpack.c.l.b16 %v32
  %v347 = vunpack.c.l.b16 %v33
  %v348 = vunpack.c.l.b16 %v34
  %v349 = vunpack.c.l.b16 %v35
  %v350 = vunpack.c.l.b16 %v36
  %v351 = vunpack.c.l.b16 %v37
  %v352 = vunpack.c.l.b16 %v38
  %v353 = vunpack.c.l.b16 %v39
  %v354 = vunpack.c.l.b16 %v40
  %v355 = vunpack.c.l.b16 %v41
  %v356 = vunpack.c.l.b16 %v42
  %v357 = vunpack.c.l.b16 %v43
  %v358 = vunpack.c.l.b16 %v44
  %v359 = vunpack.c.l.b16 %v45
  %v360 = vunpack.c.l.b16 %v46
  %v361 = vunpack.c.l.b16 %v47
  %v362 = vunpack.c.l.b16 %v48
  %v363 = vunpack.c.l.b16 %v49
  %v364 = vunpack.c.l.b16 %v50
  %v365 = vunpack.c.l.b16 %v51
  %v366 = vunpack.c.l.b16 %v52
  %v367 = vunpack.c.l.b16 %v53
  %v368 = vunpack.c.l.b16 %v54
  %v369 = vunpack.c.l.b16 %v55
  %v370 = vunpack.c.l.b16 %v56
  %v371 = vunpack.c.l.b16 %v57
  %v372 = vunpack.c.l.b16 %v58
  %v373 = vunpack.c.l.b16 %v59
  %v374 = vunpack.c.l.b16 %v60
  %v375 = vunpack.c.l.b16 %v61
  %v376 = vunpack.c.l.b16 %v62
  %v377 = vunpack.c.l.b16 %v63
  %v378 = vunpack.c.l.b16 %v64
  %v379 = vunpack.c.l.b16 %v65
  %v380 = vunpack.c.l.b16 %v66
  %v381 = vunpack.c.l.b16 %v67
  %v382 = vunpack.c.l.b16 %v68
  %v383 = vunpack.c.l.b16 %v69
  %v384 = vunpack.c.l.b16 %v70
  %v385 = vunpack.c.l.b16 %v71
  %v386 = vunpack.c.l.b16 %v72
  %v387 = vunpack.c.l.b16 %v73
  %v388 = vunpack.c.l.b16 %v74
  %v389 = vunpack.c.l.b16 %v75
  %v390 = vunpack.c.l.b16 %v76
  %v391 = vunpack.c.l.b16 %v77
  %v392 = vunpack.c.l.b16 %v78
  %v393 = vunpack.c.l.b16 %v79
  %v394 = vunpack.c.l.b16 %v80
  %v395 = vunpack.c.l.b16 %v81
  %v396 = vunpack.c.l.b16 %v82
  %v397 = vunpack.c.l.b16 %v83
  %v398 = vunpack.c.l.b16 %v84
  %v399 = vunpack.c.l.b16 %v85
  %v400 = vunpack.c.l.b16 %v86
  %v401 = vunpack.c.l.b16 %v87
  %v402 = vunpack.c.l.b16 %v88
  %v403 = vunpack.c.l.b16 %v89
  %v404 = vunpack.c.l.b16 %v90
  %v405 = vunpack.c.l.b16 %v91
  %v406 = vunpack.c.l.b16 %v92
  %v407 = vunpack.c.l.b16 %v93
  %v408 = vunpack.c.l.b16 %v94
  %v409 = vunpack.c.l.b16 %v95
  %v410 = vunpack.c.l.b16 %v96
  %v411 = vunpack.c.l.b16 %v97
  %v412 = vunpack.c.l.b16 %v98
  %v413 = vunpack.c.l.b16 %v99
  %v414 = vunpack.c.l.b16 %v100
  %v415 = vunpack.c.l.b16 %v101
  %v416 = vunpack.c.l.b16 %v102
  %v417 = vunpack.c.l.b16 %v103
  %v418 = vunpack.c.l.b16 %v104
  %v419 = vunpack.c.l.b16 %v105
  %v420 = vunpack.c.l.b16 %v106
  %v421 = vunpack.c.l.b16 %v107
  %v422 = vunpack.c.l.b16 %v108
  %v423 = vunpack.c.l.b16 %v109
  %v424 = vunpack.c.l.b16 %v110
  %v425 = vunpack.c.l.b16 %v111
  %v426 = vunpack.c.l.b16 %v112
  %v427 = vunpack.c.l.b16 %v113
  %v428 = vunpack.c.l.b16 %v114
  %v429 = vunpack.c.l.b16 %v115
  %v430 = vunpack.c.l.b16 %v116
  %v431 = vunpack.c.l.b16 %v117
  %v432 = vunpack.c.l.b16 %v118
  %v433 = vunpack.c.l.b16 %v119
  %v434 = vunpack.c.l.b16 %v120
  %v435 = vunpack.c.l.b16 %v121
  %v436 = vunpack.c.l.b16 %v122
  %v437 = vunpack.c.l.b16 %v123
  %v438 = vunpack.c.l.b16 %v124
  %v439 = vunpack.c.l.b16 %v125
  %v440 = vunpack.c.l.b16 %v126
  %v441 = vunpack.c.l.b16 %v127
  %v442 = vunpack.c.l.b16 %v128
  %v443 = vunpack.c.l.b16 %v129
  %v444 = vunpack.c.l.b16 %v130
  %v445 = vunpack.c.l.b16 %v131
  %v446 = vunpack.c.l.b16 %v132
  %v447 = vunpack.c.l.b16 %v133
  %v448 = vunpack.c.l.b16 %v134
  %v449 = vunpack.c.l.b16 %v135
  %v450 = vunpack.c.l.b16 %v136
  %v451 = vunpack.c.l.b16 %v137
  %v452 = vunpack.c.l.b16 %v138
  %v453 = vunpack.c.l.b16 %v139
  %v454 = vunpack.c.l.b16 %v140
  %v455 = vpack.c.b16 %v328, %v327
  %v456 = vpack.c.b16 %v330, %v329
  %v457 = vpack.c.b16 %v332, %v331
  %v458 = vpack.c.b16 %v334, %v333
  %v459 = vpack.c.b16 %v336, %v335
  %v460 = vpack.c.b16 %v338, %v337
  %v461 = vpack.c.b16 %v340, %v339
  %v462 = vpack.c.b16 %v342, %v341
  %v463 = vpack.c.b16 %v344, %v343
  %v464 = vpack.c.b16 %v346, %v345
  %v465 = vpack.c.b16 %v348, %v347
  %v466 = vpack.c.b16 %v350, %v349
  %v467 = vpack.c.b16 %v352, %v351
  %v468 = vpack.c.b16 %v354, %v353
  %v469 = vpack.c.b16 %v356, %v355
  %v470 = vpack.c.b16 %v358, %v357
  %v471 = vpack.c.b16 %v360, %v359
  %v472 = vpack.c.b16 %v362, %v361
  %v473 = vpack.c.b16 %v364, %v363
  %v474 = vpack.c.b16 %v366, %v365
  %v475 = vpack.c.b16 %v368, %v367
  %v476 = vpack.c.b16 %v370, %v369
  %v477 = vpack.c.b16 %v372, %v371
  %v478 = vpack.c.b16 %v374, %v373
  %v479 = vpack.c.b16 %v376, %v375
  %v480 = vpack.c.b16 %v378, %v377
  %v481 = vpack.c.b16 %v380, %v379
  %v482 = vpack.c.b16 %v382, %v381
  %v483 = vpack.c.b16 %v384, %v383
  %v484 = vpack.c.b16 %v386, %v385
  %v485 = vpack.c.b16 %v388, %v387
  %v486 = vpack.c.b16 %v390, %v389
  %v487 = vpack.c.b16 %v392, %v391
  %v488 = vpack.c.b16 %v394, %v393
  %v489 = vpack.c.b16 %v396, %v395
  %v490 = vpack.c.b16 %v398, %v397
  %v491 = vpack.c.b16 %v400, %v399
  %v492 = vpack.c.b16 %v402, %v401
  %v493 = vpack.c.b16 %v404, %v403
  %v494 = vpack.c.b16 %v406, %v405
  %v495 = vpack.c.b16 %v408, %v407
  %v496 = vpack.c.b16 %v410, %v409
  %v497 = vpack.c.b16 %v412, %v411
  %v498 = vpack.c.b16 %v414, %v413
  %v499 = vpack.c.b16 %v416, %v415
  %v500 = vpack.c.b16 %v418, %v417
  %v501 = vpack.c.b16 %v420, %v419
  %v502 = vpack.c.b16 %v422, %v421
  %v503 = vpack.c.b16 %v424, %v423
  %v504 = vpack.c.b16 %v426, %v425
  %v505 = vpack.c.b16 %v428, %v427
  %v506 = vpack.c.b16 %v430, %v429
  %v507 = vpack.c.b16 %v432, %v431
  %v508 = vpack.c.b16 %v434, %v433
  %v509 = vpack.c.b16 %v436, %v435
  %v510 = vpack.c.b16 %v438, %v437
  %v511 = vpack.c.b16 %v440, %v439
  %v512 = vpack.c.b16 %v442, %v441
  %v513 = vpack.c.b16 %v444, %v443
  %v514 = vpack.c.b16 %v446, %v445
  %v515 = vpack.c.b16 %v448, %v447
  %v516 = vpack.c.b16 %v450, %v449
  %v517 = vpack.c.b16 %v452, %v451
  %v518 = vpack.c.b16 %v454, %v453
  %583 = vmatprep.subr.bf16.mxu0 0
  %584 = vmatpush1.bf16.msra.mxu0 %v462
  %585 = vmatprep.subr.bf16.mxu0 0
  %586 = vmatpush1.bf16.msra.mxu0 %v461
  %587 = vmatprep.subr.bf16.mxu0 0
  %588 = vmatpush1.bf16.msra.mxu0 %v460
  %589 = vmatprep.subr.bf16.mxu0 0
  %590 = vmatpush1.bf16.msra.mxu0 %v459
  %591 = vmatprep.subr.bf16.mxu0 0
  %592 = vmatpush1.bf16.msra.mxu0 %v458
  %593 = vmatprep.subr.bf16.mxu0 0
  %594 = vmatpush1.bf16.msra.mxu0 %v457
  %595 = vmatprep.subr.bf16.mxu0 0
  %596 = vmatpush1.bf16.msra.mxu0 %v456
  %597 = vmatprep.subr.bf16.mxu0 0
  %598 = vmatpush1.bf16.msra.mxu0 %v455
  %599 = vmatprep.subr.bf16.mxu0 0
  %600 = vmatpush2.bf16.msra.mxu0 %v470
  %601 = vmatprep.subr.bf16.mxu0 0
  %602 = vmatpush2.bf16.msra.mxu0 %v469
  %603 = vmatprep.subr.bf16.mxu0 0
  %604 = vmatpush2.bf16.msra.mxu0 %v468
  %605 = vmatprep.subr.bf16.mxu0 0
  %606 = vmatpush2.bf16.msra.mxu0 %v467
  %607 = vmatprep.subr.bf16.mxu0 0
  %608 = vmatpush2.bf16.msra.mxu0 %v466
  %609 = vmatprep.subr.bf16.mxu0 0
  %610 = vmatpush2.bf16.msra.mxu0 %v465
  %611 = vmatprep.subr.bf16.mxu0 0
  %612 = vmatpush2.bf16.msra.mxu0 %v464
  %613 = vmatprep.subr.bf16.mxu0 0
  %614 = vmatpush2.bf16.msra.mxu0 %v463
  %615 = vmatprep.mubr.bf16.mxu0 %v179
  %616 = vmatmul.mubr.bf16.gmra.mxu0 %v165
  %v617 = vpop.f32.mrf.mxu0
  %v618 = vadd.f32 0.0, %v617
  %v619 = vpop.f32.mrf.mxu0
  %v620 = vpop.f32.mrf.mxu0
  %v621 = vpop.f32.mrf.mxu0
  %622 = vdwg.mxu0
  %623 = vmatprep.subr.bf16.mxu0 0
  %624 = vmatpush1.bf16.msra.mxu0 %v478
  %625 = vmatprep.subr.bf16.mxu0 0
  %626 = vmatpush1.bf16.msra.mxu0 %v477
  %627 = vmatprep.subr.bf16.mxu0 0
  %628 = vmatpush1.bf16.msra.mxu0 %v476
  %629 = vmatprep.subr.bf16.mxu0 0
  %630 = vmatpush1.bf16.msra.mxu0 %v475
  %631 = vmatprep.subr.bf16.mxu0 0
  %632 = vmatpush1.bf16.msra.mxu0 %v474
  %633 = vmatprep.subr.bf16.mxu0 0
  %634 = vmatpush1.bf16.msra.mxu0 %v473
  %635 = vmatprep.subr.bf16.mxu0 0
  %636 = vmatpush1.bf16.msra.mxu0 %v472
  %637 = vmatprep.subr.bf16.mxu0 0
  %638 = vmatpush1.bf16.msra.mxu0 %v471
  %639 = vmatprep.subr.bf16.mxu0 0
  %640 = vmatpush2.bf16.msra.mxu0 %v486
  %641 = vmatprep.subr.bf16.mxu0 0
  %642 = vmatpush2.bf16.msra.mxu0 %v485
  %643 = vmatprep.subr.bf16.mxu0 0
  %644 = vmatpush2.bf16.msra.mxu0 %v484
  %645 = vmatprep.subr.bf16.mxu0 0
  %646 = vmatpush2.bf16.msra.mxu0 %v483
  %647 = vmatprep.subr.bf16.mxu0 0
  %648 = vmatpush2.bf16.msra.mxu0 %v482
  %649 = vmatprep.subr.bf16.mxu0 0
  %650 = vmatpush2.bf16.msra.mxu0 %v481
  %651 = vmatprep.subr.bf16.mxu0 0
  %652 = vmatpush2.bf16.msra.mxu0 %v480
  %653 = vmatprep.subr.bf16.mxu0 0
  %654 = vmatpush2.bf16.msra.mxu0 %v479
  %655 = vmatprep.mubr.bf16.mxu0 %v189
  %656 = vmatmul.mubr.bf16.gmra.mxu0 %v187
  %v657 = vpop.f32.mrf.mxu0
  %v658 = vadd.f32 %v618, %v657
  %v659 = vpop.f32.mrf.mxu0
  %v660 = vpop.f32.mrf.mxu0
  %v661 = vpop.f32.mrf.mxu0
  %662 = vdwg.mxu0
  %663 = vmatprep.subr.bf16.mxu0 0
  %664 = vmatpush1.bf16.msra.mxu0 %v494
  %665 = vmatprep.subr.bf16.mxu0 0
  %666 = vmatpush1.bf16.msra.mxu0 %v493
  %667 = vmatprep.subr.bf16.mxu0 0
  %668 = vmatpush1.bf16.msra.mxu0 %v492
  %669 = vmatprep.subr.bf16.mxu0 0
  %670 = vmatpush1.bf16.msra.mxu0 %v491
  %671 = vmatprep.subr.bf16.mxu0 0
  %672 = vmatpush1.bf16.msra.mxu0 %v490
  %673 = vmatprep.subr.bf16.mxu0 0
  %674 = vmatpush1.bf16.msra.mxu0 %v489
  %675 = vmatprep.subr.bf16.mxu0 0
  %676 = vmatpush1.bf16.msra.mxu0 %v488
  %677 = vmatprep.subr.bf16.mxu0 0
  %678 = vmatpush1.bf16.msra.mxu0 %v487
  %679 = vmatprep.subr.bf16.mxu0 0
  %680 = vmatpush2.bf16.msra.mxu0 %v502
  %681 = vmatprep.subr.bf16.mxu0 0
  %682 = vmatpush2.bf16.msra.mxu0 %v501
  %683 = vmatprep.subr.bf16.mxu0 0
  %684 = vmatpush2.bf16.msra.mxu0 %v500
  %685 = vmatprep.subr.bf16.mxu0 0
  %686 = vmatpush2.bf16.msra.mxu0 %v499
  %687 = vmatprep.subr.bf16.mxu0 0
  %688 = vmatpush2.bf16.msra.mxu0 %v498
  %689 = vmatprep.subr.bf16.mxu0 0
  %690 = vmatpush2.bf16.msra.mxu0 %v497
  %691 = vmatprep.subr.bf16.mxu0 0
  %692 = vmatpush2.bf16.msra.mxu0 %v496
  %693 = vmatprep.subr.bf16.mxu0 0
  %694 = vmatpush2.bf16.msra.mxu0 %v495
  %695 = vmatprep.mubr.bf16.mxu0 %v186
  %696 = vmatmul.mubr.bf16.gmra.mxu0 %v172
  %v697 = vpop.f32.mrf.mxu0
  %v698 = vadd.f32 %v658, %v697
  %v699 = vpop.f32.mrf.mxu0
  %v700 = vpop.f32.mrf.mxu0
  %v701 = vpop.f32.mrf.mxu0
  %702 = vdwg.mxu0
  %703 = vmatprep.subr.bf16.mxu0 0
  %704 = vmatpush1.bf16.msra.mxu0 %v510
  %705 = vmatprep.subr.bf16.mxu0 0
  %706 = vmatpush1.bf16.msra.mxu0 %v509
  %707 = vmatprep.subr.bf16.mxu0 0
  %708 = vmatpush1.bf16.msra.mxu0 %v508
  %709 = vmatprep.subr.bf16.mxu0 0
  %710 = vmatpush1.bf16.msra.mxu0 %v507
  %711 = vmatprep.subr.bf16.mxu0 0
  %712 = vmatpush1.bf16.msra.mxu0 %v506
  %713 = vmatprep.subr.bf16.mxu0 0
  %714 = vmatpush1.bf16.msra.mxu0 %v505
  %715 = vmatprep.subr.bf16.mxu0 0
  %716 = vmatpush1.bf16.msra.mxu0 %v504
  %717 = vmatprep.subr.bf16.mxu0 0
  %718 = vmatpush1.bf16.msra.mxu0 %v503
  %719 = vmatprep.subr.bf16.mxu0 0
  %720 = vmatpush2.bf16.msra.mxu0 %v518
  %721 = vmatprep.subr.bf16.mxu0 0
  %722 = vmatpush2.bf16.msra.mxu0 %v517
  %723 = vmatprep.subr.bf16.mxu0 0
  %724 = vmatpush2.bf16.msra.mxu0 %v516
  %725 = vmatprep.subr.bf16.mxu0 0
  %726 = vmatpush2.bf16.msra.mxu0 %v515
  %727 = vmatprep.subr.bf16.mxu0 0
  %728 = vmatpush2.bf16.msra.mxu0 %v514
  %729 = vmatprep.subr.bf16.mxu0 0
  %730 = vmatpush2.bf16.msra.mxu0 %v513
  %731 = vmatprep.subr.bf16.mxu0 0
  %732 = vmatpush2.bf16.msra.mxu0 %v512
  %733 = vmatprep.subr.bf16.mxu0 0
  %734 = vmatpush2.bf16.msra.mxu0 %v511
  %735 = vmatprep.mubr.bf16.mxu0 %v190
  %736 = vmatmul.mubr.bf16.gmra.mxu0 %v188
  %v737 = vpop.f32.mrf.mxu0
  %v738 = vadd.f32 %v698, %v737
  %v739 = vpop.f32.mrf.mxu0
  %v740 = vpop.f32.mrf.mxu0
  %v741 = vpop.f32.mrf.mxu0
  %742 = vdwg.mxu0
  %v743 = vxor.u32 %v738, 2147483648
  %v744 = vmul.f32 %v743, 1.442695
  %v745 = vpow.pop %v744
  %v746 = vadd.f32 %v745, 1.0
  %v747 = vrcp.pop %v746
  %v748 = vmul.f32 1.0, %v747
  %vm749 = vcmask 1024
  %750 = vst.msk [vmem:[%s2] sm:$0x3] %vm749, %v748
  // Predicated region
  $region10: #{forward.15} parent=0 // pred_check
    _
  $region11: #{forward.15} parent=0 // pred_check_branch
    %752 = sbr.rel (0) target = $region13
  $region12: #{forward.15} parent=0 // pred_region
    _
  $region13: #{forward.15} parent=0 // pred_fallthru
    _
  // Predicated region
  $region14: #{forward.15} parent=0 // pred_check
    _
  $region15: #{forward.15} parent=0 // pred_check_branch
    %754 = sbr.rel (0) target = $region17
  $region16: #{forward.15} parent=0 // pred_region
    _
  $region17: #{forward.15} parent=0 // pred_fallthru
    _

</llo_original>
